<compile_context>
chip_gen: v5e
topology: v5e:2x2
jax: 0.10.0
libtpu: 0.0.40
codegen_flags: <defaults>
</compile_context>

<pallas_src>
import numpy as np
import jax
import jax.numpy as jnp
from jax.experimental import pallas as pl
from jax.experimental.pallas import tpu as pltpu


def _mxu(a, b):
    """MXU matmul with bf16 operands and f32 accumulation."""
    return jnp.dot(a.astype(jnp.bfloat16), b.astype(jnp.bfloat16),
                   preferred_element_type=jnp.float32)


def fused_forward_kernel(
        x_ref,                                   # (T*B, F)   time-major input, row n = t*B + b
        sel_ref,                                 # (B, Tp*B)  0/1 batch selector (bf16)
        cw_ref, cb_ref, bns_ref, bnb_ref,        # conv taps (3,F,C) bf16; bias/BN scale/shift (1,C)
        wih0_ref, whh0_ref, lb0_ref,             # BiLSTM layer 0 packed: (C,8H),(2H,8H) bf16, (1,8H)
        wih1_ref, whh1_ref, lb1_ref,             # BiLSTM layer 1 packed: (2H,8H),(2H,8H) bf16, (1,8H)
        wa_ref, ba_ref,                          # attention Linear(2H->1): (1,2H),(1,1)
        fw1_ref, fb1_ref, fw2_ref, fb2_ref,      # FC head: (2H,64) bf16,(1,64),(64,O) bf16,(1,O)
        out_ref,                                 # (B, O)
        xpad_sc,                                 # ((T+2)*B, F)  zero-padded conv input
        ypad_sc,                                 # ((T+2)*B, C)  zero-padded post-ReLU (for maxpool)
        gx_sc,                                   # (Tp*B, 8H)    hoisted gate projections (lane-dense)
        hist_sc):                                # (Tp*B, 4H)    h histories [fwd0|bwd0|fwd1|bwd1]
    TB, F = x_ref.shape
    C = cb_ref.shape[-1]
    H = whh0_ref.shape[-1] // 8
    B = out_ref.shape[0]
    T = TB // B
    Tp = T + 1
    f32 = jnp.float32
    bf16 = jnp.bfloat16

    # ---------------- Conv1d(k=3, pad=1): 3 shifted matmuls over a zero-padded copy -------
    xpad_sc[0:B, :] = jnp.zeros((B, F), f32)
    xpad_sc[B:(T + 1) * B, :] = x_ref[...]
    xpad_sc[(T + 1) * B:(T + 2) * B, :] = jnp.zeros((B, F), f32)
    y = (_mxu(xpad_sc[0:T * B, :], cw_ref[0])
         + _mxu(xpad_sc[B:(T + 1) * B, :], cw_ref[1])
         + _mxu(xpad_sc[2 * B:(T + 2) * B, :], cw_ref[2]) + cb_ref[...])     # (T*B, C)
    # BatchNorm1d (eval, folded running stats) + ReLU
    y = jnp.maximum(y * bns_ref[...] + bnb_ref[...], 0.0)                    # >= 0

    # ---------------- MaxPool1d(k=2, s=1, p=1) along time -> length T+1 --------------------
    # Zero padding is equivalent to the -inf pool padding because y is post-ReLU (>= 0).
    ypad_sc[0:B, :] = jnp.zeros((B, C), f32)
    ypad_sc[B:(T + 1) * B, :] = y
    ypad_sc[(T + 1) * B:(T + 2) * B, :] = jnp.zeros((B, C), f32)
    pooled = jnp.maximum(ypad_sc[0:Tp * B, :], ypad_sc[B:(T + 2) * B, :])    # (Tp*B, C)

    # Gate-lane layout (width 8H): [i_f | i_b | f_f | f_b | o_f | o_b | g_f | g_b]
    lane = jax.lax.broadcasted_iota(jnp.int32, (B, 8 * H), 1)
    fwd_lane = ((lane < H)
                | ((lane >= 2 * H) & (lane < 3 * H))
                | ((lane >= 4 * H) & (lane < 5 * H))
                | ((lane >= 6 * H) & (lane < 7 * H)))        # True on forward-direction lanes

    def bilstm_layer(x_in, wih_ref, whh_ref, b_ref, lane_lo):
        """One bidirectional LSTM layer.  Writes h history to hist_sc[:, lane_lo:lane_lo+2H]."""
        # Hoisted input projections: ONE matmul covers 4 gates x 2 directions x all timesteps;
        # result store is fully lane-dense (8H = 128 lanes at H = 16).
        gx_sc[...] = _mxu(x_in, wih_ref[...]) + b_ref[...]
        whh = whh_ref[...]                                    # (2H, 8H) bf16, block-diag fwd/bwd
        h = jnp.zeros((B, 2 * H), f32)                        # lane-concat [h_fwd | h_bwd]
        c = jnp.zeros((B, 2 * H), f32)
        # Statically unrolled time loop; both directions share ONE recurrent matmul per step.
        # TODO(synk): switch to lax.fori_loop(..., unroll=k) if H is ever scaled up (>=64) to
        # bound vreg live ranges; at H=16/B=2 the full unroll is fine.
        for j in range(Tp):
            tb = Tp - 1 - j                                   # backward-direction time index
            # h is cast to bf16 only as an MXU operand (f32 accumulation); drop the cast for
            # strict fp32 parity at the cost of the multi-pass f32 MXU path.
            pre = jnp.dot(h.astype(bf16), whh, preferred_element_type=f32)   # (B, 8H)
            slab = pre + jnp.where(fwd_lane,
                                   gx_sc[j * B:(j + 1) * B, :],
                                   gx_sc[tb * B:(tb + 1) * B, :])
            sig = jax.nn.sigmoid(slab[:, 0:6 * H])            # [i_f,i_b,f_f,f_b,o_f,o_b]
            g = jnp.tanh(slab[:, 6 * H:8 * H])                # [g_f, g_b]
            c = sig[:, 2 * H:4 * H] * c + sig[:, 0:2 * H] * g
            h = sig[:, 4 * H:6 * H] * jnp.tanh(c)
            hist_sc[j * B:(j + 1) * B, lane_lo:lane_lo + H] = h[:, 0:H]          # fwd @ time j
            hist_sc[tb * B:(tb + 1) * B, lane_lo + H:lane_lo + 2 * H] = h[:, H:2 * H]  # bwd @ tb

    # ---------------- BiLSTM layer 0 (input = pooled conv features) ------------------------
    bilstm_layer(pooled, wih0_ref, whh0_ref, lb0_ref, 0)
    # TODO(synk): nn.LSTM inter-layer dropout is training-only; no-op at inference.
    # ---------------- BiLSTM layer 1 (input = lane-concat [fwd0 | bwd0]) -------------------
    bilstm_layer(hist_sc[:, 0:2 * H], wih1_ref, whh1_ref, lb1_ref, 2 * H)

    # ---------------- Attention: Linear(2H->1)+Tanh, softmax over time, context ------------
    h2 = hist_sc[:, 2 * H:4 * H]                              # (Tp*B, 2H) == lstm_out rows
    # Output dim is 1 -> VPU multiply + lane reduction (an MXU matmul would waste 127/128 cols).
    s = jnp.tanh(jnp.sum(h2 * wa_ref[...], axis=-1, keepdims=True) + ba_ref[...])   # (Tp*B, 1)
    e = jnp.exp(s)                    # s is tanh-bounded in [-1,1] -> no max-shift needed
    # One fused per-batch reduction: sel (B,Tp*B) @ [e*h2 | e]; operands are O(1) -> bf16 safe.
    red = jnp.dot(sel_ref[...],
                  jnp.concatenate([e * h2, e], axis=-1).astype(bf16),
                  preferred_element_type=f32)                 # (B, 2H+1): [context-num | denom]
    ctx = red[:, 0:2 * H] * pl.reciprocal(red[:, 2 * H:2 * H + 1], approx=True)      # (B, 2H)

    # ---------------- FC head: Linear(2H->64)+ReLU (+Dropout no-op)+Linear(64->O) ----------
    z = jnp.maximum(_mxu(ctx, fw1_ref[...]) + fb1_ref[...], 0.0)                     # (B, 64)
    out_ref[...] = _mxu(z, fw2_ref[...]) + fb2_ref[...]                              # (B, O)


# --------------------------------------------------------------------------------------------
# Wrapper: the only XLA-side prep left is a tiny transpose/reshape of x; the batch selector is
# a numpy-built jit constant (zero runtime ops).  No grid: everything is VMEM resident.
# TODO(synk): at production B/H add a leading "parallel" grid axis over batch so v7x's second
# TensorCore is used; at B=2/H=16 the cross-core sync outweighs the recurrence cost.
# --------------------------------------------------------------------------------------------
def forward(params, x):
    B, T, F = x.shape                                        # batch-first, like the torch module
    C = params["conv_b"].shape[-1]
    H = params["lstm"][0]["whh"].shape[-1] // 8
    O = params["fc2_b"].shape[-1]
    Tp = T + 1

    x_tm = jnp.transpose(x, (1, 0, 2)).reshape(T * B, F)     # time-major rows n = t*B + b
    sel = jnp.asarray(np.tile(np.eye(B, dtype=np.float32), (1, Tp)), jnp.bfloat16)   # (B, Tp*B)

    l0, l1 = params["lstm"]
    args = (x_tm, sel,
            params["conv_w"], params["conv_b"], params["bn_scale"], params["bn_shift"],
            l0["wih"], l0["whh"], l0["b"],
            l1["wih"], l1["whh"], l1["b"],
            params["attn_w"], params["attn_b"],
            params["fc1_w"], params["fc1_b"], params["fc2_w"], params["fc2_b"])
    return pl.pallas_call(
        fused_forward_kernel,
        out_shape=jax.ShapeDtypeStruct((B, O), jnp.float32),
        scratch_shapes=[
            pltpu.VMEM(((T + 2) * B, F), jnp.float32),       # zero-padded conv input
            pltpu.VMEM(((T + 2) * B, C), jnp.float32),       # zero-padded post-ReLU (maxpool)
            pltpu.VMEM((Tp * B, 8 * H), jnp.float32),        # hoisted gate projections (lane-dense)
            pltpu.VMEM((Tp * B, 4 * H), jnp.float32),        # h histories [fwd0|bwd0|fwd1|bwd1]
        ],
    )(*args)


# --------------------------------------------------------------------------------------------
# Deterministic synthetic parameters (shapes follow the nn.Module __init__), pre-packed for the
# kernel.  Matmul weights are bf16 (MXU operands); biases / BN terms stay f32.
# Gate-lane packing (width 8H): [i_f | i_b | f_f | f_b | o_f | o_b | g_f | g_b].
# W_hh is block-diagonal: rows 0:H feed only forward lanes, rows H:2H only backward lanes.
# (To load real torch weights, permute the torch [i,f,g,o] gate blocks into this layout.)
# --------------------------------------------------------------------------------------------
def init_params(key, input_size, cnn_out, hidden, output_size, num_layers=2):
    keys = iter(jax.random.split(key, 96))
    bf16 = jnp.bfloat16
    H = hidden

    def rnd(shape, scale=0.1, dtype=jnp.float32):
        return (jax.random.normal(next(keys), shape, jnp.float32) * scale).astype(dtype)

    p = {}
    p["conv_w"] = rnd((3, input_size, cnn_out), dtype=bf16)  # taps (t-1, t, t+1)
    p["conv_b"] = rnd((1, cnn_out))
    gamma = 1.0 + rnd((1, cnn_out))
    beta = rnd((1, cnn_out))
    r_mean = rnd((1, cnn_out))
    r_var = 1.0 + jnp.abs(rnd((1, cnn_out)))
    p["bn_scale"] = gamma / jnp.sqrt(r_var + 1e-5)           # BatchNorm (eval) folded
    p["bn_shift"] = beta - r_mean * p["bn_scale"]

    lstm = []
    d_in = cnn_out
    for _layer in range(num_layers):
        wih = jnp.zeros((d_in, 8 * H), jnp.float32)
        whh = jnp.zeros((2 * H, 8 * H), jnp.float32)
        b = jnp.zeros((1, 8 * H), jnp.float32)
        for d in range(2):                                   # 0 = fwd, 1 = bwd
            for gate in range(4):                            # i, f, o, g (packed order)
                lo = (2 * gate + d) * H
                wih = wih.at[:, lo:lo + H].set(rnd((d_in, H)))
                whh = whh.at[d * H:(d + 1) * H, lo:lo + H].set(rnd((H, H)))
                b = b.at[:, lo:lo + H].set(rnd((1, H)))      # b_ih + b_hh combined
        lstm.append({"wih": wih.astype(bf16), "whh": whh.astype(bf16), "b": b})
        d_in = 2 * H
    p["lstm"] = lstm

    p["attn_w"] = rnd((1, 2 * H))                            # Linear(2H -> 1) weight row
    p["attn_b"] = rnd((1, 1))
    p["fc1_w"] = rnd((2 * H, 64), dtype=bf16)
    p["fc1_b"] = rnd((1, 64))
    p["fc2_w"] = rnd((64, output_size), dtype=bf16)
    p["fc2_b"] = rnd((1, output_size))
    return p


if __name__ == "__main__":
    B, T, F = 2, 8, 8                 # small shapes consistent with the module
    cnn_out, hidden, output_size = 16, 16, 1

    key = jax.random.PRNGKey(0)
    kx, kp = jax.random.split(key)
    x = jax.random.normal(kx, (B, T, F), dtype=jnp.float32)
    params = init_params(kp, F, cnn_out, hidden, output_size)

    out = jax.jit(forward)(params, x)
    out = jax.block_until_ready(out)

    assert out.shape == (B, output_size), out.shape
    assert bool(jnp.all(jnp.isfinite(out)))
    print("KERNEL_OK")
</pallas_src>

<mosaic_0001>
module attributes {stable_mosaic.version = 11 : i64} {
  func.func @fused_forward_kernel(%arg0: memref<16x8xf32, #tpu.memory_space<vmem>>, %arg1: memref<2x18xbf16, #tpu.memory_space<vmem>>, %arg2: memref<3x8x16xbf16, #tpu.memory_space<vmem>>, %arg3: memref<1x16xf32, #tpu.memory_space<vmem>>, %arg4: memref<1x16xf32, #tpu.memory_space<vmem>>, %arg5: memref<1x16xf32, #tpu.memory_space<vmem>>, %arg6: memref<16x128xbf16, #tpu.memory_space<vmem>>, %arg7: memref<32x128xbf16, #tpu.memory_space<vmem>>, %arg8: memref<1x128xf32, #tpu.memory_space<vmem>>, %arg9: memref<32x128xbf16, #tpu.memory_space<vmem>>, %arg10: memref<32x128xbf16, #tpu.memory_space<vmem>>, %arg11: memref<1x128xf32, #tpu.memory_space<vmem>>, %arg12: memref<1x32xf32, #tpu.memory_space<vmem>>, %arg13: memref<1x1xf32, #tpu.memory_space<vmem>>, %arg14: memref<32x64xbf16, #tpu.memory_space<vmem>>, %arg15: memref<1x64xf32, #tpu.memory_space<vmem>>, %arg16: memref<64x1xbf16, #tpu.memory_space<vmem>>, %arg17: memref<1x1xf32, #tpu.memory_space<vmem>>, %arg18: memref<2x1xf32, #tpu.memory_space<vmem>>, %arg19: memref<20x8xf32, #tpu.memory_space<vmem>>, %arg20: memref<20x16xf32, #tpu.memory_space<vmem>>, %arg21: memref<18x128xf32, #tpu.memory_space<vmem>>, %arg22: memref<18x64xf32, #tpu.memory_space<vmem>>) attributes {dimension_semantics = [], scalar_prefetch = 0 : i64, scratch_operands = 4 : i64, tpu.core_type = #tpu.core_type<tc>} {
    %cst = arith.constant 0.000000e+00 : f32
    %0 = vector.broadcast %cst : f32 to vector<2x8xf32>
    %c0 = arith.constant 0 : index
    %c0_0 = arith.constant 0 : index
    %1 = vector.load %arg19[%c0, %c0_0] : memref<20x8xf32, #tpu.memory_space<vmem>>, vector<2x8xf32>
    tpu.vector_store %arg19[%c0, %c0_0], %0 {strides = array<i32>} : memref<20x8xf32, #tpu.memory_space<vmem>>, vector<2x8xf32>,
    %c0_1 = arith.constant 0 : index
    %c0_2 = arith.constant 0 : index
    %2 = vector.load %arg0[%c0_1, %c0_2] : memref<16x8xf32, #tpu.memory_space<vmem>>, vector<16x8xf32>
    %c2 = arith.constant 2 : index
    %c0_3 = arith.constant 0 : index
    %3 = vector.load %arg19[%c2, %c0_3] : memref<20x8xf32, #tpu.memory_space<vmem>>, vector<16x8xf32>
    tpu.vector_store %arg19[%c2, %c0_3], %2 {strides = array<i32>} : memref<20x8xf32, #tpu.memory_space<vmem>>, vector<16x8xf32>,
    %cst_4 = arith.constant 0.000000e+00 : f32
    %4 = vector.broadcast %cst_4 : f32 to vector<2x8xf32>
    %c18 = arith.constant 18 : index
    %c0_5 = arith.constant 0 : index
    %5 = vector.load %arg19[%c18, %c0_5] : memref<20x8xf32, #tpu.memory_space<vmem>>, vector<2x8xf32>
    tpu.vector_store %arg19[%c18, %c0_5], %4 {strides = array<i32>} : memref<20x8xf32, #tpu.memory_space<vmem>>, vector<2x8xf32>,
    %c0_6 = arith.constant 0 : index
    %c0_7 = arith.constant 0 : index
    %6 = vector.load %arg19[%c0_6, %c0_7] : memref<20x8xf32, #tpu.memory_space<vmem>>, vector<16x8xf32>
    %c0_8 = arith.constant 0 : index
    %c0_9 = arith.constant 0 : index
    %c0_10 = arith.constant 0 : index
    %7 = vector.load %arg2[%c0_8, %c0_9, %c0_10] : memref<3x8x16xbf16, #tpu.memory_space<vmem>>, vector<1x8x16xbf16>
    %8 = vector.shape_cast %7 : vector<1x8x16xbf16> to vector<8x16xbf16>
    %9 = arith.truncf %6 : vector<16x8xf32> to vector<16x8xbf16>
    %cst_11 = arith.constant dense<0.000000e+00> : vector<16x16xf32>
    %10 = tpu.matmul %9, %8, %cst_11 {dimension_numbers = #tpu.dot_dimension_numbers<[1], [0], [0], [1], [0, 0, 1, 1], [], []>} : vector<16x8xbf16>, vector<8x16xbf16>, vector<16x16xf32> -> vector<16x16xf32>
    %c2_12 = arith.constant 2 : index
    %c0_13 = arith.constant 0 : index
    %11 = vector.load %arg19[%c2_12, %c0_13] : memref<20x8xf32, #tpu.memory_space<vmem>>, vector<16x8xf32>
    %c1 = arith.constant 1 : index
    %c0_14 = arith.constant 0 : index
    %c0_15 = arith.constant 0 : index
    %12 = vector.load %arg2[%c1, %c0_14, %c0_15] : memref<3x8x16xbf16, #tpu.memory_space<vmem>>, vector<1x8x16xbf16>
    %13 = vector.shape_cast %12 : vector<1x8x16xbf16> to vector<8x16xbf16>
    %14 = arith.truncf %11 : vector<16x8xf32> to vector<16x8xbf16>
    %cst_16 = arith.constant dense<0.000000e+00> : vector<16x16xf32>
    %15 = tpu.matmul %14, %13, %cst_16 {dimension_numbers = #tpu.dot_dimension_numbers<[1], [0], [0], [1], [0, 0, 1, 1], [], []>} : vector<16x8xbf16>, vector<8x16xbf16>, vector<16x16xf32> -> vector<16x16xf32>
    %16 = arith.addf %10, %15 : vector<16x16xf32>
    %c4 = arith.constant 4 : index
    %c0_17 = arith.constant 0 : index
    %17 = vector.load %arg19[%c4, %c0_17] : memref<20x8xf32, #tpu.memory_space<vmem>>, vector<16x8xf32>
    %c2_18 = arith.constant 2 : index
    %c0_19 = arith.constant 0 : index
    %c0_20 = arith.constant 0 : index
    %18 = vector.load %arg2[%c2_18, %c0_19, %c0_20] : memref<3x8x16xbf16, #tpu.memory_space<vmem>>, vector<1x8x16xbf16>
    %19 = vector.shape_cast %18 : vector<1x8x16xbf16> to vector<8x16xbf16>
    %20 = arith.truncf %17 : vector<16x8xf32> to vector<16x8xbf16>
    %cst_21 = arith.constant dense<0.000000e+00> : vector<16x16xf32>
    %21 = tpu.matmul %20, %19, %cst_21 {dimension_numbers = #tpu.dot_dimension_numbers<[1], [0], [0], [1], [0, 0, 1, 1], [], []>} : vector<16x8xbf16>, vector<8x16xbf16>, vector<16x16xf32> -> vector<16x16xf32>
    %22 = arith.addf %16, %21 : vector<16x16xf32>
    %c0_22 = arith.constant 0 : index
    %c0_23 = arith.constant 0 : index
    %23 = vector.load %arg3[%c0_22, %c0_23] : memref<1x16xf32, #tpu.memory_space<vmem>>, vector<1x16xf32>
    %24 = vector.broadcast %23 : vector<1x16xf32> to vector<16x16xf32>
    %25 = arith.addf %22, %24 : vector<16x16xf32>
    %c0_24 = arith.constant 0 : index
    %c0_25 = arith.constant 0 : index
    %26 = vector.load %arg4[%c0_24, %c0_25] : memref<1x16xf32, #tpu.memory_space<vmem>>, vector<1x16xf32>
    %27 = vector.broadcast %26 : vector<1x16xf32> to vector<16x16xf32>
    %28 = arith.mulf %25, %27 : vector<16x16xf32>
    %c0_26 = arith.constant 0 : index
    %c0_27 = arith.constant 0 : index
    %29 = vector.load %arg5[%c0_26, %c0_27] : memref<1x16xf32, #tpu.memory_space<vmem>>, vector<1x16xf32>
    %30 = vector.broadcast %29 : vector<1x16xf32> to vector<16x16xf32>
    %31 = arith.addf %28, %30 : vector<16x16xf32>
    %cst_28 = arith.constant 0.000000e+00 : f32
    %32 = vector.broadcast %cst_28 : f32 to vector<16x16xf32>
    %33 = arith.maximumf %31, %32 : vector<16x16xf32>
    %cst_29 = arith.constant 0.000000e+00 : f32
    %34 = vector.broadcast %cst_29 : f32 to vector<2x16xf32>
    %c0_30 = arith.constant 0 : index
    %c0_31 = arith.constant 0 : index
    %35 = vector.load %arg20[%c0_30, %c0_31] : memref<20x16xf32, #tpu.memory_space<vmem>>, vector<2x16xf32>
    tpu.vector_store %arg20[%c0_30, %c0_31], %34 {strides = array<i32>} : memref<20x16xf32, #tpu.memory_space<vmem>>, vector<2x16xf32>,
    %c2_32 = arith.constant 2 : index
    %c0_33 = arith.constant 0 : index
    %36 = vector.load %arg20[%c2_32, %c0_33] : memref<20x16xf32, #tpu.memory_space<vmem>>, vector<16x16xf32>
    tpu.vector_store %arg20[%c2_32, %c0_33], %33 {strides = array<i32>} : memref<20x16xf32, #tpu.memory_space<vmem>>, vector<16x16xf32>,
    %cst_34 = arith.constant 0.000000e+00 : f32
    %37 = vector.broadcast %cst_34 : f32 to vector<2x16xf32>
    %c18_35 = arith.constant 18 : index
    %c0_36 = arith.constant 0 : index
    %38 = vector.load %arg20[%c18_35, %c0_36] : memref<20x16xf32, #tpu.memory_space<vmem>>, vector<2x16xf32>
    tpu.vector_store %arg20[%c18_35, %c0_36], %37 {strides = array<i32>} : memref<20x16xf32, #tpu.memory_space<vmem>>, vector<2x16xf32>,
    %c0_37 = arith.constant 0 : index
    %c0_38 = arith.constant 0 : index
    %39 = vector.load %arg20[%c0_37, %c0_38] : memref<20x16xf32, #tpu.memory_space<vmem>>, vector<18x16xf32>
    %c2_39 = arith.constant 2 : index
    %c0_40 = arith.constant 0 : index
    %40 = vector.load %arg20[%c2_39, %c0_40] : memref<20x16xf32, #tpu.memory_space<vmem>>, vector<18x16xf32>
    %41 = arith.maximumf %39, %40 : vector<18x16xf32>
    %42 = tpu.iota {dimensions = array<i32: 1>} : vector<2x128xi32>
    %c16_i32 = arith.constant 16 : i32
    %43 = vector.broadcast %c16_i32 : i32 to vector<2x128xi32>
    %44 = arith.cmpi slt, %42, %43 : vector<2x128xi32>
    %c32_i32 = arith.constant 32 : i32
    %45 = vector.broadcast %c32_i32 : i32 to vector<2x128xi32>
    %46 = arith.cmpi sge, %42, %45 : vector<2x128xi32>
    %c48_i32 = arith.constant 48 : i32
    %47 = vector.broadcast %c48_i32 : i32 to vector<2x128xi32>
    %48 = arith.cmpi slt, %42, %47 : vector<2x128xi32>
    %49 = arith.andi %46, %48 : vector<2x128xi1>
    %50 = arith.ori %44, %49 : vector<2x128xi1>
    %c64_i32 = arith.constant 64 : i32
    %51 = vector.broadcast %c64_i32 : i32 to vector<2x128xi32>
    %52 = arith.cmpi sge, %42, %51 : vector<2x128xi32>
    %c80_i32 = arith.constant 80 : i32
    %53 = vector.broadcast %c80_i32 : i32 to vector<2x128xi32>
    %54 = arith.cmpi slt, %42, %53 : vector<2x128xi32>
    %55 = arith.andi %52, %54 : vector<2x128xi1>
    %56 = arith.ori %50, %55 : vector<2x128xi1>
    %c96_i32 = arith.constant 96 : i32
    %57 = vector.broadcast %c96_i32 : i32 to vector<2x128xi32>
    %58 = arith.cmpi sge, %42, %57 : vector<2x128xi32>
    %c112_i32 = arith.constant 112 : i32
    %59 = vector.broadcast %c112_i32 : i32 to vector<2x128xi32>
    %60 = arith.cmpi slt, %42, %59 : vector<2x128xi32>
    %61 = arith.andi %58, %60 : vector<2x128xi1>
    %62 = arith.ori %56, %61 : vector<2x128xi1>
    %c0_41 = arith.constant 0 : index
    %c0_42 = arith.constant 0 : index
    %63 = vector.load %arg6[%c0_41, %c0_42] : memref<16x128xbf16, #tpu.memory_space<vmem>>, vector<16x128xbf16>
    %64 = arith.truncf %41 : vector<18x16xf32> to vector<18x16xbf16>
    %cst_43 = arith.constant dense<0.000000e+00> : vector<18x128xf32>
    %65 = tpu.matmul %64, %63, %cst_43 {dimension_numbers = #tpu.dot_dimension_numbers<[1], [0], [0], [1], [0, 0, 1, 1], [], []>} : vector<18x16xbf16>, vector<16x128xbf16>, vector<18x128xf32> -> vector<18x128xf32>
    %c0_44 = arith.constant 0 : index
    %c0_45 = arith.constant 0 : index
    %66 = vector.load %arg8[%c0_44, %c0_45] : memref<1x128xf32, #tpu.memory_space<vmem>>, vector<1x128xf32>
    %67 = vector.broadcast %66 : vector<1x128xf32> to vector<18x128xf32>
    %68 = arith.addf %65, %67 : vector<18x128xf32>
    %c0_46 = arith.constant 0 : index
    %c0_47 = arith.constant 0 : index
    %69 = vector.load %arg21[%c0_46, %c0_47] : memref<18x128xf32, #tpu.memory_space<vmem>>, vector<18x128xf32>
    tpu.vector_store %arg21[%c0_46, %c0_47], %68 {strides = array<i32>} : memref<18x128xf32, #tpu.memory_space<vmem>>, vector<18x128xf32>,
    %c0_48 = arith.constant 0 : index
    %c0_49 = arith.constant 0 : index
    %70 = vector.load %arg7[%c0_48, %c0_49] : memref<32x128xbf16, #tpu.memory_space<vmem>>, vector<32x128xbf16>
    %cst_50 = arith.constant 0.000000e+00 : f32
    %71 = vector.broadcast %cst_50 : f32 to vector<2x32xf32>
    %cst_51 = arith.constant 0.000000e+00 : f32
    %72 = vector.broadcast %cst_51 : f32 to vector<2x32xf32>
    %73 = arith.truncf %71 : vector<2x32xf32> to vector<2x32xbf16>
    %cst_52 = arith.constant dense<0.000000e+00> : vector<2x128xf32>
    %74 = tpu.matmul %73, %70, %cst_52 {dimension_numbers = #tpu.dot_dimension_numbers<[1], [0], [0], [1], [0, 0, 1, 1], [], []>} : vector<2x32xbf16>, vector<32x128xbf16>, vector<2x128xf32> -> vector<2x128xf32>
    %c0_53 = arith.constant 0 : index
    %c0_54 = arith.constant 0 : index
    %75 = vector.load %arg21[%c0_53, %c0_54] : memref<18x128xf32, #tpu.memory_space<vmem>>, vector<2x128xf32>
    %c16 = arith.constant 16 : index
    %c0_55 = arith.constant 0 : index
    %76 = vector.load %arg21[%c16, %c0_55] : memref<18x128xf32, #tpu.memory_space<vmem>>, vector<2x128xf32>
    %77 = arith.select %62, %75, %76 : vector<2x128xi1>, vector<2x128xf32>
    %78 = arith.addf %74, %77 : vector<2x128xf32>
    %79 = vector.extract_strided_slice %78 {offsets = [0, 0], sizes = [2, 96], strides = [1, 1]} : vector<2x128xf32> to vector<2x96xf32>
    %80 = arith.negf %79 : vector<2x96xf32>
    %81 = math.exp %80 : vector<2x96xf32>
    %cst_56 = arith.constant 1.000000e+00 : f32
    %82 = vector.broadcast %cst_56 : f32 to vector<2x96xf32>
    %83 = arith.addf %82, %81 : vector<2x96xf32>
    %84 = arith.divf %82, %83 : vector<2x96xf32>
    %85 = vector.extract_strided_slice %78 {offsets = [0, 96], sizes = [2, 32], strides = [1, 1]} : vector<2x128xf32> to vector<2x32xf32>
    %86 = math.tanh %85 : vector<2x32xf32>
    %87 = vector.extract_strided_slice %84 {offsets = [0, 32], sizes = [2, 32], strides = [1, 1]} : vector<2x96xf32> to vector<2x32xf32>
    %88 = arith.mulf %87, %72 : vector<2x32xf32>
    %89 = vector.extract_strided_slice %84 {offsets = [0, 0], sizes = [2, 32], strides = [1, 1]} : vector<2x96xf32> to vector<2x32xf32>
    %90 = arith.mulf %89, %86 : vector<2x32xf32>
    %91 = arith.addf %88, %90 : vector<2x32xf32>
    %92 = vector.extract_strided_slice %84 {offsets = [0, 64], sizes = [2, 32], strides = [1, 1]} : vector<2x96xf32> to vector<2x32xf32>
    %93 = math.tanh %91 : vector<2x32xf32>
    %94 = arith.mulf %92, %93 : vector<2x32xf32>
    %95 = vector.extract_strided_slice %94 {offsets = [0, 0], sizes = [2, 16], strides = [1, 1]} : vector<2x32xf32> to vector<2x16xf32>
    %c0_57 = arith.constant 0 : index
    %c0_58 = arith.constant 0 : index
    %96 = vector.load %arg22[%c0_57, %c0_58] : memref<18x64xf32, #tpu.memory_space<vmem>>, vector<2x16xf32>
    tpu.vector_store %arg22[%c0_57, %c0_58], %95 {strides = array<i32>} : memref<18x64xf32, #tpu.memory_space<vmem>>, vector<2x16xf32>,
    %97 = vector.extract_strided_slice %94 {offsets = [0, 16], sizes = [2, 16], strides = [1, 1]} : vector<2x32xf32> to vector<2x16xf32>
    %c16_59 = arith.constant 16 : index
    %c16_60 = arith.constant 16 : index
    %98 = vector.load %arg22[%c16_59, %c16_60] : memref<18x64xf32, #tpu.memory_space<vmem>>, vector<2x16xf32>
    tpu.vector_store %arg22[%c16_59, %c16_60], %97 {strides = array<i32>} : memref<18x64xf32, #tpu.memory_space<vmem>>, vector<2x16xf32>,
    %99 = arith.truncf %94 : vector<2x32xf32> to vector<2x32xbf16>
    %cst_61 = arith.constant dense<0.000000e+00> : vector<2x128xf32>
    %100 = tpu.matmul %99, %70, %cst_61 {dimension_numbers = #tpu.dot_dimension_numbers<[1], [0], [0], [1], [0, 0, 1, 1], [], []>} : vector<2x32xbf16>, vector<32x128xbf16>, vector<2x128xf32> -> vector<2x128xf32>
    %c2_62 = arith.constant 2 : index
    %c0_63 = arith.constant 0 : index
    %101 = vector.load %arg21[%c2_62, %c0_63] : memref<18x128xf32, #tpu.memory_space<vmem>>, vector<2x128xf32>
    %c14 = arith.constant 14 : index
    %c0_64 = arith.constant 0 : index
    %102 = vector.load %arg21[%c14, %c0_64] : memref<18x128xf32, #tpu.memory_space<vmem>>, vector<2x128xf32>
    %103 = arith.select %62, %101, %102 : vector<2x128xi1>, vector<2x128xf32>
    %104 = arith.addf %100, %103 : vector<2x128xf32>
    %105 = vector.extract_strided_slice %104 {offsets = [0, 0], sizes = [2, 96], strides = [1, 1]} : vector<2x128xf32> to vector<2x96xf32>
    %106 = arith.negf %105 : vector<2x96xf32>
    %107 = math.exp %106 : vector<2x96xf32>
    %cst_65 = arith.constant 1.000000e+00 : f32
    %108 = vector.broadcast %cst_65 : f32 to vector<2x96xf32>
    %109 = arith.addf %108, %107 : vector<2x96xf32>
    %110 = arith.divf %108, %109 : vector<2x96xf32>
    %111 = vector.extract_strided_slice %104 {offsets = [0, 96], sizes = [2, 32], strides = [1, 1]} : vector<2x128xf32> to vector<2x32xf32>
    %112 = math.tanh %111 : vector<2x32xf32>
    %113 = vector.extract_strided_slice %110 {offsets = [0, 32], sizes = [2, 32], strides = [1, 1]} : vector<2x96xf32> to vector<2x32xf32>
    %114 = arith.mulf %113, %91 : vector<2x32xf32>
    %115 = vector.extract_strided_slice %110 {offsets = [0, 0], sizes = [2, 32], strides = [1, 1]} : vector<2x96xf32> to vector<2x32xf32>
    %116 = arith.mulf %115, %112 : vector<2x32xf32>
    %117 = arith.addf %114, %116 : vector<2x32xf32>
    %118 = vector.extract_strided_slice %110 {offsets = [0, 64], sizes = [2, 32], strides = [1, 1]} : vector<2x96xf32> to vector<2x32xf32>
    %119 = math.tanh %117 : vector<2x32xf32>
    %120 = arith.mulf %118, %119 : vector<2x32xf32>
    %121 = vector.extract_strided_slice %120 {offsets = [0, 0], sizes = [2, 16], strides = [1, 1]} : vector<2x32xf32> to vector<2x16xf32>
    %c2_66 = arith.constant 2 : index
    %c0_67 = arith.constant 0 : index
    %122 = vector.load %arg22[%c2_66, %c0_67] : memref<18x64xf32, #tpu.memory_space<vmem>>, vector<2x16xf32>
    tpu.vector_store %arg22[%c2_66, %c0_67], %121 {strides = array<i32>} : memref<18x64xf32, #tpu.memory_space<vmem>>, vector<2x16xf32>,
    %123 = vector.extract_strided_slice %120 {offsets = [0, 16], sizes = [2, 16], strides = [1, 1]} : vector<2x32xf32> to vector<2x16xf32>
    %c14_68 = arith.constant 14 : index
    %c16_69 = arith.constant 16 : index
    %124 = vector.load %arg22[%c14_68, %c16_69] : memref<18x64xf32, #tpu.memory_space<vmem>>, vector<2x16xf32>
    tpu.vector_store %arg22[%c14_68, %c16_69], %123 {strides = array<i32>} : memref<18x64xf32, #tpu.memory_space<vmem>>, vector<2x16xf32>,
    %125 = arith.truncf %120 : vector<2x32xf32> to vector<2x32xbf16>
    %cst_70 = arith.constant dense<0.000000e+00> : vector<2x128xf32>
    %126 = tpu.matmul %125, %70, %cst_70 {dimension_numbers = #tpu.dot_dimension_numbers<[1], [0], [0], [1], [0, 0, 1, 1], [], []>} : vector<2x32xbf16>, vector<32x128xbf16>, vector<2x128xf32> -> vector<2x128xf32>
    %c4_71 = arith.constant 4 : index
    %c0_72 = arith.constant 0 : index
    %127 = vector.load %arg21[%c4_71, %c0_72] : memref<18x128xf32, #tpu.memory_space<vmem>>, vector<2x128xf32>
    %c12 = arith.constant 12 : index
    %c0_73 = arith.constant 0 : index
    %128 = vector.load %arg21[%c12, %c0_73] : memref<18x128xf32, #tpu.memory_space<vmem>>, vector<2x128xf32>
    %129 = arith.select %62, %127, %128 : vector<2x128xi1>, vector<2x128xf32>
    %130 = arith.addf %126, %129 : vector<2x128xf32>
    %131 = vector.extract_strided_slice %130 {offsets = [0, 0], sizes = [2, 96], strides = [1, 1]} : vector<2x128xf32> to vector<2x96xf32>
    %132 = arith.negf %131 : vector<2x96xf32>
    %133 = math.exp %132 : vector<2x96xf32>
    %cst_74 = arith.constant 1.000000e+00 : f32
    %134 = vector.broadcast %cst_74 : f32 to vector<2x96xf32>
    %135 = arith.addf %134, %133 : vector<2x96xf32>
    %136 = arith.divf %134, %135 : vector<2x96xf32>
    %137 = vector.extract_strided_slice %130 {offsets = [0, 96], sizes = [2, 32], strides = [1, 1]} : vector<2x128xf32> to vector<2x32xf32>
    %138 = math.tanh %137 : vector<2x32xf32>
    %139 = vector.extract_strided_slice %136 {offsets = [0, 32], sizes = [2, 32], strides = [1, 1]} : vector<2x96xf32> to vector<2x32xf32>
    %140 = arith.mulf %139, %117 : vector<2x32xf32>
    %141 = vector.extract_strided_slice %136 {offsets = [0, 0], sizes = [2, 32], strides = [1, 1]} : vector<2x96xf32> to vector<2x32xf32>
    %142 = arith.mulf %141, %138 : vector<2x32xf32>
    %143 = arith.addf %140, %142 : vector<2x32xf32>
    %144 = vector.extract_strided_slice %136 {offsets = [0, 64], sizes = [2, 32], strides = [1, 1]} : vector<2x96xf32> to vector<2x32xf32>
    %145 = math.tanh %143 : vector<2x32xf32>
    %146 = arith.mulf %144, %145 : vector<2x32xf32>
    %147 = vector.extract_strided_slice %146 {offsets = [0, 0], sizes = [2, 16], strides = [1, 1]} : vector<2x32xf32> to vector<2x16xf32>
    %c4_75 = arith.constant 4 : index
    %c0_76 = arith.constant 0 : index
    %148 = vector.load %arg22[%c4_75, %c0_76] : memref<18x64xf32, #tpu.memory_space<vmem>>, vector<2x16xf32>
    tpu.vector_store %arg22[%c4_75, %c0_76], %147 {strides = array<i32>} : memref<18x64xf32, #tpu.memory_space<vmem>>, vector<2x16xf32>,
    %149 = vector.extract_strided_slice %146 {offsets = [0, 16], sizes = [2, 16], strides = [1, 1]} : vector<2x32xf32> to vector<2x16xf32>
    %c12_77 = arith.constant 12 : index
    %c16_78 = arith.constant 16 : index
    %150 = vector.load %arg22[%c12_77, %c16_78] : memref<18x64xf32, #tpu.memory_space<vmem>>, vector<2x16xf32>
    tpu.vector_store %arg22[%c12_77, %c16_78], %149 {strides = array<i32>} : memref<18x64xf32, #tpu.memory_space<vmem>>, vector<2x16xf32>,
    %151 = arith.truncf %146 : vector<2x32xf32> to vector<2x32xbf16>
    %cst_79 = arith.constant dense<0.000000e+00> : vector<2x128xf32>
    %152 = tpu.matmul %151, %70, %cst_79 {dimension_numbers = #tpu.dot_dimension_numbers<[1], [0], [0], [1], [0, 0, 1, 1], [], []>} : vector<2x32xbf16>, vector<32x128xbf16>, vector<2x128xf32> -> vector<2x128xf32>
    %c6 = arith.constant 6 : index
    %c0_80 = arith.constant 0 : index
    %153 = vector.load %arg21[%c6, %c0_80] : memref<18x128xf32, #tpu.memory_space<vmem>>, vector<2x128xf32>
    %c10 = arith.constant 10 : index
    %c0_81 = arith.constant 0 : index
    %154 = vector.load %arg21[%c10, %c0_81] : memref<18x128xf32, #tpu.memory_space<vmem>>, vector<2x128xf32>
    %155 = arith.select %62, %153, %154 : vector<2x128xi1>, vector<2x128xf32>
    %156 = arith.addf %152, %155 : vector<2x128xf32>
    %157 = vector.extract_strided_slice %156 {offsets = [0, 0], sizes = [2, 96], strides = [1, 1]} : vector<2x128xf32> to vector<2x96xf32>
    %158 = arith.negf %157 : vector<2x96xf32>
    %159 = math.exp %158 : vector<2x96xf32>
    %cst_82 = arith.constant 1.000000e+00 : f32
    %160 = vector.broadcast %cst_82 : f32 to vector<2x96xf32>
    %161 = arith.addf %160, %159 : vector<2x96xf32>
    %162 = arith.divf %160, %161 : vector<2x96xf32>
    %163 = vector.extract_strided_slice %156 {offsets = [0, 96], sizes = [2, 32], strides = [1, 1]} : vector<2x128xf32> to vector<2x32xf32>
    %164 = math.tanh %163 : vector<2x32xf32>
    %165 = vector.extract_strided_slice %162 {offsets = [0, 32], sizes = [2, 32], strides = [1, 1]} : vector<2x96xf32> to vector<2x32xf32>
    %166 = arith.mulf %165, %143 : vector<2x32xf32>
    %167 = vector.extract_strided_slice %162 {offsets = [0, 0], sizes = [2, 32], strides = [1, 1]} : vector<2x96xf32> to vector<2x32xf32>
    %168 = arith.mulf %167, %164 : vector<2x32xf32>
    %169 = arith.addf %166, %168 : vector<2x32xf32>
    %170 = vector.extract_strided_slice %162 {offsets = [0, 64], sizes = [2, 32], strides = [1, 1]} : vector<2x96xf32> to vector<2x32xf32>
    %171 = math.tanh %169 : vector<2x32xf32>
    %172 = arith.mulf %170, %171 : vector<2x32xf32>
    %173 = vector.extract_strided_slice %172 {offsets = [0, 0], sizes = [2, 16], strides = [1, 1]} : vector<2x32xf32> to vector<2x16xf32>
    %c6_83 = arith.constant 6 : index
    %c0_84 = arith.constant 0 : index
    %174 = vector.load %arg22[%c6_83, %c0_84] : memref<18x64xf32, #tpu.memory_space<vmem>>, vector<2x16xf32>
    tpu.vector_store %arg22[%c6_83, %c0_84], %173 {strides = array<i32>} : memref<18x64xf32, #tpu.memory_space<vmem>>, vector<2x16xf32>,
    %175 = vector.extract_strided_slice %172 {offsets = [0, 16], sizes = [2, 16], strides = [1, 1]} : vector<2x32xf32> to vector<2x16xf32>
    %c10_85 = arith.constant 10 : index
    %c16_86 = arith.constant 16 : index
    %176 = vector.load %arg22[%c10_85, %c16_86] : memref<18x64xf32, #tpu.memory_space<vmem>>, vector<2x16xf32>
    tpu.vector_store %arg22[%c10_85, %c16_86], %175 {strides = array<i32>} : memref<18x64xf32, #tpu.memory_space<vmem>>, vector<2x16xf32>,
    %177 = arith.truncf %172 : vector<2x32xf32> to vector<2x32xbf16>
    %cst_87 = arith.constant dense<0.000000e+00> : vector<2x128xf32>
    %178 = tpu.matmul %177, %70, %cst_87 {dimension_numbers = #tpu.dot_dimension_numbers<[1], [0], [0], [1], [0, 0, 1, 1], [], []>} : vector<2x32xbf16>, vector<32x128xbf16>, vector<2x128xf32> -> vector<2x128xf32>
    %c8 = arith.constant 8 : index
    %c0_88 = arith.constant 0 : index
    %179 = vector.load %arg21[%c8, %c0_88] : memref<18x128xf32, #tpu.memory_space<vmem>>, vector<2x128xf32>
    %c8_89 = arith.constant 8 : index
    %c0_90 = arith.constant 0 : index
    %180 = vector.load %arg21[%c8_89, %c0_90] : memref<18x128xf32, #tpu.memory_space<vmem>>, vector<2x128xf32>
    %181 = arith.select %62, %179, %180 : vector<2x128xi1>, vector<2x128xf32>
    %182 = arith.addf %178, %181 : vector<2x128xf32>
    %183 = vector.extract_strided_slice %182 {offsets = [0, 0], sizes = [2, 96], strides = [1, 1]} : vector<2x128xf32> to vector<2x96xf32>
    %184 = arith.negf %183 : vector<2x96xf32>
    %185 = math.exp %184 : vector<2x96xf32>
    %cst_91 = arith.constant 1.000000e+00 : f32
    %186 = vector.broadcast %cst_91 : f32 to vector<2x96xf32>
    %187 = arith.addf %186, %185 : vector<2x96xf32>
    %188 = arith.divf %186, %187 : vector<2x96xf32>
    %189 = vector.extract_strided_slice %182 {offsets = [0, 96], sizes = [2, 32], strides = [1, 1]} : vector<2x128xf32> to vector<2x32xf32>
    %190 = math.tanh %189 : vector<2x32xf32>
    %191 = vector.extract_strided_slice %188 {offsets = [0, 32], sizes = [2, 32], strides = [1, 1]} : vector<2x96xf32> to vector<2x32xf32>
    %192 = arith.mulf %191, %169 : vector<2x32xf32>
    %193 = vector.extract_strided_slice %188 {offsets = [0, 0], sizes = [2, 32], strides = [1, 1]} : vector<2x96xf32> to vector<2x32xf32>
    %194 = arith.mulf %193, %190 : vector<2x32xf32>
    %195 = arith.addf %192, %194 : vector<2x32xf32>
    %196 = vector.extract_strided_slice %188 {offsets = [0, 64], sizes = [2, 32], strides = [1, 1]} : vector<2x96xf32> to vector<2x32xf32>
    %197 = math.tanh %195 : vector<2x32xf32>
    %198 = arith.mulf %196, %197 : vector<2x32xf32>
    %199 = vector.extract_strided_slice %198 {offsets = [0, 0], sizes = [2, 16], strides = [1, 1]} : vector<2x32xf32> to vector<2x16xf32>
    %c8_92 = arith.constant 8 : index
    %c0_93 = arith.constant 0 : index
    %200 = vector.load %arg22[%c8_92, %c0_93] : memref<18x64xf32, #tpu.memory_space<vmem>>, vector<2x16xf32>
    tpu.vector_store %arg22[%c8_92, %c0_93], %199 {strides = array<i32>} : memref<18x64xf32, #tpu.memory_space<vmem>>, vector<2x16xf32>,
    %201 = vector.extract_strided_slice %198 {offsets = [0, 16], sizes = [2, 16], strides = [1, 1]} : vector<2x32xf32> to vector<2x16xf32>
    %c8_94 = arith.constant 8 : index
    %c16_95 = arith.constant 16 : index
    %202 = vector.load %arg22[%c8_94, %c16_95] : memref<18x64xf32, #tpu.memory_space<vmem>>, vector<2x16xf32>
    tpu.vector_store %arg22[%c8_94, %c16_95], %201 {strides = array<i32>} : memref<18x64xf32, #tpu.memory_space<vmem>>, vector<2x16xf32>,
    %203 = arith.truncf %198 : vector<2x32xf32> to vector<2x32xbf16>
    %cst_96 = arith.constant dense<0.000000e+00> : vector<2x128xf32>
    %204 = tpu.matmul %203, %70, %cst_96 {dimension_numbers = #tpu.dot_dimension_numbers<[1], [0], [0], [1], [0, 0, 1, 1], [], []>} : vector<2x32xbf16>, vector<32x128xbf16>, vector<2x128xf32> -> vector<2x128xf32>
    %c10_97 = arith.constant 10 : index
    %c0_98 = arith.constant 0 : index
    %205 = vector.load %arg21[%c10_97, %c0_98] : memref<18x128xf32, #tpu.memory_space<vmem>>, vector<2x128xf32>
    %c6_99 = arith.constant 6 : index
    %c0_100 = arith.constant 0 : index
    %206 = vector.load %arg21[%c6_99, %c0_100] : memref<18x128xf32, #tpu.memory_space<vmem>>, vector<2x128xf32>
    %207 = arith.select %62, %205, %206 : vector<2x128xi1>, vector<2x128xf32>
    %208 = arith.addf %204, %207 : vector<2x128xf32>
    %209 = vector.extract_strided_slice %208 {offsets = [0, 0], sizes = [2, 96], strides = [1, 1]} : vector<2x128xf32> to vector<2x96xf32>
    %210 = arith.negf %209 : vector<2x96xf32>
    %211 = math.exp %210 : vector<2x96xf32>
    %cst_101 = arith.constant 1.000000e+00 : f32
    %212 = vector.broadcast %cst_101 : f32 to vector<2x96xf32>
    %213 = arith.addf %212, %211 : vector<2x96xf32>
    %214 = arith.divf %212, %213 : vector<2x96xf32>
    %215 = vector.extract_strided_slice %208 {offsets = [0, 96], sizes = [2, 32], strides = [1, 1]} : vector<2x128xf32> to vector<2x32xf32>
    %216 = math.tanh %215 : vector<2x32xf32>
    %217 = vector.extract_strided_slice %214 {offsets = [0, 32], sizes = [2, 32], strides = [1, 1]} : vector<2x96xf32> to vector<2x32xf32>
    %218 = arith.mulf %217, %195 : vector<2x32xf32>
    %219 = vector.extract_strided_slice %214 {offsets = [0, 0], sizes = [2, 32], strides = [1, 1]} : vector<2x96xf32> to vector<2x32xf32>
    %220 = arith.mulf %219, %216 : vector<2x32xf32>
    %221 = arith.addf %218, %220 : vector<2x32xf32>
    %222 = vector.extract_strided_slice %214 {offsets = [0, 64], sizes = [2, 32], strides = [1, 1]} : vector<2x96xf32> to vector<2x32xf32>
    %223 = math.tanh %221 : vector<2x32xf32>
    %224 = arith.mulf %222, %223 : vector<2x32xf32>
    %225 = vector.extract_strided_slice %224 {offsets = [0, 0], sizes = [2, 16], strides = [1, 1]} : vector<2x32xf32> to vector<2x16xf32>
    %c10_102 = arith.constant 10 : index
    %c0_103 = arith.constant 0 : index
    %226 = vector.load %arg22[%c10_102, %c0_103] : memref<18x64xf32, #tpu.memory_space<vmem>>, vector<2x16xf32>
    tpu.vector_store %arg22[%c10_102, %c0_103], %225 {strides = array<i32>} : memref<18x64xf32, #tpu.memory_space<vmem>>, vector<2x16xf32>,
    %227 = vector.extract_strided_slice %224 {offsets = [0, 16], sizes = [2, 16], strides = [1, 1]} : vector<2x32xf32> to vector<2x16xf32>
    %c6_104 = arith.constant 6 : index
    %c16_105 = arith.constant 16 : index
    %228 = vector.load %arg22[%c6_104, %c16_105] : memref<18x64xf32, #tpu.memory_space<vmem>>, vector<2x16xf32>
    tpu.vector_store %arg22[%c6_104, %c16_105], %227 {strides = array<i32>} : memref<18x64xf32, #tpu.memory_space<vmem>>, vector<2x16xf32>,
    %229 = arith.truncf %224 : vector<2x32xf32> to vector<2x32xbf16>
    %cst_106 = arith.constant dense<0.000000e+00> : vector<2x128xf32>
    %230 = tpu.matmul %229, %70, %cst_106 {dimension_numbers = #tpu.dot_dimension_numbers<[1], [0], [0], [1], [0, 0, 1, 1], [], []>} : vector<2x32xbf16>, vector<32x128xbf16>, vector<2x128xf32> -> vector<2x128xf32>
    %c12_107 = arith.constant 12 : index
    %c0_108 = arith.constant 0 : index
    %231 = vector.load %arg21[%c12_107, %c0_108] : memref<18x128xf32, #tpu.memory_space<vmem>>, vector<2x128xf32>
    %c4_109 = arith.constant 4 : index
    %c0_110 = arith.constant 0 : index
    %232 = vector.load %arg21[%c4_109, %c0_110] : memref<18x128xf32, #tpu.memory_space<vmem>>, vector<2x128xf32>
    %233 = arith.select %62, %231, %232 : vector<2x128xi1>, vector<2x128xf32>
    %234 = arith.addf %230, %233 : vector<2x128xf32>
    %235 = vector.extract_strided_slice %234 {offsets = [0, 0], sizes = [2, 96], strides = [1, 1]} : vector<2x128xf32> to vector<2x96xf32>
    %236 = arith.negf %235 : vector<2x96xf32>
    %237 = math.exp %236 : vector<2x96xf32>
    %cst_111 = arith.constant 1.000000e+00 : f32
    %238 = vector.broadcast %cst_111 : f32 to vector<2x96xf32>
    %239 = arith.addf %238, %237 : vector<2x96xf32>
    %240 = arith.divf %238, %239 : vector<2x96xf32>
    %241 = vector.extract_strided_slice %234 {offsets = [0, 96], sizes = [2, 32], strides = [1, 1]} : vector<2x128xf32> to vector<2x32xf32>
    %242 = math.tanh %241 : vector<2x32xf32>
    %243 = vector.extract_strided_slice %240 {offsets = [0, 32], sizes = [2, 32], strides = [1, 1]} : vector<2x96xf32> to vector<2x32xf32>
    %244 = arith.mulf %243, %221 : vector<2x32xf32>
    %245 = vector.extract_strided_slice %240 {offsets = [0, 0], sizes = [2, 32], strides = [1, 1]} : vector<2x96xf32> to vector<2x32xf32>
    %246 = arith.mulf %245, %242 : vector<2x32xf32>
    %247 = arith.addf %244, %246 : vector<2x32xf32>
    %248 = vector.extract_strided_slice %240 {offsets = [0, 64], sizes = [2, 32], strides = [1, 1]} : vector<2x96xf32> to vector<2x32xf32>
    %249 = math.tanh %247 : vector<2x32xf32>
    %250 = arith.mulf %248, %249 : vector<2x32xf32>
    %251 = vector.extract_strided_slice %250 {offsets = [0, 0], sizes = [2, 16], strides = [1, 1]} : vector<2x32xf32> to vector<2x16xf32>
    %c12_112 = arith.constant 12 : index
    %c0_113 = arith.constant 0 : index
    %252 = vector.load %arg22[%c12_112, %c0_113] : memref<18x64xf32, #tpu.memory_space<vmem>>, vector<2x16xf32>
    tpu.vector_store %arg22[%c12_112, %c0_113], %251 {strides = array<i32>} : memref<18x64xf32, #tpu.memory_space<vmem>>, vector<2x16xf32>,
    %253 = vector.extract_strided_slice %250 {offsets = [0, 16], sizes = [2, 16], strides = [1, 1]} : vector<2x32xf32> to vector<2x16xf32>
    %c4_114 = arith.constant 4 : index
    %c16_115 = arith.constant 16 : index
    %254 = vector.load %arg22[%c4_114, %c16_115] : memref<18x64xf32, #tpu.memory_space<vmem>>, vector<2x16xf32>
    tpu.vector_store %arg22[%c4_114, %c16_115], %253 {strides = array<i32>} : memref<18x64xf32, #tpu.memory_space<vmem>>, vector<2x16xf32>,
    %255 = arith.truncf %250 : vector<2x32xf32> to vector<2x32xbf16>
    %cst_116 = arith.constant dense<0.000000e+00> : vector<2x128xf32>
    %256 = tpu.matmul %255, %70, %cst_116 {dimension_numbers = #tpu.dot_dimension_numbers<[1], [0], [0], [1], [0, 0, 1, 1], [], []>} : vector<2x32xbf16>, vector<32x128xbf16>, vector<2x128xf32> -> vector<2x128xf32>
    %c14_117 = arith.constant 14 : index
    %c0_118 = arith.constant 0 : index
    %257 = vector.load %arg21[%c14_117, %c0_118] : memref<18x128xf32, #tpu.memory_space<vmem>>, vector<2x128xf32>
    %c2_119 = arith.constant 2 : index
    %c0_120 = arith.constant 0 : index
    %258 = vector.load %arg21[%c2_119, %c0_120] : memref<18x128xf32, #tpu.memory_space<vmem>>, vector<2x128xf32>
    %259 = arith.select %62, %257, %258 : vector<2x128xi1>, vector<2x128xf32>
    %260 = arith.addf %256, %259 : vector<2x128xf32>
    %261 = vector.extract_strided_slice %260 {offsets = [0, 0], sizes = [2, 96], strides = [1, 1]} : vector<2x128xf32> to vector<2x96xf32>
    %262 = arith.negf %261 : vector<2x96xf32>
    %263 = math.exp %262 : vector<2x96xf32>
    %cst_121 = arith.constant 1.000000e+00 : f32
    %264 = vector.broadcast %cst_121 : f32 to vector<2x96xf32>
    %265 = arith.addf %264, %263 : vector<2x96xf32>
    %266 = arith.divf %264, %265 : vector<2x96xf32>
    %267 = vector.extract_strided_slice %260 {offsets = [0, 96], sizes = [2, 32], strides = [1, 1]} : vector<2x128xf32> to vector<2x32xf32>
    %268 = math.tanh %267 : vector<2x32xf32>
    %269 = vector.extract_strided_slice %266 {offsets = [0, 32], sizes = [2, 32], strides = [1, 1]} : vector<2x96xf32> to vector<2x32xf32>
    %270 = arith.mulf %269, %247 : vector<2x32xf32>
    %271 = vector.extract_strided_slice %266 {offsets = [0, 0], sizes = [2, 32], strides = [1, 1]} : vector<2x96xf32> to vector<2x32xf32>
    %272 = arith.mulf %271, %268 : vector<2x32xf32>
    %273 = arith.addf %270, %272 : vector<2x32xf32>
    %274 = vector.extract_strided_slice %266 {offsets = [0, 64], sizes = [2, 32], strides = [1, 1]} : vector<2x96xf32> to vector<2x32xf32>
    %275 = math.tanh %273 : vector<2x32xf32>
    %276 = arith.mulf %274, %275 : vector<2x32xf32>
    %277 = vector.extract_strided_slice %276 {offsets = [0, 0], sizes = [2, 16], strides = [1, 1]} : vector<2x32xf32> to vector<2x16xf32>
    %c14_122 = arith.constant 14 : index
    %c0_123 = arith.constant 0 : index
    %278 = vector.load %arg22[%c14_122, %c0_123] : memref<18x64xf32, #tpu.memory_space<vmem>>, vector<2x16xf32>
    tpu.vector_store %arg22[%c14_122, %c0_123], %277 {strides = array<i32>} : memref<18x64xf32, #tpu.memory_space<vmem>>, vector<2x16xf32>,
    %279 = vector.extract_strided_slice %276 {offsets = [0, 16], sizes = [2, 16], strides = [1, 1]} : vector<2x32xf32> to vector<2x16xf32>
    %c2_124 = arith.constant 2 : index
    %c16_125 = arith.constant 16 : index
    %280 = vector.load %arg22[%c2_124, %c16_125] : memref<18x64xf32, #tpu.memory_space<vmem>>, vector<2x16xf32>
    tpu.vector_store %arg22[%c2_124, %c16_125], %279 {strides = array<i32>} : memref<18x64xf32, #tpu.memory_space<vmem>>, vector<2x16xf32>,
    %281 = arith.truncf %276 : vector<2x32xf32> to vector<2x32xbf16>
    %cst_126 = arith.constant dense<0.000000e+00> : vector<2x128xf32>
    %282 = tpu.matmul %281, %70, %cst_126 {dimension_numbers = #tpu.dot_dimension_numbers<[1], [0], [0], [1], [0, 0, 1, 1], [], []>} : vector<2x32xbf16>, vector<32x128xbf16>, vector<2x128xf32> -> vector<2x128xf32>
    %c16_127 = arith.constant 16 : index
    %c0_128 = arith.constant 0 : index
    %283 = vector.load %arg21[%c16_127, %c0_128] : memref<18x128xf32, #tpu.memory_space<vmem>>, vector<2x128xf32>
    %c0_129 = arith.constant 0 : index
    %c0_130 = arith.constant 0 : index
    %284 = vector.load %arg21[%c0_129, %c0_130] : memref<18x128xf32, #tpu.memory_space<vmem>>, vector<2x128xf32>
    %285 = arith.select %62, %283, %284 : vector<2x128xi1>, vector<2x128xf32>
    %286 = arith.addf %282, %285 : vector<2x128xf32>
    %287 = vector.extract_strided_slice %286 {offsets = [0, 0], sizes = [2, 96], strides = [1, 1]} : vector<2x128xf32> to vector<2x96xf32>
    %288 = arith.negf %287 : vector<2x96xf32>
    %289 = math.exp %288 : vector<2x96xf32>
    %cst_131 = arith.constant 1.000000e+00 : f32
    %290 = vector.broadcast %cst_131 : f32 to vector<2x96xf32>
    %291 = arith.addf %290, %289 : vector<2x96xf32>
    %292 = arith.divf %290, %291 : vector<2x96xf32>
    %293 = vector.extract_strided_slice %286 {offsets = [0, 96], sizes = [2, 32], strides = [1, 1]} : vector<2x128xf32> to vector<2x32xf32>
    %294 = math.tanh %293 : vector<2x32xf32>
    %295 = vector.extract_strided_slice %292 {offsets = [0, 32], sizes = [2, 32], strides = [1, 1]} : vector<2x96xf32> to vector<2x32xf32>
    %296 = arith.mulf %295, %273 : vector<2x32xf32>
    %297 = vector.extract_strided_slice %292 {offsets = [0, 0], sizes = [2, 32], strides = [1, 1]} : vector<2x96xf32> to vector<2x32xf32>
    %298 = arith.mulf %297, %294 : vector<2x32xf32>
    %299 = arith.addf %296, %298 : vector<2x32xf32>
    %300 = vector.extract_strided_slice %292 {offsets = [0, 64], sizes = [2, 32], strides = [1, 1]} : vector<2x96xf32> to vector<2x32xf32>
    %301 = math.tanh %299 : vector<2x32xf32>
    %302 = arith.mulf %300, %301 : vector<2x32xf32>
    %303 = vector.extract_strided_slice %302 {offsets = [0, 0], sizes = [2, 16], strides = [1, 1]} : vector<2x32xf32> to vector<2x16xf32>
    %c16_132 = arith.constant 16 : index
    %c0_133 = arith.constant 0 : index
    %304 = vector.load %arg22[%c16_132, %c0_133] : memref<18x64xf32, #tpu.memory_space<vmem>>, vector<2x16xf32>
    tpu.vector_store %arg22[%c16_132, %c0_133], %303 {strides = array<i32>} : memref<18x64xf32, #tpu.memory_space<vmem>>, vector<2x16xf32>,
    %305 = vector.extract_strided_slice %302 {offsets = [0, 16], sizes = [2, 16], strides = [1, 1]} : vector<2x32xf32> to vector<2x16xf32>
    %c0_134 = arith.constant 0 : index
    %c16_135 = arith.constant 16 : index
    %306 = vector.load %arg22[%c0_134, %c16_135] : memref<18x64xf32, #tpu.memory_space<vmem>>, vector<2x16xf32>
    tpu.vector_store %arg22[%c0_134, %c16_135], %305 {strides = array<i32>} : memref<18x64xf32, #tpu.memory_space<vmem>>, vector<2x16xf32>,
    %c0_136 = arith.constant 0 : index
    %c0_137 = arith.constant 0 : index
    %307 = vector.load %arg22[%c0_136, %c0_137] : memref<18x64xf32, #tpu.memory_space<vmem>>, vector<18x32xf32>
    %c0_138 = arith.constant 0 : index
    %c0_139 = arith.constant 0 : index
    %308 = vector.load %arg9[%c0_138, %c0_139] : memref<32x128xbf16, #tpu.memory_space<vmem>>, vector<32x128xbf16>
    %309 = arith.truncf %307 : vector<18x32xf32> to vector<18x32xbf16>
    %cst_140 = arith.constant dense<0.000000e+00> : vector<18x128xf32>
    %310 = tpu.matmul %309, %308, %cst_140 {dimension_numbers = #tpu.dot_dimension_numbers<[1], [0], [0], [1], [0, 0, 1, 1], [], []>} : vector<18x32xbf16>, vector<32x128xbf16>, vector<18x128xf32> -> vector<18x128xf32>
    %c0_141 = arith.constant 0 : index
    %c0_142 = arith.constant 0 : index
    %311 = vector.load %arg11[%c0_141, %c0_142] : memref<1x128xf32, #tpu.memory_space<vmem>>, vector<1x128xf32>
    %312 = vector.broadcast %311 : vector<1x128xf32> to vector<18x128xf32>
    %313 = arith.addf %310, %312 : vector<18x128xf32>
    %c0_143 = arith.constant 0 : index
    %c0_144 = arith.constant 0 : index
    %314 = vector.load %arg21[%c0_143, %c0_144] : memref<18x128xf32, #tpu.memory_space<vmem>>, vector<18x128xf32>
    tpu.vector_store %arg21[%c0_143, %c0_144], %313 {strides = array<i32>} : memref<18x128xf32, #tpu.memory_space<vmem>>, vector<18x128xf32>,
    %c0_145 = arith.constant 0 : index
    %c0_146 = arith.constant 0 : index
    %315 = vector.load %arg10[%c0_145, %c0_146] : memref<32x128xbf16, #tpu.memory_space<vmem>>, vector<32x128xbf16>
    %cst_147 = arith.constant 0.000000e+00 : f32
    %316 = vector.broadcast %cst_147 : f32 to vector<2x32xf32>
    %cst_148 = arith.constant 0.000000e+00 : f32
    %317 = vector.broadcast %cst_148 : f32 to vector<2x32xf32>
    %318 = arith.truncf %316 : vector<2x32xf32> to vector<2x32xbf16>
    %cst_149 = arith.constant dense<0.000000e+00> : vector<2x128xf32>
    %319 = tpu.matmul %318, %315, %cst_149 {dimension_numbers = #tpu.dot_dimension_numbers<[1], [0], [0], [1], [0, 0, 1, 1], [], []>} : vector<2x32xbf16>, vector<32x128xbf16>, vector<2x128xf32> -> vector<2x128xf32>
    %c0_150 = arith.constant 0 : index
    %c0_151 = arith.constant 0 : index
    %320 = vector.load %arg21[%c0_150, %c0_151] : memref<18x128xf32, #tpu.memory_space<vmem>>, vector<2x128xf32>
    %c16_152 = arith.constant 16 : index
    %c0_153 = arith.constant 0 : index
    %321 = vector.load %arg21[%c16_152, %c0_153] : memref<18x128xf32, #tpu.memory_space<vmem>>, vector<2x128xf32>
    %322 = arith.select %62, %320, %321 : vector<2x128xi1>, vector<2x128xf32>
    %323 = arith.addf %319, %322 : vector<2x128xf32>
    %324 = vector.extract_strided_slice %323 {offsets = [0, 0], sizes = [2, 96], strides = [1, 1]} : vector<2x128xf32> to vector<2x96xf32>
    %325 = arith.negf %324 : vector<2x96xf32>
    %326 = math.exp %325 : vector<2x96xf32>
    %cst_154 = arith.constant 1.000000e+00 : f32
    %327 = vector.broadcast %cst_154 : f32 to vector<2x96xf32>
    %328 = arith.addf %327, %326 : vector<2x96xf32>
    %329 = arith.divf %327, %328 : vector<2x96xf32>
    %330 = vector.extract_strided_slice %323 {offsets = [0, 96], sizes = [2, 32], strides = [1, 1]} : vector<2x128xf32> to vector<2x32xf32>
    %331 = math.tanh %330 : vector<2x32xf32>
    %332 = vector.extract_strided_slice %329 {offsets = [0, 32], sizes = [2, 32], strides = [1, 1]} : vector<2x96xf32> to vector<2x32xf32>
    %333 = arith.mulf %332, %317 : vector<2x32xf32>
    %334 = vector.extract_strided_slice %329 {offsets = [0, 0], sizes = [2, 32], strides = [1, 1]} : vector<2x96xf32> to vector<2x32xf32>
    %335 = arith.mulf %334, %331 : vector<2x32xf32>
    %336 = arith.addf %333, %335 : vector<2x32xf32>
    %337 = vector.extract_strided_slice %329 {offsets = [0, 64], sizes = [2, 32], strides = [1, 1]} : vector<2x96xf32> to vector<2x32xf32>
    %338 = math.tanh %336 : vector<2x32xf32>
    %339 = arith.mulf %337, %338 : vector<2x32xf32>
    %340 = vector.extract_strided_slice %339 {offsets = [0, 0], sizes = [2, 16], strides = [1, 1]} : vector<2x32xf32> to vector<2x16xf32>
    %c0_155 = arith.constant 0 : index
    %c32 = arith.constant 32 : index
    %341 = vector.load %arg22[%c0_155, %c32] : memref<18x64xf32, #tpu.memory_space<vmem>>, vector<2x16xf32>
    tpu.vector_store %arg22[%c0_155, %c32], %340 {strides = array<i32>} : memref<18x64xf32, #tpu.memory_space<vmem>>, vector<2x16xf32>,
    %342 = vector.extract_strided_slice %339 {offsets = [0, 16], sizes = [2, 16], strides = [1, 1]} : vector<2x32xf32> to vector<2x16xf32>
    %c16_156 = arith.constant 16 : index
    %c48 = arith.constant 48 : index
    %343 = vector.load %arg22[%c16_156, %c48] : memref<18x64xf32, #tpu.memory_space<vmem>>, vector<2x16xf32>
    tpu.vector_store %arg22[%c16_156, %c48], %342 {strides = array<i32>} : memref<18x64xf32, #tpu.memory_space<vmem>>, vector<2x16xf32>,
    %344 = arith.truncf %339 : vector<2x32xf32> to vector<2x32xbf16>
    %cst_157 = arith.constant dense<0.000000e+00> : vector<2x128xf32>
    %345 = tpu.matmul %344, %315, %cst_157 {dimension_numbers = #tpu.dot_dimension_numbers<[1], [0], [0], [1], [0, 0, 1, 1], [], []>} : vector<2x32xbf16>, vector<32x128xbf16>, vector<2x128xf32> -> vector<2x128xf32>
    %c2_158 = arith.constant 2 : index
    %c0_159 = arith.constant 0 : index
    %346 = vector.load %arg21[%c2_158, %c0_159] : memref<18x128xf32, #tpu.memory_space<vmem>>, vector<2x128xf32>
    %c14_160 = arith.constant 14 : index
    %c0_161 = arith.constant 0 : index
    %347 = vector.load %arg21[%c14_160, %c0_161] : memref<18x128xf32, #tpu.memory_space<vmem>>, vector<2x128xf32>
    %348 = arith.select %62, %346, %347 : vector<2x128xi1>, vector<2x128xf32>
    %349 = arith.addf %345, %348 : vector<2x128xf32>
    %350 = vector.extract_strided_slice %349 {offsets = [0, 0], sizes = [2, 96], strides = [1, 1]} : vector<2x128xf32> to vector<2x96xf32>
    %351 = arith.negf %350 : vector<2x96xf32>
    %352 = math.exp %351 : vector<2x96xf32>
    %cst_162 = arith.constant 1.000000e+00 : f32
    %353 = vector.broadcast %cst_162 : f32 to vector<2x96xf32>
    %354 = arith.addf %353, %352 : vector<2x96xf32>
    %355 = arith.divf %353, %354 : vector<2x96xf32>
    %356 = vector.extract_strided_slice %349 {offsets = [0, 96], sizes = [2, 32], strides = [1, 1]} : vector<2x128xf32> to vector<2x32xf32>
    %357 = math.tanh %356 : vector<2x32xf32>
    %358 = vector.extract_strided_slice %355 {offsets = [0, 32], sizes = [2, 32], strides = [1, 1]} : vector<2x96xf32> to vector<2x32xf32>
    %359 = arith.mulf %358, %336 : vector<2x32xf32>
    %360 = vector.extract_strided_slice %355 {offsets = [0, 0], sizes = [2, 32], strides = [1, 1]} : vector<2x96xf32> to vector<2x32xf32>
    %361 = arith.mulf %360, %357 : vector<2x32xf32>
    %362 = arith.addf %359, %361 : vector<2x32xf32>
    %363 = vector.extract_strided_slice %355 {offsets = [0, 64], sizes = [2, 32], strides = [1, 1]} : vector<2x96xf32> to vector<2x32xf32>
    %364 = math.tanh %362 : vector<2x32xf32>
    %365 = arith.mulf %363, %364 : vector<2x32xf32>
    %366 = vector.extract_strided_slice %365 {offsets = [0, 0], sizes = [2, 16], strides = [1, 1]} : vector<2x32xf32> to vector<2x16xf32>
    %c2_163 = arith.constant 2 : index
    %c32_164 = arith.constant 32 : index
    %367 = vector.load %arg22[%c2_163, %c32_164] : memref<18x64xf32, #tpu.memory_space<vmem>>, vector<2x16xf32>
    tpu.vector_store %arg22[%c2_163, %c32_164], %366 {strides = array<i32>} : memref<18x64xf32, #tpu.memory_space<vmem>>, vector<2x16xf32>,
    %368 = vector.extract_strided_slice %365 {offsets = [0, 16], sizes = [2, 16], strides = [1, 1]} : vector<2x32xf32> to vector<2x16xf32>
    %c14_165 = arith.constant 14 : index
    %c48_166 = arith.constant 48 : index
    %369 = vector.load %arg22[%c14_165, %c48_166] : memref<18x64xf32, #tpu.memory_space<vmem>>, vector<2x16xf32>
    tpu.vector_store %arg22[%c14_165, %c48_166], %368 {strides = array<i32>} : memref<18x64xf32, #tpu.memory_space<vmem>>, vector<2x16xf32>,
    %370 = arith.truncf %365 : vector<2x32xf32> to vector<2x32xbf16>
    %cst_167 = arith.constant dense<0.000000e+00> : vector<2x128xf32>
    %371 = tpu.matmul %370, %315, %cst_167 {dimension_numbers = #tpu.dot_dimension_numbers<[1], [0], [0], [1], [0, 0, 1, 1], [], []>} : vector<2x32xbf16>, vector<32x128xbf16>, vector<2x128xf32> -> vector<2x128xf32>
    %c4_168 = arith.constant 4 : index
    %c0_169 = arith.constant 0 : index
    %372 = vector.load %arg21[%c4_168, %c0_169] : memref<18x128xf32, #tpu.memory_space<vmem>>, vector<2x128xf32>
    %c12_170 = arith.constant 12 : index
    %c0_171 = arith.constant 0 : index
    %373 = vector.load %arg21[%c12_170, %c0_171] : memref<18x128xf32, #tpu.memory_space<vmem>>, vector<2x128xf32>
    %374 = arith.select %62, %372, %373 : vector<2x128xi1>, vector<2x128xf32>
    %375 = arith.addf %371, %374 : vector<2x128xf32>
    %376 = vector.extract_strided_slice %375 {offsets = [0, 0], sizes = [2, 96], strides = [1, 1]} : vector<2x128xf32> to vector<2x96xf32>
    %377 = arith.negf %376 : vector<2x96xf32>
    %378 = math.exp %377 : vector<2x96xf32>
    %cst_172 = arith.constant 1.000000e+00 : f32
    %379 = vector.broadcast %cst_172 : f32 to vector<2x96xf32>
    %380 = arith.addf %379, %378 : vector<2x96xf32>
    %381 = arith.divf %379, %380 : vector<2x96xf32>
    %382 = vector.extract_strided_slice %375 {offsets = [0, 96], sizes = [2, 32], strides = [1, 1]} : vector<2x128xf32> to vector<2x32xf32>
    %383 = math.tanh %382 : vector<2x32xf32>
    %384 = vector.extract_strided_slice %381 {offsets = [0, 32], sizes = [2, 32], strides = [1, 1]} : vector<2x96xf32> to vector<2x32xf32>
    %385 = arith.mulf %384, %362 : vector<2x32xf32>
    %386 = vector.extract_strided_slice %381 {offsets = [0, 0], sizes = [2, 32], strides = [1, 1]} : vector<2x96xf32> to vector<2x32xf32>
    %387 = arith.mulf %386, %383 : vector<2x32xf32>
    %388 = arith.addf %385, %387 : vector<2x32xf32>
    %389 = vector.extract_strided_slice %381 {offsets = [0, 64], sizes = [2, 32], strides = [1, 1]} : vector<2x96xf32> to vector<2x32xf32>
    %390 = math.tanh %388 : vector<2x32xf32>
    %391 = arith.mulf %389, %390 : vector<2x32xf32>
    %392 = vector.extract_strided_slice %391 {offsets = [0, 0], sizes = [2, 16], strides = [1, 1]} : vector<2x32xf32> to vector<2x16xf32>
    %c4_173 = arith.constant 4 : index
    %c32_174 = arith.constant 32 : index
    %393 = vector.load %arg22[%c4_173, %c32_174] : memref<18x64xf32, #tpu.memory_space<vmem>>, vector<2x16xf32>
    tpu.vector_store %arg22[%c4_173, %c32_174], %392 {strides = array<i32>} : memref<18x64xf32, #tpu.memory_space<vmem>>, vector<2x16xf32>,
    %394 = vector.extract_strided_slice %391 {offsets = [0, 16], sizes = [2, 16], strides = [1, 1]} : vector<2x32xf32> to vector<2x16xf32>
    %c12_175 = arith.constant 12 : index
    %c48_176 = arith.constant 48 : index
    %395 = vector.load %arg22[%c12_175, %c48_176] : memref<18x64xf32, #tpu.memory_space<vmem>>, vector<2x16xf32>
    tpu.vector_store %arg22[%c12_175, %c48_176], %394 {strides = array<i32>} : memref<18x64xf32, #tpu.memory_space<vmem>>, vector<2x16xf32>,
    %396 = arith.truncf %391 : vector<2x32xf32> to vector<2x32xbf16>
    %cst_177 = arith.constant dense<0.000000e+00> : vector<2x128xf32>
    %397 = tpu.matmul %396, %315, %cst_177 {dimension_numbers = #tpu.dot_dimension_numbers<[1], [0], [0], [1], [0, 0, 1, 1], [], []>} : vector<2x32xbf16>, vector<32x128xbf16>, vector<2x128xf32> -> vector<2x128xf32>
    %c6_178 = arith.constant 6 : index
    %c0_179 = arith.constant 0 : index
    %398 = vector.load %arg21[%c6_178, %c0_179] : memref<18x128xf32, #tpu.memory_space<vmem>>, vector<2x128xf32>
    %c10_180 = arith.constant 10 : index
    %c0_181 = arith.constant 0 : index
    %399 = vector.load %arg21[%c10_180, %c0_181] : memref<18x128xf32, #tpu.memory_space<vmem>>, vector<2x128xf32>
    %400 = arith.select %62, %398, %399 : vector<2x128xi1>, vector<2x128xf32>
    %401 = arith.addf %397, %400 : vector<2x128xf32>
    %402 = vector.extract_strided_slice %401 {offsets = [0, 0], sizes = [2, 96], strides = [1, 1]} : vector<2x128xf32> to vector<2x96xf32>
    %403 = arith.negf %402 : vector<2x96xf32>
    %404 = math.exp %403 : vector<2x96xf32>
    %cst_182 = arith.constant 1.000000e+00 : f32
    %405 = vector.broadcast %cst_182 : f32 to vector<2x96xf32>
    %406 = arith.addf %405, %404 : vector<2x96xf32>
    %407 = arith.divf %405, %406 : vector<2x96xf32>
    %408 = vector.extract_strided_slice %401 {offsets = [0, 96], sizes = [2, 32], strides = [1, 1]} : vector<2x128xf32> to vector<2x32xf32>
    %409 = math.tanh %408 : vector<2x32xf32>
    %410 = vector.extract_strided_slice %407 {offsets = [0, 32], sizes = [2, 32], strides = [1, 1]} : vector<2x96xf32> to vector<2x32xf32>
    %411 = arith.mulf %410, %388 : vector<2x32xf32>
    %412 = vector.extract_strided_slice %407 {offsets = [0, 0], sizes = [2, 32], strides = [1, 1]} : vector<2x96xf32> to vector<2x32xf32>
    %413 = arith.mulf %412, %409 : vector<2x32xf32>
    %414 = arith.addf %411, %413 : vector<2x32xf32>
    %415 = vector.extract_strided_slice %407 {offsets = [0, 64], sizes = [2, 32], strides = [1, 1]} : vector<2x96xf32> to vector<2x32xf32>
    %416 = math.tanh %414 : vector<2x32xf32>
    %417 = arith.mulf %415, %416 : vector<2x32xf32>
    %418 = vector.extract_strided_slice %417 {offsets = [0, 0], sizes = [2, 16], strides = [1, 1]} : vector<2x32xf32> to vector<2x16xf32>
    %c6_183 = arith.constant 6 : index
    %c32_184 = arith.constant 32 : index
    %419 = vector.load %arg22[%c6_183, %c32_184] : memref<18x64xf32, #tpu.memory_space<vmem>>, vector<2x16xf32>
    tpu.vector_store %arg22[%c6_183, %c32_184], %418 {strides = array<i32>} : memref<18x64xf32, #tpu.memory_space<vmem>>, vector<2x16xf32>,
    %420 = vector.extract_strided_slice %417 {offsets = [0, 16], sizes = [2, 16], strides = [1, 1]} : vector<2x32xf32> to vector<2x16xf32>
    %c10_185 = arith.constant 10 : index
    %c48_186 = arith.constant 48 : index
    %421 = vector.load %arg22[%c10_185, %c48_186] : memref<18x64xf32, #tpu.memory_space<vmem>>, vector<2x16xf32>
    tpu.vector_store %arg22[%c10_185, %c48_186], %420 {strides = array<i32>} : memref<18x64xf32, #tpu.memory_space<vmem>>, vector<2x16xf32>,
    %422 = arith.truncf %417 : vector<2x32xf32> to vector<2x32xbf16>
    %cst_187 = arith.constant dense<0.000000e+00> : vector<2x128xf32>
    %423 = tpu.matmul %422, %315, %cst_187 {dimension_numbers = #tpu.dot_dimension_numbers<[1], [0], [0], [1], [0, 0, 1, 1], [], []>} : vector<2x32xbf16>, vector<32x128xbf16>, vector<2x128xf32> -> vector<2x128xf32>
    %c8_188 = arith.constant 8 : index
    %c0_189 = arith.constant 0 : index
    %424 = vector.load %arg21[%c8_188, %c0_189] : memref<18x128xf32, #tpu.memory_space<vmem>>, vector<2x128xf32>
    %c8_190 = arith.constant 8 : index
    %c0_191 = arith.constant 0 : index
    %425 = vector.load %arg21[%c8_190, %c0_191] : memref<18x128xf32, #tpu.memory_space<vmem>>, vector<2x128xf32>
    %426 = arith.select %62, %424, %425 : vector<2x128xi1>, vector<2x128xf32>
    %427 = arith.addf %423, %426 : vector<2x128xf32>
    %428 = vector.extract_strided_slice %427 {offsets = [0, 0], sizes = [2, 96], strides = [1, 1]} : vector<2x128xf32> to vector<2x96xf32>
    %429 = arith.negf %428 : vector<2x96xf32>
    %430 = math.exp %429 : vector<2x96xf32>
    %cst_192 = arith.constant 1.000000e+00 : f32
    %431 = vector.broadcast %cst_192 : f32 to vector<2x96xf32>
    %432 = arith.addf %431, %430 : vector<2x96xf32>
    %433 = arith.divf %431, %432 : vector<2x96xf32>
    %434 = vector.extract_strided_slice %427 {offsets = [0, 96], sizes = [2, 32], strides = [1, 1]} : vector<2x128xf32> to vector<2x32xf32>
    %435 = math.tanh %434 : vector<2x32xf32>
    %436 = vector.extract_strided_slice %433 {offsets = [0, 32], sizes = [2, 32], strides = [1, 1]} : vector<2x96xf32> to vector<2x32xf32>
    %437 = arith.mulf %436, %414 : vector<2x32xf32>
    %438 = vector.extract_strided_slice %433 {offsets = [0, 0], sizes = [2, 32], strides = [1, 1]} : vector<2x96xf32> to vector<2x32xf32>
    %439 = arith.mulf %438, %435 : vector<2x32xf32>
    %440 = arith.addf %437, %439 : vector<2x32xf32>
    %441 = vector.extract_strided_slice %433 {offsets = [0, 64], sizes = [2, 32], strides = [1, 1]} : vector<2x96xf32> to vector<2x32xf32>
    %442 = math.tanh %440 : vector<2x32xf32>
    %443 = arith.mulf %441, %442 : vector<2x32xf32>
    %444 = vector.extract_strided_slice %443 {offsets = [0, 0], sizes = [2, 16], strides = [1, 1]} : vector<2x32xf32> to vector<2x16xf32>
    %c8_193 = arith.constant 8 : index
    %c32_194 = arith.constant 32 : index
    %445 = vector.load %arg22[%c8_193, %c32_194] : memref<18x64xf32, #tpu.memory_space<vmem>>, vector<2x16xf32>
    tpu.vector_store %arg22[%c8_193, %c32_194], %444 {strides = array<i32>} : memref<18x64xf32, #tpu.memory_space<vmem>>, vector<2x16xf32>,
    %446 = vector.extract_strided_slice %443 {offsets = [0, 16], sizes = [2, 16], strides = [1, 1]} : vector<2x32xf32> to vector<2x16xf32>
    %c8_195 = arith.constant 8 : index
    %c48_196 = arith.constant 48 : index
    %447 = vector.load %arg22[%c8_195, %c48_196] : memref<18x64xf32, #tpu.memory_space<vmem>>, vector<2x16xf32>
    tpu.vector_store %arg22[%c8_195, %c48_196], %446 {strides = array<i32>} : memref<18x64xf32, #tpu.memory_space<vmem>>, vector<2x16xf32>,
    %448 = arith.truncf %443 : vector<2x32xf32> to vector<2x32xbf16>
    %cst_197 = arith.constant dense<0.000000e+00> : vector<2x128xf32>
    %449 = tpu.matmul %448, %315, %cst_197 {dimension_numbers = #tpu.dot_dimension_numbers<[1], [0], [0], [1], [0, 0, 1, 1], [], []>} : vector<2x32xbf16>, vector<32x128xbf16>, vector<2x128xf32> -> vector<2x128xf32>
    %c10_198 = arith.constant 10 : index
    %c0_199 = arith.constant 0 : index
    %450 = vector.load %arg21[%c10_198, %c0_199] : memref<18x128xf32, #tpu.memory_space<vmem>>, vector<2x128xf32>
    %c6_200 = arith.constant 6 : index
    %c0_201 = arith.constant 0 : index
    %451 = vector.load %arg21[%c6_200, %c0_201] : memref<18x128xf32, #tpu.memory_space<vmem>>, vector<2x128xf32>
    %452 = arith.select %62, %450, %451 : vector<2x128xi1>, vector<2x128xf32>
    %453 = arith.addf %449, %452 : vector<2x128xf32>
    %454 = vector.extract_strided_slice %453 {offsets = [0, 0], sizes = [2, 96], strides = [1, 1]} : vector<2x128xf32> to vector<2x96xf32>
    %455 = arith.negf %454 : vector<2x96xf32>
    %456 = math.exp %455 : vector<2x96xf32>
    %cst_202 = arith.constant 1.000000e+00 : f32
    %457 = vector.broadcast %cst_202 : f32 to vector<2x96xf32>
    %458 = arith.addf %457, %456 : vector<2x96xf32>
    %459 = arith.divf %457, %458 : vector<2x96xf32>
    %460 = vector.extract_strided_slice %453 {offsets = [0, 96], sizes = [2, 32], strides = [1, 1]} : vector<2x128xf32> to vector<2x32xf32>
    %461 = math.tanh %460 : vector<2x32xf32>
    %462 = vector.extract_strided_slice %459 {offsets = [0, 32], sizes = [2, 32], strides = [1, 1]} : vector<2x96xf32> to vector<2x32xf32>
    %463 = arith.mulf %462, %440 : vector<2x32xf32>
    %464 = vector.extract_strided_slice %459 {offsets = [0, 0], sizes = [2, 32], strides = [1, 1]} : vector<2x96xf32> to vector<2x32xf32>
    %465 = arith.mulf %464, %461 : vector<2x32xf32>
    %466 = arith.addf %463, %465 : vector<2x32xf32>
    %467 = vector.extract_strided_slice %459 {offsets = [0, 64], sizes = [2, 32], strides = [1, 1]} : vector<2x96xf32> to vector<2x32xf32>
    %468 = math.tanh %466 : vector<2x32xf32>
    %469 = arith.mulf %467, %468 : vector<2x32xf32>
    %470 = vector.extract_strided_slice %469 {offsets = [0, 0], sizes = [2, 16], strides = [1, 1]} : vector<2x32xf32> to vector<2x16xf32>
    %c10_203 = arith.constant 10 : index
    %c32_204 = arith.constant 32 : index
    %471 = vector.load %arg22[%c10_203, %c32_204] : memref<18x64xf32, #tpu.memory_space<vmem>>, vector<2x16xf32>
    tpu.vector_store %arg22[%c10_203, %c32_204], %470 {strides = array<i32>} : memref<18x64xf32, #tpu.memory_space<vmem>>, vector<2x16xf32>,
    %472 = vector.extract_strided_slice %469 {offsets = [0, 16], sizes = [2, 16], strides = [1, 1]} : vector<2x32xf32> to vector<2x16xf32>
    %c6_205 = arith.constant 6 : index
    %c48_206 = arith.constant 48 : index
    %473 = vector.load %arg22[%c6_205, %c48_206] : memref<18x64xf32, #tpu.memory_space<vmem>>, vector<2x16xf32>
    tpu.vector_store %arg22[%c6_205, %c48_206], %472 {strides = array<i32>} : memref<18x64xf32, #tpu.memory_space<vmem>>, vector<2x16xf32>,
    %474 = arith.truncf %469 : vector<2x32xf32> to vector<2x32xbf16>
    %cst_207 = arith.constant dense<0.000000e+00> : vector<2x128xf32>
    %475 = tpu.matmul %474, %315, %cst_207 {dimension_numbers = #tpu.dot_dimension_numbers<[1], [0], [0], [1], [0, 0, 1, 1], [], []>} : vector<2x32xbf16>, vector<32x128xbf16>, vector<2x128xf32> -> vector<2x128xf32>
    %c12_208 = arith.constant 12 : index
    %c0_209 = arith.constant 0 : index
    %476 = vector.load %arg21[%c12_208, %c0_209] : memref<18x128xf32, #tpu.memory_space<vmem>>, vector<2x128xf32>
    %c4_210 = arith.constant 4 : index
    %c0_211 = arith.constant 0 : index
    %477 = vector.load %arg21[%c4_210, %c0_211] : memref<18x128xf32, #tpu.memory_space<vmem>>, vector<2x128xf32>
    %478 = arith.select %62, %476, %477 : vector<2x128xi1>, vector<2x128xf32>
    %479 = arith.addf %475, %478 : vector<2x128xf32>
    %480 = vector.extract_strided_slice %479 {offsets = [0, 0], sizes = [2, 96], strides = [1, 1]} : vector<2x128xf32> to vector<2x96xf32>
    %481 = arith.negf %480 : vector<2x96xf32>
    %482 = math.exp %481 : vector<2x96xf32>
    %cst_212 = arith.constant 1.000000e+00 : f32
    %483 = vector.broadcast %cst_212 : f32 to vector<2x96xf32>
    %484 = arith.addf %483, %482 : vector<2x96xf32>
    %485 = arith.divf %483, %484 : vector<2x96xf32>
    %486 = vector.extract_strided_slice %479 {offsets = [0, 96], sizes = [2, 32], strides = [1, 1]} : vector<2x128xf32> to vector<2x32xf32>
    %487 = math.tanh %486 : vector<2x32xf32>
    %488 = vector.extract_strided_slice %485 {offsets = [0, 32], sizes = [2, 32], strides = [1, 1]} : vector<2x96xf32> to vector<2x32xf32>
    %489 = arith.mulf %488, %466 : vector<2x32xf32>
    %490 = vector.extract_strided_slice %485 {offsets = [0, 0], sizes = [2, 32], strides = [1, 1]} : vector<2x96xf32> to vector<2x32xf32>
    %491 = arith.mulf %490, %487 : vector<2x32xf32>
    %492 = arith.addf %489, %491 : vector<2x32xf32>
    %493 = vector.extract_strided_slice %485 {offsets = [0, 64], sizes = [2, 32], strides = [1, 1]} : vector<2x96xf32> to vector<2x32xf32>
    %494 = math.tanh %492 : vector<2x32xf32>
    %495 = arith.mulf %493, %494 : vector<2x32xf32>
    %496 = vector.extract_strided_slice %495 {offsets = [0, 0], sizes = [2, 16], strides = [1, 1]} : vector<2x32xf32> to vector<2x16xf32>
    %c12_213 = arith.constant 12 : index
    %c32_214 = arith.constant 32 : index
    %497 = vector.load %arg22[%c12_213, %c32_214] : memref<18x64xf32, #tpu.memory_space<vmem>>, vector<2x16xf32>
    tpu.vector_store %arg22[%c12_213, %c32_214], %496 {strides = array<i32>} : memref<18x64xf32, #tpu.memory_space<vmem>>, vector<2x16xf32>,
    %498 = vector.extract_strided_slice %495 {offsets = [0, 16], sizes = [2, 16], strides = [1, 1]} : vector<2x32xf32> to vector<2x16xf32>
    %c4_215 = arith.constant 4 : index
    %c48_216 = arith.constant 48 : index
    %499 = vector.load %arg22[%c4_215, %c48_216] : memref<18x64xf32, #tpu.memory_space<vmem>>, vector<2x16xf32>
    tpu.vector_store %arg22[%c4_215, %c48_216], %498 {strides = array<i32>} : memref<18x64xf32, #tpu.memory_space<vmem>>, vector<2x16xf32>,
    %500 = arith.truncf %495 : vector<2x32xf32> to vector<2x32xbf16>
    %cst_217 = arith.constant dense<0.000000e+00> : vector<2x128xf32>
    %501 = tpu.matmul %500, %315, %cst_217 {dimension_numbers = #tpu.dot_dimension_numbers<[1], [0], [0], [1], [0, 0, 1, 1], [], []>} : vector<2x32xbf16>, vector<32x128xbf16>, vector<2x128xf32> -> vector<2x128xf32>
    %c14_218 = arith.constant 14 : index
    %c0_219 = arith.constant 0 : index
    %502 = vector.load %arg21[%c14_218, %c0_219] : memref<18x128xf32, #tpu.memory_space<vmem>>, vector<2x128xf32>
    %c2_220 = arith.constant 2 : index
    %c0_221 = arith.constant 0 : index
    %503 = vector.load %arg21[%c2_220, %c0_221] : memref<18x128xf32, #tpu.memory_space<vmem>>, vector<2x128xf32>
    %504 = arith.select %62, %502, %503 : vector<2x128xi1>, vector<2x128xf32>
    %505 = arith.addf %501, %504 : vector<2x128xf32>
    %506 = vector.extract_strided_slice %505 {offsets = [0, 0], sizes = [2, 96], strides = [1, 1]} : vector<2x128xf32> to vector<2x96xf32>
    %507 = arith.negf %506 : vector<2x96xf32>
    %508 = math.exp %507 : vector<2x96xf32>
    %cst_222 = arith.constant 1.000000e+00 : f32
    %509 = vector.broadcast %cst_222 : f32 to vector<2x96xf32>
    %510 = arith.addf %509, %508 : vector<2x96xf32>
    %511 = arith.divf %509, %510 : vector<2x96xf32>
    %512 = vector.extract_strided_slice %505 {offsets = [0, 96], sizes = [2, 32], strides = [1, 1]} : vector<2x128xf32> to vector<2x32xf32>
    %513 = math.tanh %512 : vector<2x32xf32>
    %514 = vector.extract_strided_slice %511 {offsets = [0, 32], sizes = [2, 32], strides = [1, 1]} : vector<2x96xf32> to vector<2x32xf32>
    %515 = arith.mulf %514, %492 : vector<2x32xf32>
    %516 = vector.extract_strided_slice %511 {offsets = [0, 0], sizes = [2, 32], strides = [1, 1]} : vector<2x96xf32> to vector<2x32xf32>
    %517 = arith.mulf %516, %513 : vector<2x32xf32>
    %518 = arith.addf %515, %517 : vector<2x32xf32>
    %519 = vector.extract_strided_slice %511 {offsets = [0, 64], sizes = [2, 32], strides = [1, 1]} : vector<2x96xf32> to vector<2x32xf32>
    %520 = math.tanh %518 : vector<2x32xf32>
    %521 = arith.mulf %519, %520 : vector<2x32xf32>
    %522 = vector.extract_strided_slice %521 {offsets = [0, 0], sizes = [2, 16], strides = [1, 1]} : vector<2x32xf32> to vector<2x16xf32>
    %c14_223 = arith.constant 14 : index
    %c32_224 = arith.constant 32 : index
    %523 = vector.load %arg22[%c14_223, %c32_224] : memref<18x64xf32, #tpu.memory_space<vmem>>, vector<2x16xf32>
    tpu.vector_store %arg22[%c14_223, %c32_224], %522 {strides = array<i32>} : memref<18x64xf32, #tpu.memory_space<vmem>>, vector<2x16xf32>,
    %524 = vector.extract_strided_slice %521 {offsets = [0, 16], sizes = [2, 16], strides = [1, 1]} : vector<2x32xf32> to vector<2x16xf32>
    %c2_225 = arith.constant 2 : index
    %c48_226 = arith.constant 48 : index
    %525 = vector.load %arg22[%c2_225, %c48_226] : memref<18x64xf32, #tpu.memory_space<vmem>>, vector<2x16xf32>
    tpu.vector_store %arg22[%c2_225, %c48_226], %524 {strides = array<i32>} : memref<18x64xf32, #tpu.memory_space<vmem>>, vector<2x16xf32>,
    %526 = arith.truncf %521 : vector<2x32xf32> to vector<2x32xbf16>
    %cst_227 = arith.constant dense<0.000000e+00> : vector<2x128xf32>
    %527 = tpu.matmul %526, %315, %cst_227 {dimension_numbers = #tpu.dot_dimension_numbers<[1], [0], [0], [1], [0, 0, 1, 1], [], []>} : vector<2x32xbf16>, vector<32x128xbf16>, vector<2x128xf32> -> vector<2x128xf32>
    %c16_228 = arith.constant 16 : index
    %c0_229 = arith.constant 0 : index
    %528 = vector.load %arg21[%c16_228, %c0_229] : memref<18x128xf32, #tpu.memory_space<vmem>>, vector<2x128xf32>
    %c0_230 = arith.constant 0 : index
    %c0_231 = arith.constant 0 : index
    %529 = vector.load %arg21[%c0_230, %c0_231] : memref<18x128xf32, #tpu.memory_space<vmem>>, vector<2x128xf32>
    %530 = arith.select %62, %528, %529 : vector<2x128xi1>, vector<2x128xf32>
    %531 = arith.addf %527, %530 : vector<2x128xf32>
    %532 = vector.extract_strided_slice %531 {offsets = [0, 0], sizes = [2, 96], strides = [1, 1]} : vector<2x128xf32> to vector<2x96xf32>
    %533 = arith.negf %532 : vector<2x96xf32>
    %534 = math.exp %533 : vector<2x96xf32>
    %cst_232 = arith.constant 1.000000e+00 : f32
    %535 = vector.broadcast %cst_232 : f32 to vector<2x96xf32>
    %536 = arith.addf %535, %534 : vector<2x96xf32>
    %537 = arith.divf %535, %536 : vector<2x96xf32>
    %538 = vector.extract_strided_slice %531 {offsets = [0, 96], sizes = [2, 32], strides = [1, 1]} : vector<2x128xf32> to vector<2x32xf32>
    %539 = math.tanh %538 : vector<2x32xf32>
    %540 = vector.extract_strided_slice %537 {offsets = [0, 32], sizes = [2, 32], strides = [1, 1]} : vector<2x96xf32> to vector<2x32xf32>
    %541 = arith.mulf %540, %518 : vector<2x32xf32>
    %542 = vector.extract_strided_slice %537 {offsets = [0, 0], sizes = [2, 32], strides = [1, 1]} : vector<2x96xf32> to vector<2x32xf32>
    %543 = arith.mulf %542, %539 : vector<2x32xf32>
    %544 = arith.addf %541, %543 : vector<2x32xf32>
    %545 = vector.extract_strided_slice %537 {offsets = [0, 64], sizes = [2, 32], strides = [1, 1]} : vector<2x96xf32> to vector<2x32xf32>
    %546 = math.tanh %544 : vector<2x32xf32>
    %547 = arith.mulf %545, %546 : vector<2x32xf32>
    %548 = vector.extract_strided_slice %547 {offsets = [0, 0], sizes = [2, 16], strides = [1, 1]} : vector<2x32xf32> to vector<2x16xf32>
    %c16_233 = arith.constant 16 : index
    %c32_234 = arith.constant 32 : index
    %549 = vector.load %arg22[%c16_233, %c32_234] : memref<18x64xf32, #tpu.memory_space<vmem>>, vector<2x16xf32>
    tpu.vector_store %arg22[%c16_233, %c32_234], %548 {strides = array<i32>} : memref<18x64xf32, #tpu.memory_space<vmem>>, vector<2x16xf32>,
    %550 = vector.extract_strided_slice %547 {offsets = [0, 16], sizes = [2, 16], strides = [1, 1]} : vector<2x32xf32> to vector<2x16xf32>
    %c0_235 = arith.constant 0 : index
    %c48_236 = arith.constant 48 : index
    %551 = vector.load %arg22[%c0_235, %c48_236] : memref<18x64xf32, #tpu.memory_space<vmem>>, vector<2x16xf32>
    tpu.vector_store %arg22[%c0_235, %c48_236], %550 {strides = array<i32>} : memref<18x64xf32, #tpu.memory_space<vmem>>, vector<2x16xf32>,
    %c0_237 = arith.constant 0 : index
    %c32_238 = arith.constant 32 : index
    %552 = vector.load %arg22[%c0_237, %c32_238] : memref<18x64xf32, #tpu.memory_space<vmem>>, vector<18x32xf32>
    %c0_239 = arith.constant 0 : index
    %c0_240 = arith.constant 0 : index
    %553 = vector.load %arg12[%c0_239, %c0_240] : memref<1x32xf32, #tpu.memory_space<vmem>>, vector<1x32xf32>
    %554 = vector.broadcast %553 : vector<1x32xf32> to vector<18x32xf32>
    %555 = arith.mulf %552, %554 : vector<18x32xf32>
    %cst_241 = arith.constant dense<0.000000e+00> : vector<18xf32>
    %556 = vector.multi_reduction <add>, %555, %cst_241 [1] : vector<18x32xf32> to vector<18xf32>
    %557 = vector.shape_cast %556 : vector<18xf32> to vector<18x1xf32>
    %c0_242 = arith.constant 0 : index
    %c0_243 = arith.constant 0 : index
    %558 = vector.load %arg13[%c0_242, %c0_243] : memref<1x1xf32, #tpu.memory_space<vmem>>, vector<1x1xf32>
    %559 = vector.broadcast %558 : vector<1x1xf32> to vector<18x1xf32>
    %560 = arith.addf %557, %559 : vector<18x1xf32>
    %561 = math.tanh %560 : vector<18x1xf32>
    %562 = math.exp %561 : vector<18x1xf32>
    %c0_244 = arith.constant 0 : index
    %c0_245 = arith.constant 0 : index
    %563 = vector.load %arg1[%c0_244, %c0_245] : memref<2x18xbf16, #tpu.memory_space<vmem>>, vector<2x18xbf16>
    %564 = vector.broadcast %562 : vector<18x1xf32> to vector<18x32xf32>
    %565 = arith.mulf %564, %552 : vector<18x32xf32>
    %566 = tpu.concatenate %565, %562 in 1 : vector<18x32xf32>, vector<18x1xf32> -> vector<18x33xf32>
    %567 = arith.truncf %566 : vector<18x33xf32> to vector<18x33xbf16>
    %cst_246 = arith.constant dense<0.000000e+00> : vector<2x33xf32>
    %568 = tpu.matmul %563, %567, %cst_246 {dimension_numbers = #tpu.dot_dimension_numbers<[1], [0], [0], [1], [0, 0, 1, 1], [], []>} : vector<2x18xbf16>, vector<18x33xbf16>, vector<2x33xf32> -> vector<2x33xf32>
    %569 = vector.extract_strided_slice %568 {offsets = [0, 0], sizes = [2, 32], strides = [1, 1]} : vector<2x33xf32> to vector<2x32xf32>
    %570 = vector.extract_strided_slice %568 {offsets = [0, 32], sizes = [2, 1], strides = [1, 1]} : vector<2x33xf32> to vector<2x1xf32>
    %571 = tpu.reciprocal %570 {approx = true} : vector<2x1xf32> -> vector<2x1xf32>
    %572 = vector.broadcast %571 : vector<2x1xf32> to vector<2x32xf32>
    %573 = arith.mulf %569, %572 : vector<2x32xf32>
    %c0_247 = arith.constant 0 : index
    %c0_248 = arith.constant 0 : index
    %574 = vector.load %arg14[%c0_247, %c0_248] : memref<32x64xbf16, #tpu.memory_space<vmem>>, vector<32x64xbf16>
    %575 = arith.truncf %573 : vector<2x32xf32> to vector<2x32xbf16>
    %cst_249 = arith.constant dense<0.000000e+00> : vector<2x64xf32>
    %576 = tpu.matmul %575, %574, %cst_249 {dimension_numbers = #tpu.dot_dimension_numbers<[1], [0], [0], [1], [0, 0, 1, 1], [], []>} : vector<2x32xbf16>, vector<32x64xbf16>, vector<2x64xf32> -> vector<2x64xf32>
    %c0_250 = arith.constant 0 : index
    %c0_251 = arith.constant 0 : index
    %577 = vector.load %arg15[%c0_250, %c0_251] : memref<1x64xf32, #tpu.memory_space<vmem>>, vector<1x64xf32>
    %578 = vector.broadcast %577 : vector<1x64xf32> to vector<2x64xf32>
    %579 = arith.addf %576, %578 : vector<2x64xf32>
    %cst_252 = arith.constant 0.000000e+00 : f32
    %580 = vector.broadcast %cst_252 : f32 to vector<2x64xf32>
    %581 = arith.maximumf %579, %580 : vector<2x64xf32>
    %c0_253 = arith.constant 0 : index
    %c0_254 = arith.constant 0 : index
    %582 = vector.load %arg16[%c0_253, %c0_254] : memref<64x1xbf16, #tpu.memory_space<vmem>>, vector<64x1xbf16>
    %583 = arith.truncf %581 : vector<2x64xf32> to vector<2x64xbf16>
    %cst_255 = arith.constant dense<0.000000e+00> : vector<2x1xf32>
    %584 = tpu.matmul %583, %582, %cst_255 {dimension_numbers = #tpu.dot_dimension_numbers<[1], [0], [0], [1], [0, 0, 1, 1], [], []>} : vector<2x64xbf16>, vector<64x1xbf16>, vector<2x1xf32> -> vector<2x1xf32>
    %c0_256 = arith.constant 0 : index
    %c0_257 = arith.constant 0 : index
    %585 = vector.load %arg17[%c0_256, %c0_257] : memref<1x1xf32, #tpu.memory_space<vmem>>, vector<1x1xf32>
    %586 = vector.broadcast %585 : vector<1x1xf32> to vector<2x1xf32>
    %587 = arith.addf %584, %586 : vector<2x1xf32>
    %c0_258 = arith.constant 0 : index
    %c0_259 = arith.constant 0 : index
    %588 = vector.load %arg18[%c0_258, %c0_259] : memref<2x1xf32, #tpu.memory_space<vmem>>, vector<2x1xf32>
    tpu.vector_store %arg18[%c0_258, %c0_259], %587 {strides = array<i32>} : memref<2x1xf32, #tpu.memory_space<vmem>>, vector<2x1xf32>,
    return
  }
}

</mosaic_0001>

<llo_original>
// kernel: forward.1
$region0: #{forward.1}
  #allocation0 [shape = 'u32[]', space=smem, size = 0x4, offset = 0x4, fixed_abs, tag = 'smem constant byte address 0x4 - core index']
  #allocation1 [shape = 'u32[72,128]{1,0:T(1,128)}', space=vmem, size = 0x9000, scoped, tag = 'internal scratch']
  #allocation2 [shape = 'f32[20,8]{1,0:T(8,128)}', space=vmem, size = 0x3000, scoped, tag = 'scratch operand']
  #allocation3 [shape = 'f32[20,16]{1,0:T(8,128)}', space=vmem, size = 0x3000, scoped, tag = 'scratch operand']
  #allocation4 [shape = 'f32[18,128]{1,0:T(8,128)}', space=vmem, size = 0x3000, scoped, tag = 'scratch operand']
  #allocation5 [shape = 'f32[18,64]{1,0:T(8,128)}', space=vmem, size = 0x3000, scoped, tag = 'scratch operand']
  #allocation6 [shape = 'f32[1,1]{1,0:T(1,128)S(1)}', space=vmem, size = 0x200, scoped, tag = 'scoped memory for forward.1']
  #allocation7 [shape = 'f32[1,1]{1,0:T(1,128)S(1)}', space=vmem, size = 0x200, scoped, tag = 'scoped memory for forward.1']
  %s0 = inlined_call_operand.vmem [shape: f32[16,8], index: 0, kind: input, shape index: {}]
  %s1 = inlined_call_operand.vmem [shape: bf16[2,18], index: 1, kind: input, shape index: {}]
  %s2 = inlined_call_operand.hbm [shape: bf16[3,8,16], index: 2, kind: input, shape index: {}]
  %s3 = inlined_call_operand.vmem [shape: f32[1,16], index: 3, kind: input, shape index: {}]
  %s4 = inlined_call_operand.vmem [shape: f32[1,16], index: 4, kind: input, shape index: {}]
  %s5 = inlined_call_operand.vmem [shape: f32[1,16], index: 5, kind: input, shape index: {}]
  %s6 = inlined_call_operand.hbm [shape: bf16[16,128], index: 6, kind: input, shape index: {}]
  %s7 = inlined_call_operand.vmem [shape: bf16[32,128], index: 7, kind: input, shape index: {}]
  %s8 = inlined_call_operand.hbm [shape: f32[1,128], index: 8, kind: input, shape index: {}]
  %s9 = inlined_call_operand.vmem [shape: bf16[32,128], index: 9, kind: input, shape index: {}]
  %s10 = inlined_call_operand.vmem [shape: bf16[32,128], index: 10, kind: input, shape index: {}]
  %s11 = inlined_call_operand.hbm [shape: f32[1,128], index: 11, kind: input, shape index: {}]
  %s12 = inlined_call_operand.hbm [shape: f32[1,32], index: 12, kind: input, shape index: {}]
  %s13 = inlined_call_operand.<no memory space> [shape: f32[1,1], index: 13, kind: input, shape index: {}]
  %s14 = inlined_call_operand.vmem [shape: bf16[32,64], index: 14, kind: input, shape index: {}]
  %s15 = inlined_call_operand.hbm [shape: f32[1,64], index: 15, kind: input, shape index: {}]
  %s16 = inlined_call_operand.vmem [shape: bf16[64,1], index: 16, kind: input, shape index: {}]
  %s17 = inlined_call_operand.<no memory space> [shape: f32[1,1], index: 17, kind: input, shape index: {}]
  %s18 = inlined_call_operand.vmem [shape: f32[2,1], index: 18, kind: output, shape index: {}]
  %s19 = sld [smem:[#allocation0]]
  $region106: #{forward.1} parent=0
    _
  %s21 = ssub.s32 1, %s19
  %s22 = scalar_select 0, %s21, %s19
  %v23 = vstv %s13
  %24 = vst [vmem:[#allocation6] sm:$0x1] %v23
  %v25 = vstv %s17
  %26 = vst [vmem:[#allocation7] sm:$0x1] %v25
  $region1: #{forward.1} parent=0
    #allocation8 [shape = 'u8[6144]{0}', space=vmem, size = 0x1800, scoped, tag = 'input window, operand 2, single buffered']
    #allocation9 [shape = 's32[1]{0}', space=sflag, size = 0x4, scoped, tag = 'scoped memory for forward.1']
    #allocation10 [shape = 'u8[4096]{0}', space=vmem, size = 0x1000, scoped, tag = 'input window, operand 6, single buffered']
    #allocation11 [shape = 's32[1]{0}', space=sflag, size = 0x4, scoped, tag = 'scoped memory for forward.1']
    #allocation12 [shape = 'u8[512]{0}', space=vmem, size = 0x400, scoped, tag = 'input window, operand 8, single buffered']
    #allocation13 [shape = 'u8[512]{0}', space=vmem, size = 0x400, scoped, tag = 'input window, operand 11, single buffered']
    #allocation14 [shape = 's32[1]{0}', space=sflag, size = 0x4, scoped, tag = 'scoped memory for forward.1']
    #allocation15 [shape = 'u8[512]{0}', space=vmem, size = 0x400, scoped, tag = 'input window, operand 12, single buffered']
    #allocation16 [shape = 'u8[512]{0}', space=vmem, size = 0x400, scoped, tag = 'input window, operand 15, single buffered']
    #allocation17 [shape = 's32[1]{0}', space=sflag, size = 0x4, scoped, tag = 'scoped memory for forward.1']
    %27 = vsyncpa [#allocation9], 0
    %28 = vsyncpa [#allocation11], 0
    %29 = vsyncpa [#allocation14], 0
    %30 = vsyncpa [#allocation17], 0
    // Predicated region
    $region2: #{forward.1} parent=1 // pred_check
      _
    $region3: #{forward.1} parent=1 // pred_check_branch
      %32 = sbr.rel (0) target = $region5
    $region4: #{forward.1} parent=1 // pred_region
      _
    $region5: #{forward.1} parent=1 // pred_fallthru
      _
    // Predicated region
    $region6: #{forward.1} parent=1 // pred_check
      _
    $region7: #{forward.1} parent=1 // pred_check_branch
      %34 = sbr.rel (0) target = $region9
    $region8: #{forward.1} parent=1 // pred_region
      _
    $region9: #{forward.1} parent=1 // pred_fallthru
      _
    // Predicated region
    $region10: #{forward.1} parent=1 // pred_check
      _
    $region11: #{forward.1} parent=1 // pred_check_branch
      %36 = sbr.rel (0) target = $region13
    $region12: #{forward.1} parent=1 // pred_region
      %38 = vsyncadd [#allocation9], 0
      %s39 = sshll.u32 %s2, 4
      %s40 = int_to_ptr.hbm [resolvable:$true] %s39
      %s41 = sshll.u32 [#allocation8], 4
      %s42 = int_to_ptr.vmem [resolvable:$true] %s41
      %47 = dma.hbm_to_vmem [thread:$0]  %s40, 192, %s42, [#allocation9], 64, 64, 4
    $region13: #{forward.1} parent=1 // pred_fallthru
      _
    // Predicated region
    $region14: #{forward.1} parent=1 // pred_check
      _
    $region15: #{forward.1} parent=1 // pred_check_branch
      %49 = sbr.rel (0) target = $region17
    $region16: #{forward.1} parent=1 // pred_region
      _
    $region17: #{forward.1} parent=1 // pred_fallthru
      _
    // Predicated region
    $region18: #{forward.1} parent=1 // pred_check
      _
    $region19: #{forward.1} parent=1 // pred_check_branch
      %51 = sbr.rel (0) target = $region21
    $region20: #{forward.1} parent=1 // pred_region
      _
    $region21: #{forward.1} parent=1 // pred_fallthru
      _
    // Predicated region
    $region22: #{forward.1} parent=1 // pred_check
      _
    $region23: #{forward.1} parent=1 // pred_check_branch
      %53 = sbr.rel (0) target = $region25
    $region24: #{forward.1} parent=1 // pred_region
      _
    $region25: #{forward.1} parent=1 // pred_fallthru
      _
    // Predicated region
    $region26: #{forward.1} parent=1 // pred_check
      _
    $region27: #{forward.1} parent=1 // pred_check_branch
      %55 = sbr.rel (0) target = $region29
    $region28: #{forward.1} parent=1 // pred_region
      %57 = vsyncadd [#allocation11], 0
      %s58 = sshll.u32 %s6, 4
      %s59 = int_to_ptr.hbm [resolvable:$true] %s58
      %s60 = sshll.u32 [#allocation10], 4
      %s61 = int_to_ptr.vmem [resolvable:$true] %s60
      %66 = dma.hbm_to_vmem [thread:$0]  %s59, 128, %s61, [#allocation11], 64, 64, 4
    $region29: #{forward.1} parent=1 // pred_fallthru
      _
    // Predicated region
    $region30: #{forward.1} parent=1 // pred_check
      _
    $region31: #{forward.1} parent=1 // pred_check_branch
      %68 = sbr.rel (0) target = $region33
    $region32: #{forward.1} parent=1 // pred_region
      _
    $region33: #{forward.1} parent=1 // pred_fallthru
      _
    // Predicated region
    $region34: #{forward.1} parent=1 // pred_check
      _
    $region35: #{forward.1} parent=1 // pred_check_branch
      %70 = sbr.rel (0) target = $region37
    $region36: #{forward.1} parent=1 // pred_region
      %72 = vsyncadd [#allocation11], 0
      %s74 = sshll.u32 %s8, 4
      %s75 = int_to_ptr.hbm [resolvable:$true] %s74
      %s76 = sshll.u32 [#allocation12], 4
      %s77 = int_to_ptr.vmem [resolvable:$true] %s76
      %79 = dma.hbm_to_vmem [thread:$0]  %s75, 16, %s77, [#allocation11]
    $region37: #{forward.1} parent=1 // pred_fallthru
      _
    // Predicated region
    $region38: #{forward.1} parent=1 // pred_check
      _
    $region39: #{forward.1} parent=1 // pred_check_branch
      %81 = sbr.rel (0) target = $region41
    $region40: #{forward.1} parent=1 // pred_region
      _
    $region41: #{forward.1} parent=1 // pred_fallthru
      _
    // Predicated region
    $region42: #{forward.1} parent=1 // pred_check
      _
    $region43: #{forward.1} parent=1 // pred_check_branch
      %83 = sbr.rel (0) target = $region45
    $region44: #{forward.1} parent=1 // pred_region
      _
    $region45: #{forward.1} parent=1 // pred_fallthru
      _
    // Predicated region
    $region46: #{forward.1} parent=1 // pred_check
      _
    $region47: #{forward.1} parent=1 // pred_check_branch
      %85 = sbr.rel (0) target = $region49
    $region48: #{forward.1} parent=1 // pred_region
      %87 = vsyncadd [#allocation14], 0
      %s89 = sshll.u32 %s11, 4
      %s90 = int_to_ptr.hbm [resolvable:$true] %s89
      %s91 = sshll.u32 [#allocation13], 4
      %s92 = int_to_ptr.vmem [resolvable:$true] %s91
      %94 = dma.hbm_to_vmem [thread:$0]  %s90, 16, %s92, [#allocation14]
    $region49: #{forward.1} parent=1 // pred_fallthru
      _
    // Predicated region
    $region50: #{forward.1} parent=1 // pred_check
      _
    $region51: #{forward.1} parent=1 // pred_check_branch
      %96 = sbr.rel (0) target = $region53
    $region52: #{forward.1} parent=1 // pred_region
      %98 = vsyncadd [#allocation14], 0
      %s100 = sshll.u32 %s12, 4
      %s101 = int_to_ptr.hbm [resolvable:$true] %s100
      %s102 = sshll.u32 [#allocation15], 4
      %s103 = int_to_ptr.vmem [resolvable:$true] %s102
      %105 = dma.hbm_to_vmem [thread:$0]  %s101, 16, %s103, [#allocation14]
    $region53: #{forward.1} parent=1 // pred_fallthru
      _
    // Predicated region
    $region54: #{forward.1} parent=1 // pred_check
      _
    $region55: #{forward.1} parent=1 // pred_check_branch
      %107 = sbr.rel (0) target = $region57
    $region56: #{forward.1} parent=1 // pred_region
      _
    $region57: #{forward.1} parent=1 // pred_fallthru
      _
    // Predicated region
    $region58: #{forward.1} parent=1 // pred_check
      _
    $region59: #{forward.1} parent=1 // pred_check_branch
      %109 = sbr.rel (0) target = $region61
    $region60: #{forward.1} parent=1 // pred_region
      _
    $region61: #{forward.1} parent=1 // pred_fallthru
      _
    // Predicated region
    $region62: #{forward.1} parent=1 // pred_check
      _
    $region63: #{forward.1} parent=1 // pred_check_branch
      %111 = sbr.rel (0) target = $region65
    $region64: #{forward.1} parent=1 // pred_region
      %113 = vsyncadd [#allocation17], 0
      %s115 = sshll.u32 %s15, 4
      %s116 = int_to_ptr.hbm [resolvable:$true] %s115
      %s117 = sshll.u32 [#allocation16], 4
      %s118 = int_to_ptr.vmem [resolvable:$true] %s117
      %120 = dma.hbm_to_vmem [thread:$0]  %s116, 16, %s118, [#allocation17]
    $region65: #{forward.1} parent=1 // pred_fallthru
      _
    // Predicated region
    $region66: #{forward.1} parent=1 // pred_check
      _
    $region67: #{forward.1} parent=1 // pred_check_branch
      %122 = sbr.rel (0) target = $region69
    $region68: #{forward.1} parent=1 // pred_region
      _
    $region69: #{forward.1} parent=1 // pred_fallthru
      _
    // Predicated region
    $region70: #{forward.1} parent=1 // pred_check
      _
    $region71: #{forward.1} parent=1 // pred_check_branch
      %124 = sbr.rel (0) target = $region73
    $region72: #{forward.1} parent=1 // pred_region
      _
    $region73: #{forward.1} parent=1 // pred_fallthru
      _
    // Predicated region
    $region74: #{forward.1} parent=1 // pred_check
      _
    $region75: #{forward.1} parent=1 // pred_check_branch
      %126 = sbr.rel (0) target = $region77
    $region76: #{forward.1} parent=1 // pred_region
      %128 = dma.done [#allocation9], 192
    $region77: #{forward.1} parent=1 // pred_fallthru
      _
    // Predicated region
    $region78: #{forward.1} parent=1 // pred_check
      _
    $region79: #{forward.1} parent=1 // pred_check_branch
      %130 = sbr.rel (0) target = $region81
    $region80: #{forward.1} parent=1 // pred_region
      %132 = dma.done [#allocation11], 128
    $region81: #{forward.1} parent=1 // pred_fallthru
      _
    // Predicated region
    $region82: #{forward.1} parent=1 // pred_check
      _
    $region83: #{forward.1} parent=1 // pred_check_branch
      %134 = sbr.rel (0) target = $region85
    $region84: #{forward.1} parent=1 // pred_region
      %136 = dma.done [#allocation11], 16
    $region85: #{forward.1} parent=1 // pred_fallthru
      _
    // Predicated region
    $region86: #{forward.1} parent=1 // pred_check
      _
    $region87: #{forward.1} parent=1 // pred_check_branch
      %138 = sbr.rel (0) target = $region89
    $region88: #{forward.1} parent=1 // pred_region
      %140 = dma.done [#allocation14], 16
    $region89: #{forward.1} parent=1 // pred_fallthru
      _
    // Predicated region
    $region90: #{forward.1} parent=1 // pred_check
      _
    $region91: #{forward.1} parent=1 // pred_check_branch
      %142 = sbr.rel (0) target = $region93
    $region92: #{forward.1} parent=1 // pred_region
      %144 = dma.done [#allocation14], 16
    $region93: #{forward.1} parent=1 // pred_fallthru
      _
    // Predicated region
    $region94: #{forward.1} parent=1 // pred_check
      _
    $region95: #{forward.1} parent=1 // pred_check_branch
      %146 = sbr.rel (0) target = $region97
    $region96: #{forward.1} parent=1 // pred_region
      %148 = dma.done [#allocation17], 16
    $region97: #{forward.1} parent=1 // pred_fallthru
      _
    %vm150 = vcmask 58368
    %151 = vst.msk [vmem:[#allocation2] sm:$0x3] %vm150, 0.0
    %v152 = vld [vmem:[%s0] sm:$0xff]
    %v153 = vld [vmem:[%s0 + $0x8] sm:$0xff]
    %vm154 = vcmask 64512
    %155 = vst.msk [vmem:[#allocation2 + $0x2] sm:$0xff] %vm154, %v152
    %156 = vst.msk [vmem:[#allocation2 + $0xa] sm:$0xff] %vm154, %v153
    %157 = vst.msk [vmem:[#allocation2 + $0x12] sm:$0x3] %vm150, 0.0
    %v158 = vld [vmem:[#allocation2] sm:$0xff]
    %v159 = vld [vmem:[#allocation2 + $0x8] sm:$0xff]
    %v160 = vld [vmem:[#allocation8] sm:$0xf]
    %v161 = vpack.c.bf16 %v159, %v158
    %v162 = vld [vmem:[#allocation2 + $0x2] sm:$0xff]
    %v163 = vld [vmem:[#allocation2 + $0xa] sm:$0xff]
    %s164 = scalar_lea.vmem [#allocation8], 4
    %v165 = vld [vmem:[%s164] sm:$0xf]
    %v166 = vpack.c.bf16 %v163, %v162
    %v168 = vsel %vm154, %v166, 0
    %vm170 = vcmask 1043456
    %v172 = vsel %vm170, %v165, 0
    %174 = vmatpush.bf16.msra.mxu0 0
    %175 = vmatpush.bf16.msra.mxu0 0
    %176 = vmatpush.bf16.msra.mxu0 0
    %177 = vmatpush.bf16.msra.mxu0 0
    %178 = vmatpush.bf16.msra.mxu0 0
    %179 = vmatpush.bf16.msra.mxu0 0
    %180 = vmatpush.bf16.msra.mxu0 0
    %181 = vmatpush.bf16.msra.mxu0 %v172
    %182 = vmatmul.bf16.gmra.mxu0 %v168
    %v183 = vpop.f32.mrf.mxu0
    %v184 = vadd.f32 0.0, %v183
    %v185 = vpop.f32.mrf.mxu0
    %v186 = vadd.f32 0.0, %v185
    %187 = vdwg.mxu0
    %v189 = vsel %vm154, %v161, 0
    %v192 = vsel %vm170, %v160, 0
    %194 = vmatpush.bf16.msra.mxu0 0
    %195 = vmatpush.bf16.msra.mxu0 0
    %196 = vmatpush.bf16.msra.mxu0 0
    %197 = vmatpush.bf16.msra.mxu0 0
    %198 = vmatpush.bf16.msra.mxu0 0
    %199 = vmatpush.bf16.msra.mxu0 0
    %200 = vmatpush.bf16.msra.mxu0 0
    %201 = vmatpush.bf16.msra.mxu0 %v192
    %202 = vmatmul.bf16.gmra.mxu0 %v189
    %v203 = vpop.f32.mrf.mxu0
    %v204 = vadd.f32 %v184, %v203
    %v205 = vpop.f32.mrf.mxu0
    %v206 = vadd.f32 %v186, %v205
    %207 = vdwg.mxu0
    %v208 = vld [vmem:[#allocation2 + $0x4] sm:$0xff]
    %v209 = vld [vmem:[#allocation2 + $0xc] sm:$0xff]
    %s210 = scalar_lea.vmem [#allocation8], 8
    %v211 = vld [vmem:[%s210] sm:$0xf]
    %v212 = vpack.c.bf16 %v209, %v208
    %v214 = vsel %vm154, %v212, 0
    %v217 = vsel %vm170, %v211, 0
    %219 = vmatpush.bf16.msra.mxu0 0
    %220 = vmatpush.bf16.msra.mxu0 0
    %221 = vmatpush.bf16.msra.mxu0 0
    %222 = vmatpush.bf16.msra.mxu0 0
    %223 = vmatpush.bf16.msra.mxu0 0
    %224 = vmatpush.bf16.msra.mxu0 0
    %225 = vmatpush.bf16.msra.mxu0 0
    %226 = vmatpush.bf16.msra.mxu0 %v217
    %227 = vmatmul.bf16.gmra.mxu0 %v214
    %v228 = vpop.f32.mrf.mxu0
    %v229 = vadd.f32 0.0, %v228
    %v230 = vpop.f32.mrf.mxu0
    %v231 = vadd.f32 0.0, %v230
    %232 = vdwg.mxu0
    %v233 = vadd.f32 %v204, %v229
    %v234 = vadd.f32 %v206, %v231
    %v235 = vld [vmem:[%s3] sm:$0x1]
    %v237 = vperm.slane %v235, 0
    %v239 = vadd.f32 %v233, %v237
    %v240 = vadd.f32 %v234, %v237
    %v241 = vld [vmem:[%s4] sm:$0x1]
    %v243 = vperm.slane %v241, 0
    %v245 = vmul.f32 %v239, %v243
    %v246 = vmul.f32 %v240, %v243
    %v247 = vld [vmem:[%s5] sm:$0x1]
    %v249 = vperm.slane %v247, 0
    %v251 = vadd.f32 %v245, %v249
    %v252 = vadd.f32 %v246, %v249
    %v253 = vmax.f32 %v251, 0.0
    %v254 = vmax.f32 %v252, 0.0
    %vm255 = vcmask 123904
    %256 = vst.msk [vmem:[#allocation3] sm:$0x3] %vm255, 0.0
    %vm257 = vcmask 130048
    %258 = vst.msk [vmem:[#allocation3 + $0x2] sm:$0xff] %vm257, %v253
    %259 = vst.msk [vmem:[#allocation3 + $0xa] sm:$0xff] %vm257, %v254
    %260 = vst.msk [vmem:[#allocation3 + $0x12] sm:$0x3] %vm255, 0.0
    %v261 = vld [vmem:[#allocation3] sm:$0xff]
    %v262 = vld [vmem:[#allocation3 + $0x8] sm:$0xff]
    %v263 = vld [vmem:[#allocation3 + $0x10] sm:$0x3]
    %v264 = vld [vmem:[#allocation3 + $0x2] sm:$0xff]
    %v265 = vld [vmem:[#allocation3 + $0xa] sm:$0xff]
    %v266 = vld [vmem:[#allocation3 + $0x12] sm:$0x3]
    %v267 = vmax.f32 %v261, %v264
    %v268 = vmax.f32 %v262, %v265
    %v269 = vmax.f32 %v263, %v266
    %v270 = vlaneseq
    %v271 = vand.u32 %v270, 127
    %vm272 = vcmp.lt.s32.totalorder %v271, 16
    %vm273 = vcmp.ge.s32.totalorder %v271, 32
    %vm274 = vcmp.lt.s32.totalorder %v271, 48
    %vm275 = vmand %vm273, %vm274
    %vm276 = vmor %vm272, %vm275
    %vm277 = vcmp.ge.s32.totalorder %v271, 64
    %vm278 = vcmp.lt.s32.totalorder %v271, 80
    %vm279 = vmand %vm277, %vm278
    %vm280 = vmor %vm276, %vm279
    %vm281 = vcmp.ge.s32.totalorder %v271, 96
    %vm282 = vcmp.lt.s32.totalorder %v271, 112
    %vm283 = vmand %vm281, %vm282
    %vm284 = vmor %vm280, %vm283
    %v285 = vld [vmem:[#allocation10] sm:$0xf]
    %v286 = vld [vmem:[#allocation10 + $0x4] sm:$0xf]
    %v287 = vpack.c.bf16 %v268, %v267
    %v288 = vpack.c.bf16 %v269, %v269
    %v289 = vld [vmem:[#allocation12] sm:$0x1]
    %v291 = vperm.slane %v289, 0
    %v295 = vunpack.c.l.b16 %v285
    %v296 = vunpack.c.l.b16 %v286
    %v297 = vpack.c.b16 %v296, %v295
    %v300 = vsel %vm257, %v287, 0
    %v303 = vsel %vm257, %v288, 0
    %305 = vmatpush.bf16.msra.mxu0 0
    %306 = vmatpush.bf16.msra.mxu0 0
    %307 = vmatpush.bf16.msra.mxu0 0
    %308 = vmatpush.bf16.msra.mxu0 0
    %309 = vmatpush.bf16.msra.mxu0 0
    %310 = vmatpush.bf16.msra.mxu0 0
    %311 = vmatpush.bf16.msra.mxu0 0
    %312 = vmatpush.bf16.msra.mxu0 %v297
    %313 = vmatmul.bf16.gmra.mxu0 %v300
    %v314 = vpop.f32.mrf.mxu0
    %v315 = vadd.f32 %v291, %v314
    %v316 = vpop.f32.mrf.mxu0
    %v317 = vadd.f32 %v291, %v316
    %318 = vmatmul.bf16.gmra.mxu0 %v303
    %v319 = vpop.f32.mrf.mxu0
    %v320 = vadd.f32 %v291, %v319
    %v321 = vpop.f32.mrf.mxu0
    %322 = vdwg.mxu0
    %323 = vst [vmem:[#allocation4] sm:$0xff] %v315
    %324 = vst [vmem:[#allocation4 + $0x8] sm:$0xff] %v317
    %325 = vst [vmem:[#allocation4 + $0x10] sm:$0x3] %v320
    %v326 = vld [vmem:[%s7] sm:$0xf]
    %v327 = vld [vmem:[%s7 + $0x4] sm:$0xf]
    %v328 = vld [vmem:[%s7 + $0x8] sm:$0xf]
    %v329 = vld [vmem:[%s7 + $0xc] sm:$0xf]
    %v330 = vld [vmem:[#allocation4] sm:$0x3]
    %v331 = vld [vmem:[#allocation4 + $0x10] sm:$0x3]
    %v332 = vsel %vm284, %v330, %v331
    %v337 = vunpack.c.l.b16 %v326
    %v338 = vunpack.c.l.b16 %v327
    %v339 = vunpack.c.l.b16 %v328
    %v340 = vunpack.c.l.b16 %v329
    %v341 = vpack.c.b16 %v338, %v337
    %v342 = vpack.c.b16 %v340, %v339
    %vm345 = vcmask 261120
    %v347 = vsel %vm345, 0, 0
    %349 = vmatpush.bf16.msra.mxu0 0
    %350 = vmatpush.bf16.msra.mxu0 0
    %351 = vmatpush.bf16.msra.mxu0 0
    %352 = vmatpush.bf16.msra.mxu0 0
    %353 = vmatpush.bf16.msra.mxu0 0
    %354 = vmatpush.bf16.msra.mxu0 0
    %355 = vmatpush.bf16.msra.mxu0 %v342
    %356 = vmatpush.bf16.msra.mxu0 %v341
    %357 = vmatmul.bf16.gmra.mxu0 %v347
    %v358 = vpop.f32.mrf.mxu0
    %v359 = vadd.f32 %v332, %v358
    %v360 = vpop.f32.mrf.mxu0
    %361 = vdwg.mxu0
    %v362 = vxor.u32 %v359, 2147483648
    %v363 = vmul.f32 %v362, 1.442695
    %v364 = vpow.pop %v363
    %v365 = vadd.f32 %v364, 1.0
    %v366 = vrcp.pop %v365
    %v367 = vmul.f32 %v365, %v366
    %v368 = vsub.f32 1.0, %v367
    %v369 = vmul.f32 %v366, %v368
    %v370 = vadd.f32 %v366, %v369
    %vm371 = vweird.f32 %v365
    %vm372 = vweird.f32 %v366
    %vm373 = vmor %vm371, %vm372
    %v374 = vsel %vm373, %v366, %v370
    %v375 = vand.u32 2147483647, %v365
    %vm376 = vcmp.eq.f32.partialorder %v375, 8.507059e+37
    %v377 = vand.u32 %v365, 2147483648
    %v378 = vor.u32 1.1754944e-38, %v377
    %v379 = vsel %vm376, %v378, %v374
    %v380 = vmul.f32 1.0, %v379
    %v381 = vtanh.pop %v359
    %v382 = vmul.f32 %v380, 0.0
    %384 = vrot.lane.b32.xlu0 %v381, 32
    %v385 = vpop.permute.xlu0 %384
    %v387 = vmul.f32 %v380, %v385
    %389 = vrot.lane.b32.xlu0 %v387, 32
    %v390 = vpop.permute.xlu0 %389
    %v392 = vadd.f32 %v382, %v390
    %v393 = vtanh.pop %v392
    %395 = vrot.lane.b32.xlu0 %v393, 32
    %v396 = vpop.permute.xlu0 %395
    %v398 = vmul.f32 %v380, %v396
    %400 = vrot.lane.b32.xlu0 %v398, 64
    %v401 = vpop.permute.xlu0 %400
    %403 = vst.msk [vmem:[#allocation5] sm:$0x3] %vm255, %v401
    %vm404 = vcmask 255104
    %405 = vst.msk [vmem:[#allocation5 + $0x10] sm:$0x3] %vm404, %v401
    %v406 = vpack.c.bf16 %v398, %v398
    %v407 = vld [vmem:[#allocation4 + $0x2] sm:$0x3]
    %v408 = vld [vmem:[#allocation4 + $0xe] sm:$0x3]
    %v409 = vsel %vm284, %v407, %v408
    %411 = vrot.lane.b32.xlu0 %v406, 64
    %v412 = vpop.permute.xlu0 %411
    %v414 = vsel %vm345, %v412, 0
    %416 = vmatpush.bf16.msra.mxu0 0
    %417 = vmatpush.bf16.msra.mxu0 0
    %418 = vmatpush.bf16.msra.mxu0 0
    %419 = vmatpush.bf16.msra.mxu0 0
    %420 = vmatpush.bf16.msra.mxu0 0
    %421 = vmatpush.bf16.msra.mxu0 0
    %422 = vmatpush.bf16.msra.mxu0 %v342
    %423 = vmatpush.bf16.msra.mxu0 %v341
    %424 = vmatmul.bf16.gmra.mxu0 %v414
    %v425 = vpop.f32.mrf.mxu0
    %v426 = vadd.f32 %v409, %v425
    %v427 = vpop.f32.mrf.mxu0
    %428 = vdwg.mxu0
    %v429 = vxor.u32 %v426, 2147483648
    %v430 = vmul.f32 %v429, 1.442695
    %v431 = vpow.pop %v430
    %v432 = vadd.f32 %v431, 1.0
    %v433 = vrcp.pop %v432
    %v434 = vmul.f32 %v432, %v433
    %v435 = vsub.f32 1.0, %v434
    %v436 = vmul.f32 %v433, %v435
    %v437 = vadd.f32 %v433, %v436
    %vm438 = vweird.f32 %v432
    %vm439 = vweird.f32 %v433
    %vm440 = vmor %vm438, %vm439
    %v441 = vsel %vm440, %v433, %v437
    %v442 = vand.u32 2147483647, %v432
    %vm443 = vcmp.eq.f32.partialorder %v442, 8.507059e+37
    %v444 = vand.u32 %v432, 2147483648
    %v445 = vor.u32 1.1754944e-38, %v444
    %v446 = vsel %vm443, %v445, %v441
    %v447 = vmul.f32 1.0, %v446
    %v448 = vtanh.pop %v426
    %v449 = vmul.f32 %v447, %v392
    %451 = vrot.lane.b32.xlu0 %v448, 32
    %v452 = vpop.permute.xlu0 %451
    %v454 = vmul.f32 %v447, %v452
    %456 = vrot.lane.b32.xlu0 %v454, 32
    %v457 = vpop.permute.xlu0 %456
    %v459 = vadd.f32 %v449, %v457
    %v460 = vtanh.pop %v459
    %462 = vrot.lane.b32.xlu0 %v460, 32
    %v463 = vpop.permute.xlu0 %462
    %v465 = vmul.f32 %v447, %v463
    %467 = vrot.lane.b32.xlu0 %v465, 64
    %v468 = vpop.permute.xlu0 %467
    %470 = vst.msk [vmem:[#allocation5 + $0x2] sm:$0x3] %vm255, %v468
    %471 = vst.msk [vmem:[#allocation5 + $0xe] sm:$0x3] %vm404, %v468
    %v472 = vpack.c.bf16 %v465, %v465
    %v473 = vld [vmem:[#allocation4 + $0x4] sm:$0x3]
    %v474 = vld [vmem:[#allocation4 + $0xc] sm:$0x3]
    %v475 = vsel %vm284, %v473, %v474
    %477 = vrot.lane.b32.xlu0 %v472, 64
    %v478 = vpop.permute.xlu0 %477
    %v480 = vsel %vm345, %v478, 0
    %482 = vmatpush.bf16.msra.mxu0 0
    %483 = vmatpush.bf16.msra.mxu0 0
    %484 = vmatpush.bf16.msra.mxu0 0
    %485 = vmatpush.bf16.msra.mxu0 0
    %486 = vmatpush.bf16.msra.mxu0 0
    %487 = vmatpush.bf16.msra.mxu0 0
    %488 = vmatpush.bf16.msra.mxu0 %v342
    %489 = vmatpush.bf16.msra.mxu0 %v341
    %490 = vmatmul.bf16.gmra.mxu0 %v480
    %v491 = vpop.f32.mrf.mxu0
    %v492 = vadd.f32 %v475, %v491
    %v493 = vpop.f32.mrf.mxu0
    %494 = vdwg.mxu0
    %v495 = vxor.u32 %v492, 2147483648
    %v496 = vmul.f32 %v495, 1.442695
    %v497 = vpow.pop %v496
    %v498 = vadd.f32 %v497, 1.0
    %v499 = vrcp.pop %v498
    %v500 = vmul.f32 %v498, %v499
    %v501 = vsub.f32 1.0, %v500
    %v502 = vmul.f32 %v499, %v501
    %v503 = vadd.f32 %v499, %v502
    %vm504 = vweird.f32 %v498
    %vm505 = vweird.f32 %v499
    %vm506 = vmor %vm504, %vm505
    %v507 = vsel %vm506, %v499, %v503
    %v508 = vand.u32 2147483647, %v498
    %vm509 = vcmp.eq.f32.partialorder %v508, 8.507059e+37
    %v510 = vand.u32 %v498, 2147483648
    %v511 = vor.u32 1.1754944e-38, %v510
    %v512 = vsel %vm509, %v511, %v507
    %v513 = vmul.f32 1.0, %v512
    %v514 = vtanh.pop %v492
    %v515 = vmul.f32 %v513, %v459
    %517 = vrot.lane.b32.xlu0 %v514, 32
    %v518 = vpop.permute.xlu0 %517
    %v520 = vmul.f32 %v513, %v518
    %522 = vrot.lane.b32.xlu0 %v520, 32
    %v523 = vpop.permute.xlu0 %522
    %v525 = vadd.f32 %v515, %v523
    %v526 = vtanh.pop %v525
    %528 = vrot.lane.b32.xlu0 %v526, 32
    %v529 = vpop.permute.xlu0 %528
    %v531 = vmul.f32 %v513, %v529
    %533 = vrot.lane.b32.xlu0 %v531, 64
    %v534 = vpop.permute.xlu0 %533
    %536 = vst.msk [vmem:[#allocation5 + $0x4] sm:$0x3] %vm255, %v534
    %537 = vst.msk [vmem:[#allocation5 + $0xc] sm:$0x3] %vm404, %v534
    %v538 = vpack.c.bf16 %v531, %v531
    %v539 = vld [vmem:[#allocation4 + $0x6] sm:$0x3]
    %v540 = vld [vmem:[#allocation4 + $0xa] sm:$0x3]
    %v541 = vsel %vm284, %v539, %v540
    %543 = vrot.lane.b32.xlu0 %v538, 64
    %v544 = vpop.permute.xlu0 %543
    %v546 = vsel %vm345, %v544, 0
    %548 = vmatpush.bf16.msra.mxu0 0
    %549 = vmatpush.bf16.msra.mxu0 0
    %550 = vmatpush.bf16.msra.mxu0 0
    %551 = vmatpush.bf16.msra.mxu0 0
    %552 = vmatpush.bf16.msra.mxu0 0
    %553 = vmatpush.bf16.msra.mxu0 0
    %554 = vmatpush.bf16.msra.mxu0 %v342
    %555 = vmatpush.bf16.msra.mxu0 %v341
    %556 = vmatmul.bf16.gmra.mxu0 %v546
    %v557 = vpop.f32.mrf.mxu0
    %v558 = vadd.f32 %v541, %v557
    %v559 = vpop.f32.mrf.mxu0
    %560 = vdwg.mxu0
    %v561 = vxor.u32 %v558, 2147483648
    %v562 = vmul.f32 %v561, 1.442695
    %v563 = vpow.pop %v562
    %v564 = vadd.f32 %v563, 1.0
    %v565 = vrcp.pop %v564
    %v566 = vmul.f32 %v564, %v565
    %v567 = vsub.f32 1.0, %v566
    %v568 = vmul.f32 %v565, %v567
    %v569 = vadd.f32 %v565, %v568
    %vm570 = vweird.f32 %v564
    %vm571 = vweird.f32 %v565
    %vm572 = vmor %vm570, %vm571
    %v573 = vsel %vm572, %v565, %v569
    %v574 = vand.u32 2147483647, %v564
    %vm575 = vcmp.eq.f32.partialorder %v574, 8.507059e+37
    %v576 = vand.u32 %v564, 2147483648
    %v577 = vor.u32 1.1754944e-38, %v576
    %v578 = vsel %vm575, %v577, %v573
    %v579 = vmul.f32 1.0, %v578
    %v580 = vtanh.pop %v558
    %v581 = vmul.f32 %v579, %v525
    %583 = vrot.lane.b32.xlu0 %v580, 32
    %v584 = vpop.permute.xlu0 %583
    %v586 = vmul.f32 %v579, %v584
    %588 = vrot.lane.b32.xlu0 %v586, 32
    %v589 = vpop.permute.xlu0 %588
    %v591 = vadd.f32 %v581, %v589
    %v592 = vtanh.pop %v591
    %594 = vrot.lane.b32.xlu0 %v592, 32
    %v595 = vpop.permute.xlu0 %594
    %v597 = vmul.f32 %v579, %v595
    %599 = vrot.lane.b32.xlu0 %v597, 64
    %v600 = vpop.permute.xlu0 %599
    %602 = vst.msk [vmem:[#allocation5 + $0x6] sm:$0x3] %vm255, %v600
    %603 = vst.msk [vmem:[#allocation5 + $0xa] sm:$0x3] %vm404, %v600
    %v604 = vpack.c.bf16 %v597, %v597
    %v605 = vld [vmem:[#allocation4 + $0x8] sm:$0x3]
    %607 = vrot.lane.b32.xlu0 %v604, 64
    %v608 = vpop.permute.xlu0 %607
    %v610 = vsel %vm345, %v608, 0
    %612 = vmatpush.bf16.msra.mxu0 0
    %613 = vmatpush.bf16.msra.mxu0 0
    %614 = vmatpush.bf16.msra.mxu0 0
    %615 = vmatpush.bf16.msra.mxu0 0
    %616 = vmatpush.bf16.msra.mxu0 0
    %617 = vmatpush.bf16.msra.mxu0 0
    %618 = vmatpush.bf16.msra.mxu0 %v342
    %619 = vmatpush.bf16.msra.mxu0 %v341
    %620 = vmatmul.bf16.gmra.mxu0 %v610
    %v621 = vpop.f32.mrf.mxu0
    %v622 = vadd.f32 %v605, %v621
    %v623 = vpop.f32.mrf.mxu0
    %624 = vdwg.mxu0
    %v625 = vxor.u32 %v622, 2147483648
    %v626 = vmul.f32 %v625, 1.442695
    %v627 = vpow.pop %v626
    %v628 = vadd.f32 %v627, 1.0
    %v629 = vrcp.pop %v628
    %v630 = vmul.f32 %v628, %v629
    %v631 = vsub.f32 1.0, %v630
    %v632 = vmul.f32 %v629, %v631
    %v633 = vadd.f32 %v629, %v632
    %vm634 = vweird.f32 %v628
    %vm635 = vweird.f32 %v629
    %vm636 = vmor %vm634, %vm635
    %v637 = vsel %vm636, %v629, %v633
    %v638 = vand.u32 2147483647, %v628
    %vm639 = vcmp.eq.f32.partialorder %v638, 8.507059e+37
    %v640 = vand.u32 %v628, 2147483648
    %v641 = vor.u32 1.1754944e-38, %v640
    %v642 = vsel %vm639, %v641, %v637
    %v643 = vmul.f32 1.0, %v642
    %v644 = vtanh.pop %v622
    %v645 = vmul.f32 %v643, %v591
    %647 = vrot.lane.b32.xlu0 %v644, 32
    %v648 = vpop.permute.xlu0 %647
    %v650 = vmul.f32 %v643, %v648
    %652 = vrot.lane.b32.xlu0 %v650, 32
    %v653 = vpop.permute.xlu0 %652
    %v655 = vadd.f32 %v645, %v653
    %v656 = vtanh.pop %v655
    %658 = vrot.lane.b32.xlu0 %v656, 32
    %v659 = vpop.permute.xlu0 %658
    %v661 = vmul.f32 %v643, %v659
    %663 = vrot.lane.b32.xlu0 %v661, 64
    %v664 = vpop.permute.xlu0 %663
    %666 = vst.msk [vmem:[#allocation5 + $0x8] sm:$0x3] %vm255, %v664
    %667 = vst.msk [vmem:[#allocation5 + $0x8] sm:$0x3] %vm404, %v664
    %v668 = vpack.c.bf16 %v661, %v661
    %v669 = vld [vmem:[#allocation4 + $0xa] sm:$0x3]
    %v670 = vld [vmem:[#allocation4 + $0x6] sm:$0x3]
    %v671 = vsel %vm284, %v669, %v670
    %673 = vrot.lane.b32.xlu0 %v668, 64
    %v674 = vpop.permute.xlu0 %673
    %v676 = vsel %vm345, %v674, 0
    %678 = vmatpush.bf16.msra.mxu0 0
    %679 = vmatpush.bf16.msra.mxu0 0
    %680 = vmatpush.bf16.msra.mxu0 0
    %681 = vmatpush.bf16.msra.mxu0 0
    %682 = vmatpush.bf16.msra.mxu0 0
    %683 = vmatpush.bf16.msra.mxu0 0
    %684 = vmatpush.bf16.msra.mxu0 %v342
    %685 = vmatpush.bf16.msra.mxu0 %v341
    %686 = vmatmul.bf16.gmra.mxu0 %v676
    %v687 = vpop.f32.mrf.mxu0
    %v688 = vadd.f32 %v671, %v687
    %v689 = vpop.f32.mrf.mxu0
    %690 = vdwg.mxu0
    %v691 = vxor.u32 %v688, 2147483648
    %v692 = vmul.f32 %v691, 1.442695
    %v693 = vpow.pop %v692
    %v694 = vadd.f32 %v693, 1.0
    %v695 = vrcp.pop %v694
    %v696 = vmul.f32 %v694, %v695
    %v697 = vsub.f32 1.0, %v696
    %v698 = vmul.f32 %v695, %v697
    %v699 = vadd.f32 %v695, %v698
    %vm700 = vweird.f32 %v694
    %vm701 = vweird.f32 %v695
    %vm702 = vmor %vm700, %vm701
    %v703 = vsel %vm702, %v695, %v699
    %v704 = vand.u32 2147483647, %v694
    %vm705 = vcmp.eq.f32.partialorder %v704, 8.507059e+37
    %v706 = vand.u32 %v694, 2147483648
    %v707 = vor.u32 1.1754944e-38, %v706
    %v708 = vsel %vm705, %v707, %v703
    %v709 = vmul.f32 1.0, %v708
    %v710 = vtanh.pop %v688
    %v711 = vmul.f32 %v709, %v655
    %713 = vrot.lane.b32.xlu0 %v710, 32
    %v714 = vpop.permute.xlu0 %713
    %v716 = vmul.f32 %v709, %v714
    %718 = vrot.lane.b32.xlu0 %v716, 32
    %v719 = vpop.permute.xlu0 %718
    %v721 = vadd.f32 %v711, %v719
    %v722 = vtanh.pop %v721
    %724 = vrot.lane.b32.xlu0 %v722, 32
    %v725 = vpop.permute.xlu0 %724
    %v727 = vmul.f32 %v709, %v725
    %729 = vrot.lane.b32.xlu0 %v727, 64
    %v730 = vpop.permute.xlu0 %729
    %732 = vst.msk [vmem:[#allocation5 + $0xa] sm:$0x3] %vm255, %v730
    %733 = vst.msk [vmem:[#allocation5 + $0x6] sm:$0x3] %vm404, %v730
    %v734 = vpack.c.bf16 %v727, %v727
    %v735 = vld [vmem:[#allocation4 + $0xc] sm:$0x3]
    %v736 = vld [vmem:[#allocation4 + $0x4] sm:$0x3]
    %v737 = vsel %vm284, %v735, %v736
    %739 = vrot.lane.b32.xlu0 %v734, 64
    %v740 = vpop.permute.xlu0 %739
    %v742 = vsel %vm345, %v740, 0
    %744 = vmatpush.bf16.msra.mxu0 0
    %745 = vmatpush.bf16.msra.mxu0 0
    %746 = vmatpush.bf16.msra.mxu0 0
    %747 = vmatpush.bf16.msra.mxu0 0
    %748 = vmatpush.bf16.msra.mxu0 0
    %749 = vmatpush.bf16.msra.mxu0 0
    %750 = vmatpush.bf16.msra.mxu0 %v342
    %751 = vmatpush.bf16.msra.mxu0 %v341
    %752 = vmatmul.bf16.gmra.mxu0 %v742
    %v753 = vpop.f32.mrf.mxu0
    %v754 = vadd.f32 %v737, %v753
    %v755 = vpop.f32.mrf.mxu0
    %756 = vdwg.mxu0
    %v757 = vxor.u32 %v754, 2147483648
    %v758 = vmul.f32 %v757, 1.442695
    %v759 = vpow.pop %v758
    %v760 = vadd.f32 %v759, 1.0
    %v761 = vrcp.pop %v760
    %v762 = vmul.f32 %v760, %v761
    %v763 = vsub.f32 1.0, %v762
    %v764 = vmul.f32 %v761, %v763
    %v765 = vadd.f32 %v761, %v764
    %vm766 = vweird.f32 %v760
    %vm767 = vweird.f32 %v761
    %vm768 = vmor %vm766, %vm767
    %v769 = vsel %vm768, %v761, %v765
    %v770 = vand.u32 2147483647, %v760
    %vm771 = vcmp.eq.f32.partialorder %v770, 8.507059e+37
    %v772 = vand.u32 %v760, 2147483648
    %v773 = vor.u32 1.1754944e-38, %v772
    %v774 = vsel %vm771, %v773, %v769
    %v775 = vmul.f32 1.0, %v774
    %v776 = vtanh.pop %v754
    %v777 = vmul.f32 %v775, %v721
    %779 = vrot.lane.b32.xlu0 %v776, 32
    %v780 = vpop.permute.xlu0 %779
    %v782 = vmul.f32 %v775, %v780
    %784 = vrot.lane.b32.xlu0 %v782, 32
    %v785 = vpop.permute.xlu0 %784
    %v787 = vadd.f32 %v777, %v785
    %v788 = vtanh.pop %v787
    %790 = vrot.lane.b32.xlu0 %v788, 32
    %v791 = vpop.permute.xlu0 %790
    %v793 = vmul.f32 %v775, %v791
    %795 = vrot.lane.b32.xlu0 %v793, 64
    %v796 = vpop.permute.xlu0 %795
    %798 = vst.msk [vmem:[#allocation5 + $0xc] sm:$0x3] %vm255, %v796
    %799 = vst.msk [vmem:[#allocation5 + $0x4] sm:$0x3] %vm404, %v796
    %v800 = vpack.c.bf16 %v793, %v793
    %v801 = vld [vmem:[#allocation4 + $0xe] sm:$0x3]
    %v802 = vld [vmem:[#allocation4 + $0x2] sm:$0x3]
    %v803 = vsel %vm284, %v801, %v802
    %805 = vrot.lane.b32.xlu0 %v800, 64
    %v806 = vpop.permute.xlu0 %805
    %v808 = vsel %vm345, %v806, 0
    %810 = vmatpush.bf16.msra.mxu0 0
    %811 = vmatpush.bf16.msra.mxu0 0
    %812 = vmatpush.bf16.msra.mxu0 0
    %813 = vmatpush.bf16.msra.mxu0 0
    %814 = vmatpush.bf16.msra.mxu0 0
    %815 = vmatpush.bf16.msra.mxu0 0
    %816 = vmatpush.bf16.msra.mxu0 %v342
    %817 = vmatpush.bf16.msra.mxu0 %v341
    %818 = vmatmul.bf16.gmra.mxu0 %v808
    %v819 = vpop.f32.mrf.mxu0
    %v820 = vadd.f32 %v803, %v819
    %v821 = vpop.f32.mrf.mxu0
    %822 = vdwg.mxu0
    %v823 = vxor.u32 %v820, 2147483648
    %v824 = vmul.f32 %v823, 1.442695
    %v825 = vpow.pop %v824
    %v826 = vadd.f32 %v825, 1.0
    %v827 = vrcp.pop %v826
    %v828 = vmul.f32 %v826, %v827
    %v829 = vsub.f32 1.0, %v828
    %v830 = vmul.f32 %v827, %v829
    %v831 = vadd.f32 %v827, %v830
    %vm832 = vweird.f32 %v826
    %vm833 = vweird.f32 %v827
    %vm834 = vmor %vm832, %vm833
    %v835 = vsel %vm834, %v827, %v831
    %v836 = vand.u32 2147483647, %v826
    %vm837 = vcmp.eq.f32.partialorder %v836, 8.507059e+37
    %v838 = vand.u32 %v826, 2147483648
    %v839 = vor.u32 1.1754944e-38, %v838
    %v840 = vsel %vm837, %v839, %v835
    %v841 = vmul.f32 1.0, %v840
    %v842 = vtanh.pop %v820
    %v843 = vmul.f32 %v841, %v787
    %845 = vrot.lane.b32.xlu0 %v842, 32
    %v846 = vpop.permute.xlu0 %845
    %v848 = vmul.f32 %v841, %v846
    %850 = vrot.lane.b32.xlu0 %v848, 32
    %v851 = vpop.permute.xlu0 %850
    %v853 = vadd.f32 %v843, %v851
    %v854 = vtanh.pop %v853
    %856 = vrot.lane.b32.xlu0 %v854, 32
    %v857 = vpop.permute.xlu0 %856
    %v859 = vmul.f32 %v841, %v857
    %861 = vrot.lane.b32.xlu0 %v859, 64
    %v862 = vpop.permute.xlu0 %861
    %864 = vst.msk [vmem:[#allocation5 + $0xe] sm:$0x3] %vm255, %v862
    %865 = vst.msk [vmem:[#allocation5 + $0x2] sm:$0x3] %vm404, %v862
    %v866 = vpack.c.bf16 %v859, %v859
    %v867 = vld [vmem:[#allocation4 + $0x10] sm:$0x3]
    %v868 = vld [vmem:[#allocation4] sm:$0x3]
    %v869 = vsel %vm284, %v867, %v868
    %871 = vrot.lane.b32.xlu0 %v866, 64
    %v872 = vpop.permute.xlu0 %871
    %v874 = vsel %vm345, %v872, 0
    %876 = vmatpush.bf16.msra.mxu0 0
    %877 = vmatpush.bf16.msra.mxu0 0
    %878 = vmatpush.bf16.msra.mxu0 0
    %879 = vmatpush.bf16.msra.mxu0 0
    %880 = vmatpush.bf16.msra.mxu0 0
    %881 = vmatpush.bf16.msra.mxu0 0
    %882 = vmatpush.bf16.msra.mxu0 %v342
    %883 = vmatpush.bf16.msra.mxu0 %v341
    %884 = vmatmul.bf16.gmra.mxu0 %v874
    %v885 = vpop.f32.mrf.mxu0
    %v886 = vadd.f32 %v869, %v885
    %v887 = vpop.f32.mrf.mxu0
    %888 = vdwg.mxu0
    %v889 = vxor.u32 %v886, 2147483648
    %v890 = vmul.f32 %v889, 1.442695
    %v891 = vpow.pop %v890
    %v892 = vadd.f32 %v891, 1.0
    %v893 = vrcp.pop %v892
    %v894 = vmul.f32 %v892, %v893
    %v895 = vsub.f32 1.0, %v894
    %v896 = vmul.f32 %v893, %v895
    %v897 = vadd.f32 %v893, %v896
    %vm898 = vweird.f32 %v892
    %vm899 = vweird.f32 %v893
    %vm900 = vmor %vm898, %vm899
    %v901 = vsel %vm900, %v893, %v897
    %v902 = vand.u32 2147483647, %v892
    %vm903 = vcmp.eq.f32.partialorder %v902, 8.507059e+37
    %v904 = vand.u32 %v892, 2147483648
    %v905 = vor.u32 1.1754944e-38, %v904
    %v906 = vsel %vm903, %v905, %v901
    %v907 = vmul.f32 1.0, %v906
    %v908 = vtanh.pop %v886
    %v909 = vmul.f32 %v907, %v853
    %911 = vrot.lane.b32.xlu0 %v908, 32
    %v912 = vpop.permute.xlu0 %911
    %v914 = vmul.f32 %v907, %v912
    %916 = vrot.lane.b32.xlu0 %v914, 32
    %v917 = vpop.permute.xlu0 %916
    %v919 = vadd.f32 %v909, %v917
    %v920 = vtanh.pop %v919
    %922 = vrot.lane.b32.xlu0 %v920, 32
    %v923 = vpop.permute.xlu0 %922
    %v925 = vmul.f32 %v907, %v923
    %927 = vrot.lane.b32.xlu0 %v925, 64
    %v928 = vpop.permute.xlu0 %927
    %930 = vst.msk [vmem:[#allocation5 + $0x10] sm:$0x3] %vm255, %v928
    %931 = vst.msk [vmem:[#allocation5] sm:$0x3] %vm404, %v928
    %v932 = vld [vmem:[#allocation5] sm:$0xff]
    %v933 = vld [vmem:[#allocation5 + $0x8] sm:$0xff]
    %v934 = vld [vmem:[#allocation5 + $0x10] sm:$0x3]
    %v935 = vld [vmem:[%s9] sm:$0xf]
    %v936 = vld [vmem:[%s9 + $0x4] sm:$0xf]
    %v937 = vld [vmem:[%s9 + $0x8] sm:$0xf]
    %v938 = vld [vmem:[%s9 + $0xc] sm:$0xf]
    %v939 = vpack.c.bf16 %v933, %v932
    %v940 = vpack.c.bf16 %v934, %v934
    %v941 = vld [vmem:[#allocation13] sm:$0x1]
    %v943 = vperm.slane %v941, 0
    %v949 = vunpack.c.l.b16 %v935
    %v950 = vunpack.c.l.b16 %v936
    %v951 = vunpack.c.l.b16 %v937
    %v952 = vunpack.c.l.b16 %v938
    %v953 = vpack.c.b16 %v950, %v949
    %v954 = vpack.c.b16 %v952, %v951
    %v958 = vsel %vm345, %v939, 0
    %v961 = vsel %vm345, %v940, 0
    %963 = vmatpush.bf16.msra.mxu0 0
    %964 = vmatpush.bf16.msra.mxu0 0
    %965 = vmatpush.bf16.msra.mxu0 0
    %966 = vmatpush.bf16.msra.mxu0 0
    %967 = vmatpush.bf16.msra.mxu0 0
    %968 = vmatpush.bf16.msra.mxu0 0
    %969 = vmatpush.bf16.msra.mxu0 %v954
    %970 = vmatpush.bf16.msra.mxu0 %v953
    %971 = vmatmul.bf16.gmra.mxu0 %v958
    %v972 = vpop.f32.mrf.mxu0
    %v973 = vadd.f32 %v943, %v972
    %v974 = vpop.f32.mrf.mxu0
    %v975 = vadd.f32 %v943, %v974
    %976 = vmatmul.bf16.gmra.mxu0 %v961
    %v977 = vpop.f32.mrf.mxu0
    %v978 = vadd.f32 %v943, %v977
    %v979 = vpop.f32.mrf.mxu0
    %980 = vdwg.mxu0
    %981 = vst [vmem:[#allocation4] sm:$0xff] %v973
    %982 = vst [vmem:[#allocation4 + $0x8] sm:$0xff] %v975
    %983 = vst [vmem:[#allocation4 + $0x10] sm:$0x3] %v978
    %v984 = vld [vmem:[%s10] sm:$0xf]
    %v985 = vld [vmem:[%s10 + $0x4] sm:$0xf]
    %v986 = vld [vmem:[%s10 + $0x8] sm:$0xf]
    %v987 = vld [vmem:[%s10 + $0xc] sm:$0xf]
    %v988 = vld [vmem:[#allocation4] sm:$0x3]
    %v989 = vld [vmem:[#allocation4 + $0x10] sm:$0x3]
    %v990 = vsel %vm284, %v988, %v989
    %v995 = vunpack.c.l.b16 %v984
    %v996 = vunpack.c.l.b16 %v985
    %v997 = vunpack.c.l.b16 %v986
    %v998 = vunpack.c.l.b16 %v987
    %v999 = vpack.c.b16 %v996, %v995
    %v1000 = vpack.c.b16 %v998, %v997
    %1003 = vmatpush.bf16.msra.mxu0 0
    %1004 = vmatpush.bf16.msra.mxu0 0
    %1005 = vmatpush.bf16.msra.mxu0 0
    %1006 = vmatpush.bf16.msra.mxu0 0
    %1007 = vmatpush.bf16.msra.mxu0 0
    %1008 = vmatpush.bf16.msra.mxu0 0
    %1009 = vmatpush.bf16.msra.mxu0 %v1000
    %1010 = vmatpush.bf16.msra.mxu0 %v999
    %1011 = vmatmul.bf16.gmra.mxu0 %v347
    %v1012 = vpop.f32.mrf.mxu0
    %v1013 = vadd.f32 %v990, %v1012
    %v1014 = vpop.f32.mrf.mxu0
    %1015 = vdwg.mxu0
    %v1016 = vxor.u32 %v1013, 2147483648
    %v1017 = vmul.f32 %v1016, 1.442695
    %v1018 = vpow.pop %v1017
    %v1019 = vadd.f32 %v1018, 1.0
    %v1020 = vrcp.pop %v1019
    %v1021 = vmul.f32 %v1019, %v1020
    %v1022 = vsub.f32 1.0, %v1021
    %v1023 = vmul.f32 %v1020, %v1022
    %v1024 = vadd.f32 %v1020, %v1023
    %vm1025 = vweird.f32 %v1019
    %vm1026 = vweird.f32 %v1020
    %vm1027 = vmor %vm1025, %vm1026
    %v1028 = vsel %vm1027, %v1020, %v1024
    %v1029 = vand.u32 2147483647, %v1019
    %vm1030 = vcmp.eq.f32.partialorder %v1029, 8.507059e+37
    %v1031 = vand.u32 %v1019, 2147483648
    %v1032 = vor.u32 1.1754944e-38, %v1031
    %v1033 = vsel %vm1030, %v1032, %v1028
    %v1034 = vmul.f32 1.0, %v1033
    %v1035 = vtanh.pop %v1013
    %v1036 = vmul.f32 %v1034, 0.0
    %1038 = vrot.lane.b32.xlu0 %v1035, 32
    %v1039 = vpop.permute.xlu0 %1038
    %v1041 = vmul.f32 %v1034, %v1039
    %1043 = vrot.lane.b32.xlu0 %v1041, 32
    %v1044 = vpop.permute.xlu0 %1043
    %v1046 = vadd.f32 %v1036, %v1044
    %v1047 = vtanh.pop %v1046
    %1049 = vrot.lane.b32.xlu0 %v1047, 32
    %v1050 = vpop.permute.xlu0 %1049
    %v1052 = vmul.f32 %v1034, %v1050
    %1054 = vrot.lane.b32.xlu0 %v1052, 96
    %v1055 = vpop.permute.xlu0 %1054
    %vm1057 = vcmask 386304
    %1058 = vst.msk [vmem:[#allocation5] sm:$0x3] %vm1057, %v1055
    %vm1059 = vcmask 517504
    %1060 = vst.msk [vmem:[#allocation5 + $0x10] sm:$0x3] %vm1059, %v1055
    %v1061 = vpack.c.bf16 %v1052, %v1052
    %v1062 = vld [vmem:[#allocation4 + $0x2] sm:$0x3]
    %v1063 = vld [vmem:[#allocation4 + $0xe] sm:$0x3]
    %v1064 = vsel %vm284, %v1062, %v1063
    %1066 = vrot.lane.b32.xlu0 %v1061, 64
    %v1067 = vpop.permute.xlu0 %1066
    %v1069 = vsel %vm345, %v1067, 0
    %1071 = vmatpush.bf16.msra.mxu0 0
    %1072 = vmatpush.bf16.msra.mxu0 0
    %1073 = vmatpush.bf16.msra.mxu0 0
    %1074 = vmatpush.bf16.msra.mxu0 0
    %1075 = vmatpush.bf16.msra.mxu0 0
    %1076 = vmatpush.bf16.msra.mxu0 0
    %1077 = vmatpush.bf16.msra.mxu0 %v1000
    %1078 = vmatpush.bf16.msra.mxu0 %v999
    %1079 = vmatmul.bf16.gmra.mxu0 %v1069
    %v1080 = vpop.f32.mrf.mxu0
    %v1081 = vadd.f32 %v1064, %v1080
    %v1082 = vpop.f32.mrf.mxu0
    %1083 = vdwg.mxu0
    %v1084 = vxor.u32 %v1081, 2147483648
    %v1085 = vmul.f32 %v1084, 1.442695
    %v1086 = vpow.pop %v1085
    %v1087 = vadd.f32 %v1086, 1.0
    %v1088 = vrcp.pop %v1087
    %v1089 = vmul.f32 %v1087, %v1088
    %v1090 = vsub.f32 1.0, %v1089
    %v1091 = vmul.f32 %v1088, %v1090
    %v1092 = vadd.f32 %v1088, %v1091
    %vm1093 = vweird.f32 %v1087
    %vm1094 = vweird.f32 %v1088
    %vm1095 = vmor %vm1093, %vm1094
    %v1096 = vsel %vm1095, %v1088, %v1092
    %v1097 = vand.u32 2147483647, %v1087
    %vm1098 = vcmp.eq.f32.partialorder %v1097, 8.507059e+37
    %v1099 = vand.u32 %v1087, 2147483648
    %v1100 = vor.u32 1.1754944e-38, %v1099
    %v1101 = vsel %vm1098, %v1100, %v1096
    %v1102 = vmul.f32 1.0, %v1101
    %v1103 = vtanh.pop %v1081
    %v1104 = vmul.f32 %v1102, %v1046
    %1106 = vrot.lane.b32.xlu0 %v1103, 32
    %v1107 = vpop.permute.xlu0 %1106
    %v1109 = vmul.f32 %v1102, %v1107
    %1111 = vrot.lane.b32.xlu0 %v1109, 32
    %v1112 = vpop.permute.xlu0 %1111
    %v1114 = vadd.f32 %v1104, %v1112
    %v1115 = vtanh.pop %v1114
    %1117 = vrot.lane.b32.xlu0 %v1115, 32
    %v1118 = vpop.permute.xlu0 %1117
    %v1120 = vmul.f32 %v1102, %v1118
    %1122 = vrot.lane.b32.xlu0 %v1120, 96
    %v1123 = vpop.permute.xlu0 %1122
    %1125 = vst.msk [vmem:[#allocation5 + $0x2] sm:$0x3] %vm1057, %v1123
    %1126 = vst.msk [vmem:[#allocation5 + $0xe] sm:$0x3] %vm1059, %v1123
    %v1127 = vpack.c.bf16 %v1120, %v1120
    %v1128 = vld [vmem:[#allocation4 + $0x4] sm:$0x3]
    %v1129 = vld [vmem:[#allocation4 + $0xc] sm:$0x3]
    %v1130 = vsel %vm284, %v1128, %v1129
    %1132 = vrot.lane.b32.xlu0 %v1127, 64
    %v1133 = vpop.permute.xlu0 %1132
    %v1135 = vsel %vm345, %v1133, 0
    %1137 = vmatpush.bf16.msra.mxu0 0
    %1138 = vmatpush.bf16.msra.mxu0 0
    %1139 = vmatpush.bf16.msra.mxu0 0
    %1140 = vmatpush.bf16.msra.mxu0 0
    %1141 = vmatpush.bf16.msra.mxu0 0
    %1142 = vmatpush.bf16.msra.mxu0 0
    %1143 = vmatpush.bf16.msra.mxu0 %v1000
    %1144 = vmatpush.bf16.msra.mxu0 %v999
    %1145 = vmatmul.bf16.gmra.mxu0 %v1135
    %v1146 = vpop.f32.mrf.mxu0
    %v1147 = vadd.f32 %v1130, %v1146
    %v1148 = vpop.f32.mrf.mxu0
    %1149 = vdwg.mxu0
    %v1150 = vxor.u32 %v1147, 2147483648
    %v1151 = vmul.f32 %v1150, 1.442695
    %v1152 = vpow.pop %v1151
    %v1153 = vadd.f32 %v1152, 1.0
    %v1154 = vrcp.pop %v1153
    %v1155 = vmul.f32 %v1153, %v1154
    %v1156 = vsub.f32 1.0, %v1155
    %v1157 = vmul.f32 %v1154, %v1156
    %v1158 = vadd.f32 %v1154, %v1157
    %vm1159 = vweird.f32 %v1153
    %vm1160 = vweird.f32 %v1154
    %vm1161 = vmor %vm1159, %vm1160
    %v1162 = vsel %vm1161, %v1154, %v1158
    %v1163 = vand.u32 2147483647, %v1153
    %vm1164 = vcmp.eq.f32.partialorder %v1163, 8.507059e+37
    %v1165 = vand.u32 %v1153, 2147483648
    %v1166 = vor.u32 1.1754944e-38, %v1165
    %v1167 = vsel %vm1164, %v1166, %v1162
    %v1168 = vmul.f32 1.0, %v1167
    %v1169 = vtanh.pop %v1147
    %v1170 = vmul.f32 %v1168, %v1114
    %1172 = vrot.lane.b32.xlu0 %v1169, 32
    %v1173 = vpop.permute.xlu0 %1172
    %v1175 = vmul.f32 %v1168, %v1173
    %1177 = vrot.lane.b32.xlu0 %v1175, 32
    %v1178 = vpop.permute.xlu0 %1177
    %v1180 = vadd.f32 %v1170, %v1178
    %v1181 = vtanh.pop %v1180
    %1183 = vrot.lane.b32.xlu0 %v1181, 32
    %v1184 = vpop.permute.xlu0 %1183
    %v1186 = vmul.f32 %v1168, %v1184
    %1188 = vrot.lane.b32.xlu0 %v1186, 96
    %v1189 = vpop.permute.xlu0 %1188
    %1191 = vst.msk [vmem:[#allocation5 + $0x4] sm:$0x3] %vm1057, %v1189
    %1192 = vst.msk [vmem:[#allocation5 + $0xc] sm:$0x3] %vm1059, %v1189
    %v1193 = vpack.c.bf16 %v1186, %v1186
    %v1194 = vld [vmem:[#allocation4 + $0x6] sm:$0x3]
    %v1195 = vld [vmem:[#allocation4 + $0xa] sm:$0x3]
    %v1196 = vsel %vm284, %v1194, %v1195
    %1198 = vrot.lane.b32.xlu0 %v1193, 64
    %v1199 = vpop.permute.xlu0 %1198
    %v1201 = vsel %vm345, %v1199, 0
    %1203 = vmatpush.bf16.msra.mxu0 0
    %1204 = vmatpush.bf16.msra.mxu0 0
    %1205 = vmatpush.bf16.msra.mxu0 0
    %1206 = vmatpush.bf16.msra.mxu0 0
    %1207 = vmatpush.bf16.msra.mxu0 0
    %1208 = vmatpush.bf16.msra.mxu0 0
    %1209 = vmatpush.bf16.msra.mxu0 %v1000
    %1210 = vmatpush.bf16.msra.mxu0 %v999
    %1211 = vmatmul.bf16.gmra.mxu0 %v1201
    %v1212 = vpop.f32.mrf.mxu0
    %v1213 = vadd.f32 %v1196, %v1212
    %v1214 = vpop.f32.mrf.mxu0
    %1215 = vdwg.mxu0
    %v1216 = vxor.u32 %v1213, 2147483648
    %v1217 = vmul.f32 %v1216, 1.442695
    %v1218 = vpow.pop %v1217
    %v1219 = vadd.f32 %v1218, 1.0
    %v1220 = vrcp.pop %v1219
    %v1221 = vmul.f32 %v1219, %v1220
    %v1222 = vsub.f32 1.0, %v1221
    %v1223 = vmul.f32 %v1220, %v1222
    %v1224 = vadd.f32 %v1220, %v1223
    %vm1225 = vweird.f32 %v1219
    %vm1226 = vweird.f32 %v1220
    %vm1227 = vmor %vm1225, %vm1226
    %v1228 = vsel %vm1227, %v1220, %v1224
    %v1229 = vand.u32 2147483647, %v1219
    %vm1230 = vcmp.eq.f32.partialorder %v1229, 8.507059e+37
    %v1231 = vand.u32 %v1219, 2147483648
    %v1232 = vor.u32 1.1754944e-38, %v1231
    %v1233 = vsel %vm1230, %v1232, %v1228
    %v1234 = vmul.f32 1.0, %v1233
    %v1235 = vtanh.pop %v1213
    %v1236 = vmul.f32 %v1234, %v1180
    %1238 = vrot.lane.b32.xlu0 %v1235, 32
    %v1239 = vpop.permute.xlu0 %1238
    %v1241 = vmul.f32 %v1234, %v1239
    %1243 = vrot.lane.b32.xlu0 %v1241, 32
    %v1244 = vpop.permute.xlu0 %1243
    %v1246 = vadd.f32 %v1236, %v1244
    %v1247 = vtanh.pop %v1246
    %1249 = vrot.lane.b32.xlu0 %v1247, 32
    %v1250 = vpop.permute.xlu0 %1249
    %v1252 = vmul.f32 %v1234, %v1250
    %1254 = vrot.lane.b32.xlu0 %v1252, 96
    %v1255 = vpop.permute.xlu0 %1254
    %1257 = vst.msk [vmem:[#allocation5 + $0x6] sm:$0x3] %vm1057, %v1255
    %1258 = vst.msk [vmem:[#allocation5 + $0xa] sm:$0x3] %vm1059, %v1255
    %v1259 = vpack.c.bf16 %v1252, %v1252
    %v1260 = vld [vmem:[#allocation4 + $0x8] sm:$0x3]
    %1262 = vrot.lane.b32.xlu0 %v1259, 64
    %v1263 = vpop.permute.xlu0 %1262
    %v1265 = vsel %vm345, %v1263, 0
    %1267 = vmatpush.bf16.msra.mxu0 0
    %1268 = vmatpush.bf16.msra.mxu0 0
    %1269 = vmatpush.bf16.msra.mxu0 0
    %1270 = vmatpush.bf16.msra.mxu0 0
    %1271 = vmatpush.bf16.msra.mxu0 0
    %1272 = vmatpush.bf16.msra.mxu0 0
    %1273 = vmatpush.bf16.msra.mxu0 %v1000
    %1274 = vmatpush.bf16.msra.mxu0 %v999
    %1275 = vmatmul.bf16.gmra.mxu0 %v1265
    %v1276 = vpop.f32.mrf.mxu0
    %v1277 = vadd.f32 %v1260, %v1276
    %v1278 = vpop.f32.mrf.mxu0
    %1279 = vdwg.mxu0
    %v1280 = vxor.u32 %v1277, 2147483648
    %v1281 = vmul.f32 %v1280, 1.442695
    %v1282 = vpow.pop %v1281
    %v1283 = vadd.f32 %v1282, 1.0
    %v1284 = vrcp.pop %v1283
    %v1285 = vmul.f32 %v1283, %v1284
    %v1286 = vsub.f32 1.0, %v1285
    %v1287 = vmul.f32 %v1284, %v1286
    %v1288 = vadd.f32 %v1284, %v1287
    %vm1289 = vweird.f32 %v1283
    %vm1290 = vweird.f32 %v1284
    %vm1291 = vmor %vm1289, %vm1290
    %v1292 = vsel %vm1291, %v1284, %v1288
    %v1293 = vand.u32 2147483647, %v1283
    %vm1294 = vcmp.eq.f32.partialorder %v1293, 8.507059e+37
    %v1295 = vand.u32 %v1283, 2147483648
    %v1296 = vor.u32 1.1754944e-38, %v1295
    %v1297 = vsel %vm1294, %v1296, %v1292
    %v1298 = vmul.f32 1.0, %v1297
    %v1299 = vtanh.pop %v1277
    %v1300 = vmul.f32 %v1298, %v1246
    %1302 = vrot.lane.b32.xlu0 %v1299, 32
    %v1303 = vpop.permute.xlu0 %1302
    %v1305 = vmul.f32 %v1298, %v1303
    %1307 = vrot.lane.b32.xlu0 %v1305, 32
    %v1308 = vpop.permute.xlu0 %1307
    %v1310 = vadd.f32 %v1300, %v1308
    %v1311 = vtanh.pop %v1310
    %1313 = vrot.lane.b32.xlu0 %v1311, 32
    %v1314 = vpop.permute.xlu0 %1313
    %v1316 = vmul.f32 %v1298, %v1314
    %1318 = vrot.lane.b32.xlu0 %v1316, 96
    %v1319 = vpop.permute.xlu0 %1318
    %1321 = vst.msk [vmem:[#allocation5 + $0x8] sm:$0x3] %vm1057, %v1319
    %1322 = vst.msk [vmem:[#allocation5 + $0x8] sm:$0x3] %vm1059, %v1319
    %v1323 = vpack.c.bf16 %v1316, %v1316
    %v1324 = vld [vmem:[#allocation4 + $0xa] sm:$0x3]
    %v1325 = vld [vmem:[#allocation4 + $0x6] sm:$0x3]
    %v1326 = vsel %vm284, %v1324, %v1325
    %1328 = vrot.lane.b32.xlu0 %v1323, 64
    %v1329 = vpop.permute.xlu0 %1328
    %v1331 = vsel %vm345, %v1329, 0
    %1333 = vmatpush.bf16.msra.mxu0 0
    %1334 = vmatpush.bf16.msra.mxu0 0
    %1335 = vmatpush.bf16.msra.mxu0 0
    %1336 = vmatpush.bf16.msra.mxu0 0
    %1337 = vmatpush.bf16.msra.mxu0 0
    %1338 = vmatpush.bf16.msra.mxu0 0
    %1339 = vmatpush.bf16.msra.mxu0 %v1000
    %1340 = vmatpush.bf16.msra.mxu0 %v999
    %1341 = vmatmul.bf16.gmra.mxu0 %v1331
    %v1342 = vpop.f32.mrf.mxu0
    %v1343 = vadd.f32 %v1326, %v1342
    %v1344 = vpop.f32.mrf.mxu0
    %1345 = vdwg.mxu0
    %v1346 = vxor.u32 %v1343, 2147483648
    %v1347 = vmul.f32 %v1346, 1.442695
    %v1348 = vpow.pop %v1347
    %v1349 = vadd.f32 %v1348, 1.0
    %v1350 = vrcp.pop %v1349
    %v1351 = vmul.f32 %v1349, %v1350
    %v1352 = vsub.f32 1.0, %v1351
    %v1353 = vmul.f32 %v1350, %v1352
    %v1354 = vadd.f32 %v1350, %v1353
    %vm1355 = vweird.f32 %v1349
    %vm1356 = vweird.f32 %v1350
    %vm1357 = vmor %vm1355, %vm1356
    %v1358 = vsel %vm1357, %v1350, %v1354
    %v1359 = vand.u32 2147483647, %v1349
    %vm1360 = vcmp.eq.f32.partialorder %v1359, 8.507059e+37
    %v1361 = vand.u32 %v1349, 2147483648
    %v1362 = vor.u32 1.1754944e-38, %v1361
    %v1363 = vsel %vm1360, %v1362, %v1358
    %v1364 = vmul.f32 1.0, %v1363
    %v1365 = vtanh.pop %v1343
    %v1366 = vmul.f32 %v1364, %v1310
    %1368 = vrot.lane.b32.xlu0 %v1365, 32
    %v1369 = vpop.permute.xlu0 %1368
    %v1371 = vmul.f32 %v1364, %v1369
    %1373 = vrot.lane.b32.xlu0 %v1371, 32
    %v1374 = vpop.permute.xlu0 %1373
    %v1376 = vadd.f32 %v1366, %v1374
    %v1377 = vtanh.pop %v1376
    %1379 = vrot.lane.b32.xlu0 %v1377, 32
    %v1380 = vpop.permute.xlu0 %1379
    %v1382 = vmul.f32 %v1364, %v1380
    %1384 = vrot.lane.b32.xlu0 %v1382, 96
    %v1385 = vpop.permute.xlu0 %1384
    %1387 = vst.msk [vmem:[#allocation5 + $0xa] sm:$0x3] %vm1057, %v1385
    %1388 = vst.msk [vmem:[#allocation5 + $0x6] sm:$0x3] %vm1059, %v1385
    %v1389 = vpack.c.bf16 %v1382, %v1382
    %v1390 = vld [vmem:[#allocation4 + $0xc] sm:$0x3]
    %v1391 = vld [vmem:[#allocation4 + $0x4] sm:$0x3]
    %v1392 = vsel %vm284, %v1390, %v1391
    %1394 = vrot.lane.b32.xlu0 %v1389, 64
    %v1395 = vpop.permute.xlu0 %1394
    %v1397 = vsel %vm345, %v1395, 0
    %1399 = vmatpush.bf16.msra.mxu0 0
    %1400 = vmatpush.bf16.msra.mxu0 0
    %1401 = vmatpush.bf16.msra.mxu0 0
    %1402 = vmatpush.bf16.msra.mxu0 0
    %1403 = vmatpush.bf16.msra.mxu0 0
    %1404 = vmatpush.bf16.msra.mxu0 0
    %1405 = vmatpush.bf16.msra.mxu0 %v1000
    %1406 = vmatpush.bf16.msra.mxu0 %v999
    %1407 = vmatmul.bf16.gmra.mxu0 %v1397
    %v1408 = vpop.f32.mrf.mxu0
    %v1409 = vadd.f32 %v1392, %v1408
    %v1410 = vpop.f32.mrf.mxu0
    %1411 = vdwg.mxu0
    %v1412 = vxor.u32 %v1409, 2147483648
    %v1413 = vmul.f32 %v1412, 1.442695
    %v1414 = vpow.pop %v1413
    %v1415 = vadd.f32 %v1414, 1.0
    %v1416 = vrcp.pop %v1415
    %v1417 = vmul.f32 %v1415, %v1416
    %v1418 = vsub.f32 1.0, %v1417
    %v1419 = vmul.f32 %v1416, %v1418
    %v1420 = vadd.f32 %v1416, %v1419
    %vm1421 = vweird.f32 %v1415
    %vm1422 = vweird.f32 %v1416
    %vm1423 = vmor %vm1421, %vm1422
    %v1424 = vsel %vm1423, %v1416, %v1420
    %v1425 = vand.u32 2147483647, %v1415
    %vm1426 = vcmp.eq.f32.partialorder %v1425, 8.507059e+37
    %v1427 = vand.u32 %v1415, 2147483648
    %v1428 = vor.u32 1.1754944e-38, %v1427
    %v1429 = vsel %vm1426, %v1428, %v1424
    %v1430 = vmul.f32 1.0, %v1429
    %v1431 = vtanh.pop %v1409
    %v1432 = vmul.f32 %v1430, %v1376
    %1434 = vrot.lane.b32.xlu0 %v1431, 32
    %v1435 = vpop.permute.xlu0 %1434
    %v1437 = vmul.f32 %v1430, %v1435
    %1439 = vrot.lane.b32.xlu0 %v1437, 32
    %v1440 = vpop.permute.xlu0 %1439
    %v1442 = vadd.f32 %v1432, %v1440
    %v1443 = vtanh.pop %v1442
    %1445 = vrot.lane.b32.xlu0 %v1443, 32
    %v1446 = vpop.permute.xlu0 %1445
    %v1448 = vmul.f32 %v1430, %v1446
    %1450 = vrot.lane.b32.xlu0 %v1448, 96
    %v1451 = vpop.permute.xlu0 %1450
    %1453 = vst.msk [vmem:[#allocation5 + $0xc] sm:$0x3] %vm1057, %v1451
    %1454 = vst.msk [vmem:[#allocation5 + $0x4] sm:$0x3] %vm1059, %v1451
    %v1455 = vpack.c.bf16 %v1448, %v1448
    %v1456 = vld [vmem:[#allocation4 + $0xe] sm:$0x3]
    %v1457 = vld [vmem:[#allocation4 + $0x2] sm:$0x3]
    %v1458 = vsel %vm284, %v1456, %v1457
    %1460 = vrot.lane.b32.xlu0 %v1455, 64
    %v1461 = vpop.permute.xlu0 %1460
    %v1463 = vsel %vm345, %v1461, 0
    %1465 = vmatpush.bf16.msra.mxu0 0
    %1466 = vmatpush.bf16.msra.mxu0 0
    %1467 = vmatpush.bf16.msra.mxu0 0
    %1468 = vmatpush.bf16.msra.mxu0 0
    %1469 = vmatpush.bf16.msra.mxu0 0
    %1470 = vmatpush.bf16.msra.mxu0 0
    %1471 = vmatpush.bf16.msra.mxu0 %v1000
    %1472 = vmatpush.bf16.msra.mxu0 %v999
    %1473 = vmatmul.bf16.gmra.mxu0 %v1463
    %v1474 = vpop.f32.mrf.mxu0
    %v1475 = vadd.f32 %v1458, %v1474
    %v1476 = vpop.f32.mrf.mxu0
    %1477 = vdwg.mxu0
    %v1478 = vxor.u32 %v1475, 2147483648
    %v1479 = vmul.f32 %v1478, 1.442695
    %v1480 = vpow.pop %v1479
    %v1481 = vadd.f32 %v1480, 1.0
    %v1482 = vrcp.pop %v1481
    %v1483 = vmul.f32 %v1481, %v1482
    %v1484 = vsub.f32 1.0, %v1483
    %v1485 = vmul.f32 %v1482, %v1484
    %v1486 = vadd.f32 %v1482, %v1485
    %vm1487 = vweird.f32 %v1481
    %vm1488 = vweird.f32 %v1482
    %vm1489 = vmor %vm1487, %vm1488
    %v1490 = vsel %vm1489, %v1482, %v1486
    %v1491 = vand.u32 2147483647, %v1481
    %vm1492 = vcmp.eq.f32.partialorder %v1491, 8.507059e+37
    %v1493 = vand.u32 %v1481, 2147483648
    %v1494 = vor.u32 1.1754944e-38, %v1493
    %v1495 = vsel %vm1492, %v1494, %v1490
    %v1496 = vmul.f32 1.0, %v1495
    %v1497 = vtanh.pop %v1475
    %v1498 = vmul.f32 %v1496, %v1442
    %1500 = vrot.lane.b32.xlu0 %v1497, 32
    %v1501 = vpop.permute.xlu0 %1500
    %v1503 = vmul.f32 %v1496, %v1501
    %1505 = vrot.lane.b32.xlu0 %v1503, 32
    %v1506 = vpop.permute.xlu0 %1505
    %v1508 = vadd.f32 %v1498, %v1506
    %v1509 = vtanh.pop %v1508
    %1511 = vrot.lane.b32.xlu0 %v1509, 32
    %v1512 = vpop.permute.xlu0 %1511
    %v1514 = vmul.f32 %v1496, %v1512
    %1516 = vrot.lane.b32.xlu0 %v1514, 96
    %v1517 = vpop.permute.xlu0 %1516
    %1519 = vst.msk [vmem:[#allocation5 + $0xe] sm:$0x3] %vm1057, %v1517
    %1520 = vst.msk [vmem:[#allocation5 + $0x2] sm:$0x3] %vm1059, %v1517
    %v1521 = vpack.c.bf16 %v1514, %v1514
    %v1522 = vld [vmem:[#allocation4 + $0x10] sm:$0x3]
    %v1523 = vld [vmem:[#allocation4] sm:$0x3]
    %v1524 = vsel %vm284, %v1522, %v1523
    %1526 = vrot.lane.b32.xlu0 %v1521, 64
    %v1527 = vpop.permute.xlu0 %1526
    %v1529 = vsel %vm345, %v1527, 0
    %1531 = vmatpush.bf16.msra.mxu0 0
    %1532 = vmatpush.bf16.msra.mxu0 0
    %1533 = vmatpush.bf16.msra.mxu0 0
    %1534 = vmatpush.bf16.msra.mxu0 0
    %1535 = vmatpush.bf16.msra.mxu0 0
    %1536 = vmatpush.bf16.msra.mxu0 0
    %1537 = vmatpush.bf16.msra.mxu0 %v1000
    %1538 = vmatpush.bf16.msra.mxu0 %v999
    %1539 = vmatmul.bf16.gmra.mxu0 %v1529
    %v1540 = vpop.f32.mrf.mxu0
    %v1541 = vadd.f32 %v1524, %v1540
    %v1542 = vpop.f32.mrf.mxu0
    %1543 = vdwg.mxu0
    %v1544 = vxor.u32 %v1541, 2147483648
    %v1545 = vmul.f32 %v1544, 1.442695
    %v1546 = vpow.pop %v1545
    %v1547 = vadd.f32 %v1546, 1.0
    %v1548 = vrcp.pop %v1547
    %v1549 = vmul.f32 %v1547, %v1548
    %v1550 = vsub.f32 1.0, %v1549
    %v1551 = vmul.f32 %v1548, %v1550
    %v1552 = vadd.f32 %v1548, %v1551
    %vm1553 = vweird.f32 %v1547
    %vm1554 = vweird.f32 %v1548
    %vm1555 = vmor %vm1553, %vm1554
    %v1556 = vsel %vm1555, %v1548, %v1552
    %v1557 = vand.u32 2147483647, %v1547
    %vm1558 = vcmp.eq.f32.partialorder %v1557, 8.507059e+37
    %v1559 = vand.u32 %v1547, 2147483648
    %v1560 = vor.u32 1.1754944e-38, %v1559
    %v1561 = vsel %vm1558, %v1560, %v1556
    %v1562 = vmul.f32 1.0, %v1561
    %v1563 = vtanh.pop %v1541
    %v1564 = vmul.f32 %v1562, %v1508
    %1566 = vrot.lane.b32.xlu0 %v1563, 32
    %v1567 = vpop.permute.xlu0 %1566
    %v1569 = vmul.f32 %v1562, %v1567
    %1571 = vrot.lane.b32.xlu0 %v1569, 32
    %v1572 = vpop.permute.xlu0 %1571
    %v1574 = vadd.f32 %v1564, %v1572
    %v1575 = vtanh.pop %v1574
    %1577 = vrot.lane.b32.xlu0 %v1575, 32
    %v1578 = vpop.permute.xlu0 %1577
    %v1580 = vmul.f32 %v1562, %v1578
    %1582 = vrot.lane.b32.xlu0 %v1580, 96
    %v1583 = vpop.permute.xlu0 %1582
    %1585 = vst.msk [vmem:[#allocation5 + $0x10] sm:$0x3] %vm1057, %v1583
    %1586 = vst.msk [vmem:[#allocation5] sm:$0x3] %vm1059, %v1583
    %v1587 = vld [vmem:[#allocation5] sm:$0xff]
    %v1588 = vld [vmem:[#allocation5 + $0x8] sm:$0xff]
    %v1589 = vld [vmem:[#allocation5 + $0x10] sm:$0x3]
    %v1590 = vld [vmem:[#allocation15] sm:$0x1]
    %v1592 = vperm.slane %v1590, 0
    %1593 = vrot.lane.b32.xlu0 %v1592, 32
    %v1594 = vpop.permute.xlu0 %1593
    %v1596 = vmul.f32 %v1587, %v1594
    %v1597 = vmul.f32 %v1588, %v1594
    %v1598 = vmul.f32 %v1589, %v1594
    %1602 = vrot.lane.b32.xlu0 %v1596, 96
    %v1603 = vpop.permute.xlu0 %1602
    %1604 = vrot.lane.b32.xlu0 %v1597, 96
    %v1605 = vpop.permute.xlu0 %1604
    %1606 = vrot.lane.b32.xlu0 %v1598, 96
    %v1607 = vpop.permute.xlu0 %1606
    %v1611 = vsel %vm345, %v1603, 0.0
    %1612 = vadd.xlane.f32.xlu0 %v1611
    %v1613 = vpop.xlane.xlu0 %1612
    %v1614 = vsel %vm345, %v1605, 0.0
    %1615 = vadd.xlane.f32.xlu0 %v1614
    %v1616 = vpop.xlane.xlu0 %1615
    %vm1617 = vcmask 254976
    %v1618 = vsel %vm1617, %v1607, 0.0
    %1619 = vadd.xlane.f32.xlu0 %v1618
    %v1620 = vpop.xlane.xlu0 %1619
    %v1621 = vld [vmem:[#allocation6] sm:$0x1]
    %v1623 = vperm.slane %v1621, 0
    %v1625 = vadd.f32 %v1613, %v1623
    %v1626 = vadd.f32 %v1616, %v1623
    %v1627 = vadd.f32 %v1620, %v1623
    %v1628 = vtanh.pop %v1625
    %v1629 = vtanh.pop %v1626
    %v1630 = vtanh.pop %v1627
    %v1631 = vmul.f32 %v1628, 1.442695
    %v1632 = vpow.pop %v1631
    %v1633 = vmul.f32 %v1629, 1.442695
    %v1634 = vpow.pop %v1633
    %v1635 = vmul.f32 %v1630, 1.442695
    %v1636 = vpow.pop %v1635
    %v1637 = vld [vmem:[%s1] sm:$0x1]
    %1639 = vset.pattern.permute.xlu0 0
    %1640 = vperm.xlu0 %1639, %v1632
    %v1641 = vpop.permute.xlu0 %1640
    %1644 = vset.pattern.permute.xlu0 0
    %1645 = vperm.xlu0 %1644, %v1634
    %v1646 = vpop.permute.xlu0 %1645
    %1649 = vset.pattern.permute.xlu0 0
    %1650 = vperm.xlu0 %1649, %v1636
    %v1651 = vpop.permute.xlu0 %1650
    %v1653 = vmul.f32 %v1641, %v1587
    %v1654 = vmul.f32 %v1646, %v1588
    %v1655 = vmul.f32 %v1651, %v1589
    %1659 = vrot.lane.b32.xlu0 %v1653, 96
    %v1660 = vpop.permute.xlu0 %1659
    %1661 = vrot.lane.b32.xlu0 %v1654, 96
    %v1662 = vpop.permute.xlu0 %1661
    %1663 = vrot.lane.b32.xlu0 %v1655, 96
    %v1664 = vpop.permute.xlu0 %1663
    %1668 = vrot.lane.b32.xlu0 %v1632, 32
    %v1669 = vpop.permute.xlu0 %1668
    %1670 = vrot.lane.b32.xlu0 %v1634, 32
    %v1671 = vpop.permute.xlu0 %1670
    %1672 = vrot.lane.b32.xlu0 %v1636, 32
    %v1673 = vpop.permute.xlu0 %1672
    %v1677 = vsel %vm345, %v1660, %v1669
    %v1678 = vsel %vm345, %v1662, %v1671
    %v1679 = vsel %vm345, %v1664, %v1673
    %v1680 = vpack.c.bf16 %v1678, %v1677
    %v1681 = vpack.c.bf16 %v1679, %v1679
    %vm1682 = vcmask 146432
    %v1684 = vsel %vm1682, %v1637, 0
    %vm1686 = vcmask 1040384
    %v1688 = vsel %vm1686, %v1681, 0
    %1690 = vmatpush.bf16.msra.mxu0 0
    %1691 = vmatpush.bf16.msra.mxu0 0
    %1692 = vmatpush.bf16.msra.mxu0 0
    %1693 = vmatpush.bf16.msra.mxu0 0
    %1694 = vmatpush.bf16.msra.mxu0 0
    %1695 = vmatpush.bf16.msra.mxu0 0
    %1696 = vmatpush.bf16.msra.mxu0 %v1688
    %1697 = vmatpush.bf16.msra.mxu0 %v1680
    %1698 = vmatmul.bf16.gmra.mxu0 %v1684
    %v1699 = vpop.f32.mrf.mxu0
    %v1700 = vadd.f32 0.0, %v1699
    %v1701 = vpop.f32.mrf.mxu0
    %1702 = vdwg.mxu0
    %v1703 = vrcp.pop %v1700
    %1705 = vset.pattern.permute.xlu0 32
    %1706 = vperm.xlu0 %1705, %v1703
    %v1707 = vpop.permute.xlu0 %1706
    %v1709 = vmul.f32 %v1700, %v1707
    %v1710 = vld [vmem:[%s14] sm:$0xf]
    %v1711 = vld [vmem:[%s14 + $0x4] sm:$0xf]
    %v1712 = vld [vmem:[%s14 + $0x8] sm:$0xf]
    %v1713 = vld [vmem:[%s14 + $0xc] sm:$0xf]
    %v1714 = vpack.c.bf16 %v1709, %v1709
    %v1715 = vld [vmem:[#allocation16] sm:$0x1]
    %v1717 = vperm.slane %v1715, 0
    %v1723 = vunpack.c.l.b16 %v1710
    %v1724 = vunpack.c.l.b16 %v1711
    %v1725 = vunpack.c.l.b16 %v1712
    %v1726 = vunpack.c.l.b16 %v1713
    %v1727 = vpack.c.b16 %v1724, %v1723
    %v1728 = vpack.c.b16 %v1726, %v1725
    %v1732 = vsel %vm345, %v1714, 0
    %1734 = vmatpush.bf16.msra.mxu0 0
    %1735 = vmatpush.bf16.msra.mxu0 0
    %1736 = vmatpush.bf16.msra.mxu0 0
    %1737 = vmatpush.bf16.msra.mxu0 0
    %1738 = vmatpush.bf16.msra.mxu0 0
    %1739 = vmatpush.bf16.msra.mxu0 0
    %1740 = vmatpush.bf16.msra.mxu0 %v1728
    %1741 = vmatpush.bf16.msra.mxu0 %v1727
    %1742 = vmatmul.bf16.gmra.mxu0 %v1732
    %v1743 = vpop.f32.mrf.mxu0
    %v1744 = vadd.f32 %v1717, %v1743
    %v1745 = vpop.f32.mrf.mxu0
    %1746 = vdwg.mxu0
    %v1747 = vmax.f32 %v1744, 0.0
    %v1748 = vld [vmem:[%s16] sm:$0xf]
    %v1749 = vld [vmem:[%s16 + $0x4] sm:$0xf]
    %v1750 = vld [vmem:[%s16 + $0x8] sm:$0xf]
    %v1751 = vld [vmem:[%s16 + $0xc] sm:$0xf]
    %v1752 = vld [vmem:[%s16 + $0x10] sm:$0xf]
    %v1753 = vld [vmem:[%s16 + $0x14] sm:$0xf]
    %v1754 = vld [vmem:[%s16 + $0x18] sm:$0xf]
    %v1755 = vld [vmem:[%s16 + $0x1c] sm:$0xf]
    %v1756 = vpack.c.bf16 %v1747, %v1747
    %v1757 = vld [vmem:[#allocation7] sm:$0x1]
    %v1759 = vperm.slane %v1757, 0
    %v1769 = vunpack.c.l.b16 %v1748
    %v1770 = vunpack.c.l.b16 %v1749
    %v1771 = vunpack.c.l.b16 %v1750
    %v1772 = vunpack.c.l.b16 %v1751
    %v1773 = vunpack.c.l.b16 %v1752
    %v1774 = vunpack.c.l.b16 %v1753
    %v1775 = vunpack.c.l.b16 %v1754
    %v1776 = vunpack.c.l.b16 %v1755
    %v1777 = vpack.c.b16 %v1770, %v1769
    %v1778 = vpack.c.b16 %v1772, %v1771
    %v1779 = vpack.c.b16 %v1774, %v1773
    %v1780 = vpack.c.b16 %v1776, %v1775
    %vm1785 = vcmask 523264
    %v1787 = vsel %vm1785, %v1756, 0
    %1789 = vmatpush.bf16.msra.mxu0 0
    %1790 = vmatpush.bf16.msra.mxu0 0
    %1791 = vmatpush.bf16.msra.mxu0 0
    %1792 = vmatpush.bf16.msra.mxu0 0
    %1793 = vmatpush.bf16.msra.mxu0 %v1780
    %1794 = vmatpush.bf16.msra.mxu0 %v1779
    %1795 = vmatpush.bf16.msra.mxu0 %v1778
    %1796 = vmatpush.bf16.msra.mxu0 %v1777
    %1797 = vmatmul.bf16.gmra.mxu0 %v1787
    %v1798 = vpop.f32.mrf.mxu0
    %v1799 = vadd.f32 %v1759, %v1798
    %v1800 = vpop.f32.mrf.mxu0
    %1801 = vdwg.mxu0
    %vm1802 = vcmask 1024
    %1803 = vst.msk [vmem:[%s18] sm:$0x3] %vm1802, %v1799
    // Predicated region
    $region98: #{forward.1} parent=1 // pred_check
      _
    $region99: #{forward.1} parent=1 // pred_check_branch
      %1805 = sbr.rel (0) target = $region101
    $region100: #{forward.1} parent=1 // pred_region
      _
    $region101: #{forward.1} parent=1 // pred_fallthru
      _
    // Predicated region
    $region102: #{forward.1} parent=1 // pred_check
      _
    $region103: #{forward.1} parent=1 // pred_check_branch
      %1807 = sbr.rel (0) target = $region105
    $region104: #{forward.1} parent=1 // pred_region
      _
    $region105: #{forward.1} parent=1 // pred_fallthru
      _
    %1808 = vsyncpa [#allocation9], 1
    %1809 = vsyncpa [#allocation11], 1
    %1810 = vsyncpa [#allocation14], 1
    %1811 = vsyncpa [#allocation17], 1

</llo_original>
